<compile_context>
chip_gen: v6e
topology: v6e:2x2x1
jax: 0.10.0
libtpu: 0.0.40
codegen_flags: <defaults>
</compile_context>

<pallas_src>
import functools

import jax
import jax.numpy as jnp
from jax.experimental import pallas as pl
from jax.experimental.pallas import tpu as pltpu

BN_EPS = 1e-5          # PyTorch BatchNorm2d default eps
LRELU_SLOPE = 0.2      # LeakyReLU(0.2)


def _lrelu(v):
    return jnp.where(v >= 0, v, LRELU_SLOPE * v)


# ------------------------------ fused kernel --------------------------------

def _reduction_v4a_kernel(x_ref, sel_ref, w1_ref, b1_ref, w30_ref, b30_ref,
                          w31_ref, b31_ref, w32_ref, b32_ref,
                          o_ref, t0p_ref, t1_ref):
    """One batch image per grid step; all three branches fused.

    x_ref   : (H, W, Cin)          input image (channels on the lane axis)
    sel_ref : (OW, W-2)            0/1 matrix picking even (stride-2) columns
    w1 /b1  : (9, Cin, n)/(1, n)   branch_1x1   3x3 s2  (BN scale pre-folded)
    w30/b30 : (Cin, k)   /(1, k)   branch_3x3_0 1x1 s1
    w31/b31 : (9, k, l)  /(1, l)   branch_3x3_1 3x3 s1 p1
    w32/b32 : (9, l, m)  /(1, m)   branch_3x3_2 3x3 s2
    o_ref   : (OH, OW, n+m+Cin)    channel-concatenated output slab
    t0p_ref : (H+2, W+2, k) VMEM   zero-padded branch_3x3_0 activation
    t1_ref  : (H, W, l)     VMEM   branch_3x3_1 activation
    """
    f32 = jnp.float32
    H, W, _ = x_ref.shape
    OH, OW, _ = o_ref.shape
    WV = W - 2                                   # stride-1 valid row width

    # Loop-invariant loads.
    sel = sel_ref[...]
    w1, b1 = w1_ref[...], b1_ref[...]
    w30, b30 = w30_ref[...], b30_ref[...]
    w31, b31 = w31_ref[...], b31_ref[...]
    w32, b32 = w32_ref[...], b32_ref[...]
    n_ch = w1.shape[2]
    m_ch = w32.shape[2]

    # ---- branch_3x3 stage 0: 1x1 conv + BN bias + LeakyReLU, written into a
    #      zero-padded VMEM scratch (padding ring used by the pad=1 conv). ----
    t0p_ref[...] = jnp.zeros(t0p_ref.shape, f32)

    def stage0(y, c):
        v = jnp.dot(x_ref[y], w30, preferred_element_type=f32) + b30
        t0p_ref[y + 1, 1:W + 1, :] = _lrelu(v)
        return c

    jax.lax.fori_loop(0, H, stage0, 0)

    # ---- branch_3x3 stage 1: 3x3, stride 1, pad 1 -> VMEM scratch.
    #      9 shifted (W, k) @ (k, l) matmuls per output row (in-kernel im2col).
    def stage1(y, c):
        acc = jnp.dot(t0p_ref[y, 0:W, :], w31[0], preferred_element_type=f32)
        for t in range(1, 9):
            di, dj = t // 3, t % 3
            acc = acc + jnp.dot(t0p_ref[y + di, dj:dj + W, :], w31[t],
                                preferred_element_type=f32)
        t1_ref[y, :, :] = _lrelu(acc + b31)
        return c

    jax.lax.fori_loop(0, H, stage1, 0)

    # ---- one pass over output rows: branch_1x1 (3x3 s2), branch_3x3 stage 2
    #      (3x3 s2) and branch_pool (3x3 s2 max), stored directly into the
    #      concatenated output slab. ----
    def outrow(y, c):
        a1 = None                                # (WV, n) stride-1 row
        a3 = None                                # (WV, m) stride-1 row
        for t in range(9):
            di, dj = t // 3, t % 3
            xa = x_ref[2 * y + di, dj:dj + WV, :]
            ta = t1_ref[2 * y + di, dj:dj + WV, :]
            d1 = jnp.dot(xa, w1[t], preferred_element_type=f32)
            d3 = jnp.dot(ta, w32[t], preferred_element_type=f32)
            a1 = d1 if a1 is None else a1 + d1
            a3 = d3 if a3 is None else a3 + d3
        # Stride-2 column pick via constant 0/1 matmul, then bias + LeakyReLU.
        v1 = _lrelu(jnp.dot(sel, a1, preferred_element_type=f32) + b1)
        v3 = _lrelu(jnp.dot(sel, a3, preferred_element_type=f32) + b32)

        mp = None                                # (WV, Cin) stride-1 max row
        for di in range(3):
            r = x_ref[2 * y + di]
            a = jnp.maximum(jnp.maximum(r[0:WV, :], r[1:WV + 1, :]),
                            r[2:WV + 2, :])
            mp = a if mp is None else jnp.maximum(mp, a)
        vp = jnp.dot(sel, mp, preferred_element_type=f32)

        o_ref[y, :, 0:n_ch] = v1
        o_ref[y, :, n_ch:n_ch + m_ch] = v3
        o_ref[y, :, n_ch + m_ch:] = vp
        return c

    jax.lax.fori_loop(0, OH, outrow, 0)


# ------------------- wrapper: BN folding + single pallas_call ----------------

def _fold_conv_bn_3x3(w, gamma, beta, mean, var):
    """Torch (Cout, Cin, 3, 3) conv weight + eval-mode BN -> per-tap matrices
    (9, Cin, Cout) with the BN scale folded in, plus a (1, Cout) bias."""
    cout, cin = w.shape[0], w.shape[1]
    scale = gamma / jnp.sqrt(var + BN_EPS)
    w9 = jnp.transpose(w, (2, 3, 1, 0)).reshape(9, cin, cout) * scale
    bias = (beta - mean * scale).reshape(1, cout)
    return w9.astype(jnp.float32), bias.astype(jnp.float32)


def _fold_conv_bn_1x1(w, gamma, beta, mean, var):
    cout, cin = w.shape[0], w.shape[1]
    scale = gamma / jnp.sqrt(var + BN_EPS)
    wm = jnp.transpose(w.reshape(cout, cin), (1, 0)) * scale
    bias = (beta - mean * scale).reshape(1, cout)
    return wm.astype(jnp.float32), bias.astype(jnp.float32)


def reduction_v4a(x_nchw, params):
    """torch.cat([branch_1x1(x), branch_3x3(x), branch_pool(x)], dim=1)."""
    N, Cin, H, W = x_nchw.shape
    OH = (H - 3) // 2 + 1
    OW = (W - 3) // 2 + 1
    WV = W - 2

    w1, b1 = _fold_conv_bn_3x3(*params["branch_1x1"])
    w30, b30 = _fold_conv_bn_1x1(*params["branch_3x3_0"])
    w31, b31 = _fold_conv_bn_3x3(*params["branch_3x3_1"])
    w32, b32 = _fold_conv_bn_3x3(*params["branch_3x3_2"])
    k_ch, l_ch = w30.shape[1], w31.shape[2]
    n_ch, m_ch = w1.shape[2], w32.shape[2]
    c_tot = n_ch + m_ch + Cin

    # 0/1 matrix picking the even columns of a stride-1 conv row (stride 2).
    sel = (jnp.arange(WV)[None, :] == (2 * jnp.arange(OW))[:, None])
    sel = sel.astype(jnp.float32)

    # Channels-last view so channels map to the TPU lane axis inside the kernel.
    x_nhwc = jnp.transpose(x_nchw, (0, 2, 3, 1)).astype(jnp.float32)

    out_nhwc = pl.pallas_call(
        _reduction_v4a_kernel,
        out_shape=jax.ShapeDtypeStruct((N, OH, OW, c_tot), jnp.float32),
        grid=(N,),
        in_specs=[
            pl.BlockSpec((None, H, W, Cin), lambda b: (b, 0, 0, 0)),
            pl.BlockSpec((OW, WV), lambda b: (0, 0)),
            pl.BlockSpec((9, Cin, n_ch), lambda b: (0, 0, 0)),
            pl.BlockSpec((1, n_ch), lambda b: (0, 0)),
            pl.BlockSpec((Cin, k_ch), lambda b: (0, 0)),
            pl.BlockSpec((1, k_ch), lambda b: (0, 0)),
            pl.BlockSpec((9, k_ch, l_ch), lambda b: (0, 0, 0)),
            pl.BlockSpec((1, l_ch), lambda b: (0, 0)),
            pl.BlockSpec((9, l_ch, m_ch), lambda b: (0, 0, 0)),
            pl.BlockSpec((1, m_ch), lambda b: (0, 0)),
        ],
        out_specs=pl.BlockSpec((None, OH, OW, c_tot), lambda b: (b, 0, 0, 0)),
        scratch_shapes=[
            pltpu.VMEM((H + 2, W + 2, k_ch), jnp.float32),   # padded stage-0 act
            pltpu.VMEM((H, W, l_ch), jnp.float32),           # stage-1 act
        ],
        compiler_params=pltpu.CompilerParams(
            dimension_semantics=("parallel",)),
    )(x_nhwc, sel, w1, b1, w30, b30, w31, b31, w32, b32)

    return jnp.transpose(out_nhwc, (0, 3, 1, 2))             # NHWC -> NCHW


# ----------------------------- pure-JAX reference ----------------------------

def _ref_conv_bn_lrelu(x, p, stride, pad):
    w, gamma, beta, mean, var = p
    y = jax.lax.conv_general_dilated(
        x, w, window_strides=(stride, stride),
        padding=((pad, pad), (pad, pad)),
        dimension_numbers=("NCHW", "OIHW", "NCHW"),
        precision=jax.lax.Precision.HIGHEST)
    s = gamma / jnp.sqrt(var + BN_EPS)
    y = y * s[None, :, None, None] + (beta - mean * s)[None, :, None, None]
    return jnp.where(y >= 0, y, LRELU_SLOPE * y)


def _ref_reduction_v4a(x, params):
    b1 = _ref_conv_bn_lrelu(x, params["branch_1x1"], 2, 0)
    b3 = _ref_conv_bn_lrelu(x, params["branch_3x3_0"], 1, 0)
    b3 = _ref_conv_bn_lrelu(b3, params["branch_3x3_1"], 1, 1)
    b3 = _ref_conv_bn_lrelu(b3, params["branch_3x3_2"], 2, 0)
    bp = jax.lax.reduce_window(x, -jnp.inf, jax.lax.max,
                               (1, 1, 3, 3), (1, 1, 2, 2), "VALID")
    return jnp.concatenate([b1, b3, bp], axis=1)


# --------------------------------- test main ---------------------------------

def _init_conv_bn(key, cin, cout, kh, kw):
    """Deterministic synthetic params for Conv2d(bias=False)+BatchNorm2d."""
    kw_key, g_key, b_key, m_key, v_key = jax.random.split(key, 5)
    w = 0.1 * jax.random.normal(kw_key, (cout, cin, kh, kw), jnp.float32)
    gamma = 1.0 + 0.1 * jax.random.normal(g_key, (cout,), jnp.float32)
    beta = 0.1 * jax.random.normal(b_key, (cout,), jnp.float32)
    mean = 0.1 * jax.random.normal(m_key, (cout,), jnp.float32)
    var = 1.0 + 0.5 * jax.random.uniform(v_key, (cout,), jnp.float32)
    return (w, gamma, beta, mean, var)


if __name__ == "__main__":
    in_channels, k, l, m, n = 4, 4, 8, 8, 8
    N, H, W = 2, 16, 16

    root = jax.random.PRNGKey(0)
    kx, k1, k2, k3, k4 = jax.random.split(root, 5)
    params = {
        "branch_1x1":   _init_conv_bn(k1, in_channels, n, 3, 3),
        "branch_3x3_0": _init_conv_bn(k2, in_channels, k, 1, 1),
        "branch_3x3_1": _init_conv_bn(k3, k, l, 3, 3),
        "branch_3x3_2": _init_conv_bn(k4, l, m, 3, 3),
    }
    x = jax.random.normal(kx, (N, in_channels, H, W), jnp.float32)

    fwd = jax.jit(functools.partial(reduction_v4a, params=params))
    out = jax.block_until_ready(fwd(x))

    OH = (H - 3) // 2 + 1
    assert out.shape == (N, n + m + in_channels, OH, OH), out.shape
    assert out.dtype == jnp.float32

    # Numerical check vs. a pure-JAX reference.  Tolerance is loose because the
    # default MXU precision for f32 matmuls differs from the HIGHEST-precision
    # XLA convolutions used in the reference.
    ref = _ref_reduction_v4a(x, params)
    err = float(jnp.max(jnp.abs(out - ref)))
    assert err < 1e-1, f"max abs error vs reference: {err}"

    print("KERNEL_OK")
</pallas_src>

<mosaic_0001>
module attributes {stable_mosaic.version = 11 : i64} {
  func.func @_reduction_v4a_kernel(%arg0: i32, %arg1: memref<1x16x16x4xf32, #tpu.memory_space<vmem>>, %arg2: memref<7x14xf32, #tpu.memory_space<vmem>>, %arg3: memref<9x4x8xf32, #tpu.memory_space<vmem>>, %arg4: memref<1x8xf32, #tpu.memory_space<vmem>>, %arg5: memref<4x4xf32, #tpu.memory_space<vmem>>, %arg6: memref<1x4xf32, #tpu.memory_space<vmem>>, %arg7: memref<9x4x8xf32, #tpu.memory_space<vmem>>, %arg8: memref<1x8xf32, #tpu.memory_space<vmem>>, %arg9: memref<9x8x8xf32, #tpu.memory_space<vmem>>, %arg10: memref<1x8xf32, #tpu.memory_space<vmem>>, %arg11: memref<1x7x7x20xf32, #tpu.memory_space<vmem>>, %arg12: memref<18x18x4xf32, #tpu.memory_space<vmem>>, %arg13: memref<16x16x8xf32, #tpu.memory_space<vmem>>) attributes {dimension_semantics = [#tpu.dimension_semantics<parallel>], iteration_bounds = array<i64: 2>, scalar_prefetch = 0 : i64, scratch_operands = 2 : i64, tpu.core_type = #tpu.core_type<tc>, window_params = [{transform_indices = @transform_0, window_bounds = array<i64: 1, 16, 16, 4>}, {pipeline_mode = #tpu.pipeline_mode<synchronous>, transform_indices = @transform_1, window_bounds = array<i64: 7, 14>}, {pipeline_mode = #tpu.pipeline_mode<synchronous>, transform_indices = @transform_2, window_bounds = array<i64: 9, 4, 8>}, {pipeline_mode = #tpu.pipeline_mode<synchronous>, transform_indices = @transform_3, window_bounds = array<i64: 1, 8>}, {pipeline_mode = #tpu.pipeline_mode<synchronous>, transform_indices = @transform_4, window_bounds = array<i64: 4, 4>}, {pipeline_mode = #tpu.pipeline_mode<synchronous>, transform_indices = @transform_5, window_bounds = array<i64: 1, 4>}, {pipeline_mode = #tpu.pipeline_mode<synchronous>, transform_indices = @transform_6, window_bounds = array<i64: 9, 4, 8>}, {pipeline_mode = #tpu.pipeline_mode<synchronous>, transform_indices = @transform_7, window_bounds = array<i64: 1, 8>}, {pipeline_mode = #tpu.pipeline_mode<synchronous>, transform_indices = @transform_8, window_bounds = array<i64: 9, 8, 8>}, {pipeline_mode = #tpu.pipeline_mode<synchronous>, transform_indices = @transform_9, window_bounds = array<i64: 1, 8>}, {transform_indices = @transform_10, window_bounds = array<i64: 1, 7, 7, 20>}]} {
    %c0 = arith.constant 0 : index
    %c0_0 = arith.constant 0 : index
    %0 = vector.load %arg2[%c0, %c0_0] : memref<7x14xf32, #tpu.memory_space<vmem>>, vector<7x14xf32>
    %c0_1 = arith.constant 0 : index
    %c0_2 = arith.constant 0 : index
    %c0_3 = arith.constant 0 : index
    %1 = vector.load %arg3[%c0_1, %c0_2, %c0_3] : memref<9x4x8xf32, #tpu.memory_space<vmem>>, vector<9x4x8xf32>
    %c0_4 = arith.constant 0 : index
    %c0_5 = arith.constant 0 : index
    %2 = vector.load %arg4[%c0_4, %c0_5] : memref<1x8xf32, #tpu.memory_space<vmem>>, vector<1x8xf32>
    %c0_6 = arith.constant 0 : index
    %c0_7 = arith.constant 0 : index
    %3 = vector.load %arg5[%c0_6, %c0_7] : memref<4x4xf32, #tpu.memory_space<vmem>>, vector<4x4xf32>
    %c0_8 = arith.constant 0 : index
    %c0_9 = arith.constant 0 : index
    %4 = vector.load %arg6[%c0_8, %c0_9] : memref<1x4xf32, #tpu.memory_space<vmem>>, vector<1x4xf32>
    %c0_10 = arith.constant 0 : index
    %c0_11 = arith.constant 0 : index
    %c0_12 = arith.constant 0 : index
    %5 = vector.load %arg7[%c0_10, %c0_11, %c0_12] : memref<9x4x8xf32, #tpu.memory_space<vmem>>, vector<9x4x8xf32>
    %c0_13 = arith.constant 0 : index
    %c0_14 = arith.constant 0 : index
    %6 = vector.load %arg8[%c0_13, %c0_14] : memref<1x8xf32, #tpu.memory_space<vmem>>, vector<1x8xf32>
    %c0_15 = arith.constant 0 : index
    %c0_16 = arith.constant 0 : index
    %c0_17 = arith.constant 0 : index
    %7 = vector.load %arg9[%c0_15, %c0_16, %c0_17] : memref<9x8x8xf32, #tpu.memory_space<vmem>>, vector<9x8x8xf32>
    %c0_18 = arith.constant 0 : index
    %c0_19 = arith.constant 0 : index
    %8 = vector.load %arg10[%c0_18, %c0_19] : memref<1x8xf32, #tpu.memory_space<vmem>>, vector<1x8xf32>
    %cst = arith.constant 0.000000e+00 : f32
    %9 = vector.broadcast %cst : f32 to vector<18x18x4xf32>
    %c0_20 = arith.constant 0 : index
    %c0_21 = arith.constant 0 : index
    %c0_22 = arith.constant 0 : index
    %10 = vector.load %arg12[%c0_20, %c0_21, %c0_22] : memref<18x18x4xf32, #tpu.memory_space<vmem>>, vector<18x18x4xf32>
    tpu.vector_store %arg12[%c0_20, %c0_21, %c0_22], %9 {strides = array<i32>} : memref<18x18x4xf32, #tpu.memory_space<vmem>>, vector<18x18x4xf32>,
    %c0_i32 = arith.constant 0 : i32
    %c16_i32 = arith.constant 16 : i32
    %11 = arith.addi %c0_i32, %c16_i32 : i32
    %c1_i32 = arith.constant 1 : i32
    scf.for %arg14 = %c0_i32 to %11 step %c1_i32  : i32 {
      %c0_31 = arith.constant 0 : index
      %14 = arith.index_cast %arg14 : i32 to index
      %c0_32 = arith.constant 0 : index
      %c0_33 = arith.constant 0 : index
      %15 = vector.load %arg1[%c0_31, %14, %c0_32, %c0_33] : memref<1x16x16x4xf32, #tpu.memory_space<vmem>>, vector<1x1x16x4xf32>
      %16 = vector.shape_cast %15 : vector<1x1x16x4xf32> to vector<16x4xf32>
      %cst_34 = arith.constant dense<0.000000e+00> : vector<16x4xf32>
      %17 = tpu.matmul %16, %3, %cst_34 {dimension_numbers = #tpu.dot_dimension_numbers<[1], [0], [0], [1], [0, 0, 1, 1], [], []>} : vector<16x4xf32>, vector<4x4xf32>, vector<16x4xf32> -> vector<16x4xf32>
      %18 = vector.broadcast %4 : vector<1x4xf32> to vector<16x4xf32>
      %19 = arith.addf %17, %18 : vector<16x4xf32>
      %cst_35 = arith.constant 0.000000e+00 : f32
      %20 = vector.broadcast %cst_35 : f32 to vector<16x4xf32>
      %21 = arith.cmpf oge, %19, %20 : vector<16x4xf32>
      %cst_36 = arith.constant 2.000000e-01 : f32
      %22 = vector.broadcast %cst_36 : f32 to vector<16x4xf32>
      %23 = arith.mulf %22, %19 : vector<16x4xf32>
      %24 = arith.select %21, %19, %23 : vector<16x4xi1>, vector<16x4xf32>
      %c1_i32_37 = arith.constant 1 : i32
      %25 = arith.addi %arg14, %c1_i32_37 : i32
      %26 = arith.index_cast %25 : i32 to index
      %c1 = arith.constant 1 : index
      %c0_38 = arith.constant 0 : index
      %27 = vector.load %arg12[%26, %c1, %c0_38] : memref<18x18x4xf32, #tpu.memory_space<vmem>>, vector<1x16x4xf32>
      %28 = vector.shape_cast %27 : vector<1x16x4xf32> to vector<16x4xf32>
      %29 = vector.shape_cast %24 : vector<16x4xf32> to vector<1x16x4xf32>
      tpu.vector_store %arg12[%26, %c1, %c0_38], %29 {strides = array<i32>} : memref<18x18x4xf32, #tpu.memory_space<vmem>>, vector<1x16x4xf32>,
    }
    %c16_i32_23 = arith.constant 16 : i32
    %c0_i32_24 = arith.constant 0 : i32
    %c16_i32_25 = arith.constant 16 : i32
    %12 = arith.addi %c0_i32_24, %c16_i32_25 : i32
    %c1_i32_26 = arith.constant 1 : i32
    scf.for %arg14 = %c0_i32_24 to %12 step %c1_i32_26  : i32 {
      %14 = arith.index_cast %arg14 : i32 to index
      %c0_31 = arith.constant 0 : index
      %c0_32 = arith.constant 0 : index
      %15 = vector.load %arg12[%14, %c0_31, %c0_32] : memref<18x18x4xf32, #tpu.memory_space<vmem>>, vector<1x16x4xf32>
      %16 = vector.shape_cast %15 : vector<1x16x4xf32> to vector<16x4xf32>
      %17 = vector.extract_strided_slice %5 {offsets = [0, 0, 0], sizes = [1, 4, 8], strides = [1, 1, 1]} : vector<9x4x8xf32> to vector<1x4x8xf32>
      %18 = vector.shape_cast %17 : vector<1x4x8xf32> to vector<4x8xf32>
      %cst_33 = arith.constant dense<0.000000e+00> : vector<16x8xf32>
      %19 = tpu.matmul %16, %18, %cst_33 {dimension_numbers = #tpu.dot_dimension_numbers<[1], [0], [0], [1], [0, 0, 1, 1], [], []>} : vector<16x4xf32>, vector<4x8xf32>, vector<16x8xf32> -> vector<16x8xf32>
      %c0_i32_34 = arith.constant 0 : i32
      %20 = arith.addi %arg14, %c0_i32_34 : i32
      %21 = arith.index_cast %20 : i32 to index
      %c1 = arith.constant 1 : index
      %c0_35 = arith.constant 0 : index
      %22 = vector.load %arg12[%21, %c1, %c0_35] : memref<18x18x4xf32, #tpu.memory_space<vmem>>, vector<1x16x4xf32>
      %23 = vector.shape_cast %22 : vector<1x16x4xf32> to vector<16x4xf32>
      %24 = vector.extract_strided_slice %5 {offsets = [1, 0, 0], sizes = [1, 4, 8], strides = [1, 1, 1]} : vector<9x4x8xf32> to vector<1x4x8xf32>
      %25 = vector.shape_cast %24 : vector<1x4x8xf32> to vector<4x8xf32>
      %cst_36 = arith.constant dense<0.000000e+00> : vector<16x8xf32>
      %26 = tpu.matmul %23, %25, %cst_36 {dimension_numbers = #tpu.dot_dimension_numbers<[1], [0], [0], [1], [0, 0, 1, 1], [], []>} : vector<16x4xf32>, vector<4x8xf32>, vector<16x8xf32> -> vector<16x8xf32>
      %27 = arith.addf %19, %26 : vector<16x8xf32>
      %c0_i32_37 = arith.constant 0 : i32
      %28 = arith.addi %arg14, %c0_i32_37 : i32
      %29 = arith.index_cast %28 : i32 to index
      %c2 = arith.constant 2 : index
      %c0_38 = arith.constant 0 : index
      %30 = vector.load %arg12[%29, %c2, %c0_38] : memref<18x18x4xf32, #tpu.memory_space<vmem>>, vector<1x16x4xf32>
      %31 = vector.shape_cast %30 : vector<1x16x4xf32> to vector<16x4xf32>
      %32 = vector.extract_strided_slice %5 {offsets = [2, 0, 0], sizes = [1, 4, 8], strides = [1, 1, 1]} : vector<9x4x8xf32> to vector<1x4x8xf32>
      %33 = vector.shape_cast %32 : vector<1x4x8xf32> to vector<4x8xf32>
      %cst_39 = arith.constant dense<0.000000e+00> : vector<16x8xf32>
      %34 = tpu.matmul %31, %33, %cst_39 {dimension_numbers = #tpu.dot_dimension_numbers<[1], [0], [0], [1], [0, 0, 1, 1], [], []>} : vector<16x4xf32>, vector<4x8xf32>, vector<16x8xf32> -> vector<16x8xf32>
      %35 = arith.addf %27, %34 : vector<16x8xf32>
      %c1_i32_40 = arith.constant 1 : i32
      %36 = arith.addi %arg14, %c1_i32_40 : i32
      %37 = arith.index_cast %36 : i32 to index
      %c0_41 = arith.constant 0 : index
      %c0_42 = arith.constant 0 : index
      %38 = vector.load %arg12[%37, %c0_41, %c0_42] : memref<18x18x4xf32, #tpu.memory_space<vmem>>, vector<1x16x4xf32>
      %39 = vector.shape_cast %38 : vector<1x16x4xf32> to vector<16x4xf32>
      %40 = vector.extract_strided_slice %5 {offsets = [3, 0, 0], sizes = [1, 4, 8], strides = [1, 1, 1]} : vector<9x4x8xf32> to vector<1x4x8xf32>
      %41 = vector.shape_cast %40 : vector<1x4x8xf32> to vector<4x8xf32>
      %cst_43 = arith.constant dense<0.000000e+00> : vector<16x8xf32>
      %42 = tpu.matmul %39, %41, %cst_43 {dimension_numbers = #tpu.dot_dimension_numbers<[1], [0], [0], [1], [0, 0, 1, 1], [], []>} : vector<16x4xf32>, vector<4x8xf32>, vector<16x8xf32> -> vector<16x8xf32>
      %43 = arith.addf %35, %42 : vector<16x8xf32>
      %c1_i32_44 = arith.constant 1 : i32
      %44 = arith.addi %arg14, %c1_i32_44 : i32
      %45 = arith.index_cast %44 : i32 to index
      %c1_45 = arith.constant 1 : index
      %c0_46 = arith.constant 0 : index
      %46 = vector.load %arg12[%45, %c1_45, %c0_46] : memref<18x18x4xf32, #tpu.memory_space<vmem>>, vector<1x16x4xf32>
      %47 = vector.shape_cast %46 : vector<1x16x4xf32> to vector<16x4xf32>
      %48 = vector.extract_strided_slice %5 {offsets = [4, 0, 0], sizes = [1, 4, 8], strides = [1, 1, 1]} : vector<9x4x8xf32> to vector<1x4x8xf32>
      %49 = vector.shape_cast %48 : vector<1x4x8xf32> to vector<4x8xf32>
      %cst_47 = arith.constant dense<0.000000e+00> : vector<16x8xf32>
      %50 = tpu.matmul %47, %49, %cst_47 {dimension_numbers = #tpu.dot_dimension_numbers<[1], [0], [0], [1], [0, 0, 1, 1], [], []>} : vector<16x4xf32>, vector<4x8xf32>, vector<16x8xf32> -> vector<16x8xf32>
      %51 = arith.addf %43, %50 : vector<16x8xf32>
      %c1_i32_48 = arith.constant 1 : i32
      %52 = arith.addi %arg14, %c1_i32_48 : i32
      %53 = arith.index_cast %52 : i32 to index
      %c2_49 = arith.constant 2 : index
      %c0_50 = arith.constant 0 : index
      %54 = vector.load %arg12[%53, %c2_49, %c0_50] : memref<18x18x4xf32, #tpu.memory_space<vmem>>, vector<1x16x4xf32>
      %55 = vector.shape_cast %54 : vector<1x16x4xf32> to vector<16x4xf32>
      %56 = vector.extract_strided_slice %5 {offsets = [5, 0, 0], sizes = [1, 4, 8], strides = [1, 1, 1]} : vector<9x4x8xf32> to vector<1x4x8xf32>
      %57 = vector.shape_cast %56 : vector<1x4x8xf32> to vector<4x8xf32>
      %cst_51 = arith.constant dense<0.000000e+00> : vector<16x8xf32>
      %58 = tpu.matmul %55, %57, %cst_51 {dimension_numbers = #tpu.dot_dimension_numbers<[1], [0], [0], [1], [0, 0, 1, 1], [], []>} : vector<16x4xf32>, vector<4x8xf32>, vector<16x8xf32> -> vector<16x8xf32>
      %59 = arith.addf %51, %58 : vector<16x8xf32>
      %c2_i32 = arith.constant 2 : i32
      %60 = arith.addi %arg14, %c2_i32 : i32
      %61 = arith.index_cast %60 : i32 to index
      %c0_52 = arith.constant 0 : index
      %c0_53 = arith.constant 0 : index
      %62 = vector.load %arg12[%61, %c0_52, %c0_53] : memref<18x18x4xf32, #tpu.memory_space<vmem>>, vector<1x16x4xf32>
      %63 = vector.shape_cast %62 : vector<1x16x4xf32> to vector<16x4xf32>
      %64 = vector.extract_strided_slice %5 {offsets = [6, 0, 0], sizes = [1, 4, 8], strides = [1, 1, 1]} : vector<9x4x8xf32> to vector<1x4x8xf32>
      %65 = vector.shape_cast %64 : vector<1x4x8xf32> to vector<4x8xf32>
      %cst_54 = arith.constant dense<0.000000e+00> : vector<16x8xf32>
      %66 = tpu.matmul %63, %65, %cst_54 {dimension_numbers = #tpu.dot_dimension_numbers<[1], [0], [0], [1], [0, 0, 1, 1], [], []>} : vector<16x4xf32>, vector<4x8xf32>, vector<16x8xf32> -> vector<16x8xf32>
      %67 = arith.addf %59, %66 : vector<16x8xf32>
      %c2_i32_55 = arith.constant 2 : i32
      %68 = arith.addi %arg14, %c2_i32_55 : i32
      %69 = arith.index_cast %68 : i32 to index
      %c1_56 = arith.constant 1 : index
      %c0_57 = arith.constant 0 : index
      %70 = vector.load %arg12[%69, %c1_56, %c0_57] : memref<18x18x4xf32, #tpu.memory_space<vmem>>, vector<1x16x4xf32>
      %71 = vector.shape_cast %70 : vector<1x16x4xf32> to vector<16x4xf32>
      %72 = vector.extract_strided_slice %5 {offsets = [7, 0, 0], sizes = [1, 4, 8], strides = [1, 1, 1]} : vector<9x4x8xf32> to vector<1x4x8xf32>
      %73 = vector.shape_cast %72 : vector<1x4x8xf32> to vector<4x8xf32>
      %cst_58 = arith.constant dense<0.000000e+00> : vector<16x8xf32>
      %74 = tpu.matmul %71, %73, %cst_58 {dimension_numbers = #tpu.dot_dimension_numbers<[1], [0], [0], [1], [0, 0, 1, 1], [], []>} : vector<16x4xf32>, vector<4x8xf32>, vector<16x8xf32> -> vector<16x8xf32>
      %75 = arith.addf %67, %74 : vector<16x8xf32>
      %c2_i32_59 = arith.constant 2 : i32
      %76 = arith.addi %arg14, %c2_i32_59 : i32
      %77 = arith.index_cast %76 : i32 to index
      %c2_60 = arith.constant 2 : index
      %c0_61 = arith.constant 0 : index
      %78 = vector.load %arg12[%77, %c2_60, %c0_61] : memref<18x18x4xf32, #tpu.memory_space<vmem>>, vector<1x16x4xf32>
      %79 = vector.shape_cast %78 : vector<1x16x4xf32> to vector<16x4xf32>
      %80 = vector.extract_strided_slice %5 {offsets = [8, 0, 0], sizes = [1, 4, 8], strides = [1, 1, 1]} : vector<9x4x8xf32> to vector<1x4x8xf32>
      %81 = vector.shape_cast %80 : vector<1x4x8xf32> to vector<4x8xf32>
      %cst_62 = arith.constant dense<0.000000e+00> : vector<16x8xf32>
      %82 = tpu.matmul %79, %81, %cst_62 {dimension_numbers = #tpu.dot_dimension_numbers<[1], [0], [0], [1], [0, 0, 1, 1], [], []>} : vector<16x4xf32>, vector<4x8xf32>, vector<16x8xf32> -> vector<16x8xf32>
      %83 = arith.addf %75, %82 : vector<16x8xf32>
      %84 = vector.broadcast %6 : vector<1x8xf32> to vector<16x8xf32>
      %85 = arith.addf %83, %84 : vector<16x8xf32>
      %cst_63 = arith.constant 0.000000e+00 : f32
      %86 = vector.broadcast %cst_63 : f32 to vector<16x8xf32>
      %87 = arith.cmpf oge, %85, %86 : vector<16x8xf32>
      %cst_64 = arith.constant 2.000000e-01 : f32
      %88 = vector.broadcast %cst_64 : f32 to vector<16x8xf32>
      %89 = arith.mulf %88, %85 : vector<16x8xf32>
      %90 = arith.select %87, %85, %89 : vector<16x8xi1>, vector<16x8xf32>
      %91 = arith.index_cast %arg14 : i32 to index
      %c0_65 = arith.constant 0 : index
      %c0_66 = arith.constant 0 : index
      %92 = vector.load %arg13[%91, %c0_65, %c0_66] : memref<16x16x8xf32, #tpu.memory_space<vmem>>, vector<1x16x8xf32>
      %93 = vector.shape_cast %92 : vector<1x16x8xf32> to vector<16x8xf32>
      %94 = vector.shape_cast %90 : vector<16x8xf32> to vector<1x16x8xf32>
      tpu.vector_store %arg13[%91, %c0_65, %c0_66], %94 {strides = array<i32>} : memref<16x16x8xf32, #tpu.memory_space<vmem>>, vector<1x16x8xf32>,
    }
    %c16_i32_27 = arith.constant 16 : i32
    %c0_i32_28 = arith.constant 0 : i32
    %c7_i32 = arith.constant 7 : i32
    %13 = arith.addi %c0_i32_28, %c7_i32 : i32
    %c1_i32_29 = arith.constant 1 : i32
    scf.for %arg14 = %c0_i32_28 to %13 step %c1_i32_29  : i32 {
      %c2_i32 = arith.constant 2 : i32
      %14 = arith.muli %c2_i32, %arg14 : i32
      %c0_i32_31 = arith.constant 0 : i32
      %15 = arith.addi %14, %c0_i32_31 : i32
      %c0_32 = arith.constant 0 : index
      %16 = arith.index_cast %15 : i32 to index
      %c0_33 = arith.constant 0 : index
      %c0_34 = arith.constant 0 : index
      %17 = vector.load %arg1[%c0_32, %16, %c0_33, %c0_34] : memref<1x16x16x4xf32, #tpu.memory_space<vmem>>, vector<1x1x14x4xf32>
      %18 = vector.shape_cast %17 : vector<1x1x14x4xf32> to vector<14x4xf32>
      %c2_i32_35 = arith.constant 2 : i32
      %19 = arith.muli %c2_i32_35, %arg14 : i32
      %c0_i32_36 = arith.constant 0 : i32
      %20 = arith.addi %19, %c0_i32_36 : i32
      %21 = arith.index_cast %20 : i32 to index
      %c0_37 = arith.constant 0 : index
      %c0_38 = arith.constant 0 : index
      %22 = vector.load %arg13[%21, %c0_37, %c0_38] : memref<16x16x8xf32, #tpu.memory_space<vmem>>, vector<1x14x8xf32>
      %23 = vector.shape_cast %22 : vector<1x14x8xf32> to vector<14x8xf32>
      %24 = vector.extract_strided_slice %1 {offsets = [0, 0, 0], sizes = [1, 4, 8], strides = [1, 1, 1]} : vector<9x4x8xf32> to vector<1x4x8xf32>
      %25 = vector.shape_cast %24 : vector<1x4x8xf32> to vector<4x8xf32>
      %cst_39 = arith.constant dense<0.000000e+00> : vector<14x8xf32>
      %26 = tpu.matmul %18, %25, %cst_39 {dimension_numbers = #tpu.dot_dimension_numbers<[1], [0], [0], [1], [0, 0, 1, 1], [], []>} : vector<14x4xf32>, vector<4x8xf32>, vector<14x8xf32> -> vector<14x8xf32>
      %27 = vector.extract_strided_slice %7 {offsets = [0, 0, 0], sizes = [1, 8, 8], strides = [1, 1, 1]} : vector<9x8x8xf32> to vector<1x8x8xf32>
      %28 = vector.shape_cast %27 : vector<1x8x8xf32> to vector<8x8xf32>
      %cst_40 = arith.constant dense<0.000000e+00> : vector<14x8xf32>
      %29 = tpu.matmul %23, %28, %cst_40 {dimension_numbers = #tpu.dot_dimension_numbers<[1], [0], [0], [1], [0, 0, 1, 1], [], []>} : vector<14x8xf32>, vector<8x8xf32>, vector<14x8xf32> -> vector<14x8xf32>
      %c2_i32_41 = arith.constant 2 : i32
      %30 = arith.muli %c2_i32_41, %arg14 : i32
      %c0_i32_42 = arith.constant 0 : i32
      %31 = arith.addi %30, %c0_i32_42 : i32
      %c0_43 = arith.constant 0 : index
      %32 = arith.index_cast %31 : i32 to index
      %c1 = arith.constant 1 : index
      %c0_44 = arith.constant 0 : index
      %33 = vector.load %arg1[%c0_43, %32, %c1, %c0_44] : memref<1x16x16x4xf32, #tpu.memory_space<vmem>>, vector<1x1x14x4xf32>
      %34 = vector.shape_cast %33 : vector<1x1x14x4xf32> to vector<14x4xf32>
      %c2_i32_45 = arith.constant 2 : i32
      %35 = arith.muli %c2_i32_45, %arg14 : i32
      %c0_i32_46 = arith.constant 0 : i32
      %36 = arith.addi %35, %c0_i32_46 : i32
      %37 = arith.index_cast %36 : i32 to index
      %c1_47 = arith.constant 1 : index
      %c0_48 = arith.constant 0 : index
      %38 = vector.load %arg13[%37, %c1_47, %c0_48] : memref<16x16x8xf32, #tpu.memory_space<vmem>>, vector<1x14x8xf32>
      %39 = vector.shape_cast %38 : vector<1x14x8xf32> to vector<14x8xf32>
      %40 = vector.extract_strided_slice %1 {offsets = [1, 0, 0], sizes = [1, 4, 8], strides = [1, 1, 1]} : vector<9x4x8xf32> to vector<1x4x8xf32>
      %41 = vector.shape_cast %40 : vector<1x4x8xf32> to vector<4x8xf32>
      %cst_49 = arith.constant dense<0.000000e+00> : vector<14x8xf32>
      %42 = tpu.matmul %34, %41, %cst_49 {dimension_numbers = #tpu.dot_dimension_numbers<[1], [0], [0], [1], [0, 0, 1, 1], [], []>} : vector<14x4xf32>, vector<4x8xf32>, vector<14x8xf32> -> vector<14x8xf32>
      %43 = vector.extract_strided_slice %7 {offsets = [1, 0, 0], sizes = [1, 8, 8], strides = [1, 1, 1]} : vector<9x8x8xf32> to vector<1x8x8xf32>
      %44 = vector.shape_cast %43 : vector<1x8x8xf32> to vector<8x8xf32>
      %cst_50 = arith.constant dense<0.000000e+00> : vector<14x8xf32>
      %45 = tpu.matmul %39, %44, %cst_50 {dimension_numbers = #tpu.dot_dimension_numbers<[1], [0], [0], [1], [0, 0, 1, 1], [], []>} : vector<14x8xf32>, vector<8x8xf32>, vector<14x8xf32> -> vector<14x8xf32>
      %46 = arith.addf %26, %42 : vector<14x8xf32>
      %47 = arith.addf %29, %45 : vector<14x8xf32>
      %c2_i32_51 = arith.constant 2 : i32
      %48 = arith.muli %c2_i32_51, %arg14 : i32
      %c0_i32_52 = arith.constant 0 : i32
      %49 = arith.addi %48, %c0_i32_52 : i32
      %c0_53 = arith.constant 0 : index
      %50 = arith.index_cast %49 : i32 to index
      %c2 = arith.constant 2 : index
      %c0_54 = arith.constant 0 : index
      %51 = vector.load %arg1[%c0_53, %50, %c2, %c0_54] : memref<1x16x16x4xf32, #tpu.memory_space<vmem>>, vector<1x1x14x4xf32>
      %52 = vector.shape_cast %51 : vector<1x1x14x4xf32> to vector<14x4xf32>
      %c2_i32_55 = arith.constant 2 : i32
      %53 = arith.muli %c2_i32_55, %arg14 : i32
      %c0_i32_56 = arith.constant 0 : i32
      %54 = arith.addi %53, %c0_i32_56 : i32
      %55 = arith.index_cast %54 : i32 to index
      %c2_57 = arith.constant 2 : index
      %c0_58 = arith.constant 0 : index
      %56 = vector.load %arg13[%55, %c2_57, %c0_58] : memref<16x16x8xf32, #tpu.memory_space<vmem>>, vector<1x14x8xf32>
      %57 = vector.shape_cast %56 : vector<1x14x8xf32> to vector<14x8xf32>
      %58 = vector.extract_strided_slice %1 {offsets = [2, 0, 0], sizes = [1, 4, 8], strides = [1, 1, 1]} : vector<9x4x8xf32> to vector<1x4x8xf32>
      %59 = vector.shape_cast %58 : vector<1x4x8xf32> to vector<4x8xf32>
      %cst_59 = arith.constant dense<0.000000e+00> : vector<14x8xf32>
      %60 = tpu.matmul %52, %59, %cst_59 {dimension_numbers = #tpu.dot_dimension_numbers<[1], [0], [0], [1], [0, 0, 1, 1], [], []>} : vector<14x4xf32>, vector<4x8xf32>, vector<14x8xf32> -> vector<14x8xf32>
      %61 = vector.extract_strided_slice %7 {offsets = [2, 0, 0], sizes = [1, 8, 8], strides = [1, 1, 1]} : vector<9x8x8xf32> to vector<1x8x8xf32>
      %62 = vector.shape_cast %61 : vector<1x8x8xf32> to vector<8x8xf32>
      %cst_60 = arith.constant dense<0.000000e+00> : vector<14x8xf32>
      %63 = tpu.matmul %57, %62, %cst_60 {dimension_numbers = #tpu.dot_dimension_numbers<[1], [0], [0], [1], [0, 0, 1, 1], [], []>} : vector<14x8xf32>, vector<8x8xf32>, vector<14x8xf32> -> vector<14x8xf32>
      %64 = arith.addf %46, %60 : vector<14x8xf32>
      %65 = arith.addf %47, %63 : vector<14x8xf32>
      %c2_i32_61 = arith.constant 2 : i32
      %66 = arith.muli %c2_i32_61, %arg14 : i32
      %c1_i32_62 = arith.constant 1 : i32
      %67 = arith.addi %66, %c1_i32_62 : i32
      %c0_63 = arith.constant 0 : index
      %68 = arith.index_cast %67 : i32 to index
      %c0_64 = arith.constant 0 : index
      %c0_65 = arith.constant 0 : index
      %69 = vector.load %arg1[%c0_63, %68, %c0_64, %c0_65] : memref<1x16x16x4xf32, #tpu.memory_space<vmem>>, vector<1x1x14x4xf32>
      %70 = vector.shape_cast %69 : vector<1x1x14x4xf32> to vector<14x4xf32>
      %c2_i32_66 = arith.constant 2 : i32
      %71 = arith.muli %c2_i32_66, %arg14 : i32
      %c1_i32_67 = arith.constant 1 : i32
      %72 = arith.addi %71, %c1_i32_67 : i32
      %73 = arith.index_cast %72 : i32 to index
      %c0_68 = arith.constant 0 : index
      %c0_69 = arith.constant 0 : index
      %74 = vector.load %arg13[%73, %c0_68, %c0_69] : memref<16x16x8xf32, #tpu.memory_space<vmem>>, vector<1x14x8xf32>
      %75 = vector.shape_cast %74 : vector<1x14x8xf32> to vector<14x8xf32>
      %76 = vector.extract_strided_slice %1 {offsets = [3, 0, 0], sizes = [1, 4, 8], strides = [1, 1, 1]} : vector<9x4x8xf32> to vector<1x4x8xf32>
      %77 = vector.shape_cast %76 : vector<1x4x8xf32> to vector<4x8xf32>
      %cst_70 = arith.constant dense<0.000000e+00> : vector<14x8xf32>
      %78 = tpu.matmul %70, %77, %cst_70 {dimension_numbers = #tpu.dot_dimension_numbers<[1], [0], [0], [1], [0, 0, 1, 1], [], []>} : vector<14x4xf32>, vector<4x8xf32>, vector<14x8xf32> -> vector<14x8xf32>
      %79 = vector.extract_strided_slice %7 {offsets = [3, 0, 0], sizes = [1, 8, 8], strides = [1, 1, 1]} : vector<9x8x8xf32> to vector<1x8x8xf32>
      %80 = vector.shape_cast %79 : vector<1x8x8xf32> to vector<8x8xf32>
      %cst_71 = arith.constant dense<0.000000e+00> : vector<14x8xf32>
      %81 = tpu.matmul %75, %80, %cst_71 {dimension_numbers = #tpu.dot_dimension_numbers<[1], [0], [0], [1], [0, 0, 1, 1], [], []>} : vector<14x8xf32>, vector<8x8xf32>, vector<14x8xf32> -> vector<14x8xf32>
      %82 = arith.addf %64, %78 : vector<14x8xf32>
      %83 = arith.addf %65, %81 : vector<14x8xf32>
      %c2_i32_72 = arith.constant 2 : i32
      %84 = arith.muli %c2_i32_72, %arg14 : i32
      %c1_i32_73 = arith.constant 1 : i32
      %85 = arith.addi %84, %c1_i32_73 : i32
      %c0_74 = arith.constant 0 : index
      %86 = arith.index_cast %85 : i32 to index
      %c1_75 = arith.constant 1 : index
      %c0_76 = arith.constant 0 : index
      %87 = vector.load %arg1[%c0_74, %86, %c1_75, %c0_76] : memref<1x16x16x4xf32, #tpu.memory_space<vmem>>, vector<1x1x14x4xf32>
      %88 = vector.shape_cast %87 : vector<1x1x14x4xf32> to vector<14x4xf32>
      %c2_i32_77 = arith.constant 2 : i32
      %89 = arith.muli %c2_i32_77, %arg14 : i32
      %c1_i32_78 = arith.constant 1 : i32
      %90 = arith.addi %89, %c1_i32_78 : i32
      %91 = arith.index_cast %90 : i32 to index
      %c1_79 = arith.constant 1 : index
      %c0_80 = arith.constant 0 : index
      %92 = vector.load %arg13[%91, %c1_79, %c0_80] : memref<16x16x8xf32, #tpu.memory_space<vmem>>, vector<1x14x8xf32>
      %93 = vector.shape_cast %92 : vector<1x14x8xf32> to vector<14x8xf32>
      %94 = vector.extract_strided_slice %1 {offsets = [4, 0, 0], sizes = [1, 4, 8], strides = [1, 1, 1]} : vector<9x4x8xf32> to vector<1x4x8xf32>
      %95 = vector.shape_cast %94 : vector<1x4x8xf32> to vector<4x8xf32>
      %cst_81 = arith.constant dense<0.000000e+00> : vector<14x8xf32>
      %96 = tpu.matmul %88, %95, %cst_81 {dimension_numbers = #tpu.dot_dimension_numbers<[1], [0], [0], [1], [0, 0, 1, 1], [], []>} : vector<14x4xf32>, vector<4x8xf32>, vector<14x8xf32> -> vector<14x8xf32>
      %97 = vector.extract_strided_slice %7 {offsets = [4, 0, 0], sizes = [1, 8, 8], strides = [1, 1, 1]} : vector<9x8x8xf32> to vector<1x8x8xf32>
      %98 = vector.shape_cast %97 : vector<1x8x8xf32> to vector<8x8xf32>
      %cst_82 = arith.constant dense<0.000000e+00> : vector<14x8xf32>
      %99 = tpu.matmul %93, %98, %cst_82 {dimension_numbers = #tpu.dot_dimension_numbers<[1], [0], [0], [1], [0, 0, 1, 1], [], []>} : vector<14x8xf32>, vector<8x8xf32>, vector<14x8xf32> -> vector<14x8xf32>
      %100 = arith.addf %82, %96 : vector<14x8xf32>
      %101 = arith.addf %83, %99 : vector<14x8xf32>
      %c2_i32_83 = arith.constant 2 : i32
      %102 = arith.muli %c2_i32_83, %arg14 : i32
      %c1_i32_84 = arith.constant 1 : i32
      %103 = arith.addi %102, %c1_i32_84 : i32
      %c0_85 = arith.constant 0 : index
      %104 = arith.index_cast %103 : i32 to index
      %c2_86 = arith.constant 2 : index
      %c0_87 = arith.constant 0 : index
      %105 = vector.load %arg1[%c0_85, %104, %c2_86, %c0_87] : memref<1x16x16x4xf32, #tpu.memory_space<vmem>>, vector<1x1x14x4xf32>
      %106 = vector.shape_cast %105 : vector<1x1x14x4xf32> to vector<14x4xf32>
      %c2_i32_88 = arith.constant 2 : i32
      %107 = arith.muli %c2_i32_88, %arg14 : i32
      %c1_i32_89 = arith.constant 1 : i32
      %108 = arith.addi %107, %c1_i32_89 : i32
      %109 = arith.index_cast %108 : i32 to index
      %c2_90 = arith.constant 2 : index
      %c0_91 = arith.constant 0 : index
      %110 = vector.load %arg13[%109, %c2_90, %c0_91] : memref<16x16x8xf32, #tpu.memory_space<vmem>>, vector<1x14x8xf32>
      %111 = vector.shape_cast %110 : vector<1x14x8xf32> to vector<14x8xf32>
      %112 = vector.extract_strided_slice %1 {offsets = [5, 0, 0], sizes = [1, 4, 8], strides = [1, 1, 1]} : vector<9x4x8xf32> to vector<1x4x8xf32>
      %113 = vector.shape_cast %112 : vector<1x4x8xf32> to vector<4x8xf32>
      %cst_92 = arith.constant dense<0.000000e+00> : vector<14x8xf32>
      %114 = tpu.matmul %106, %113, %cst_92 {dimension_numbers = #tpu.dot_dimension_numbers<[1], [0], [0], [1], [0, 0, 1, 1], [], []>} : vector<14x4xf32>, vector<4x8xf32>, vector<14x8xf32> -> vector<14x8xf32>
      %115 = vector.extract_strided_slice %7 {offsets = [5, 0, 0], sizes = [1, 8, 8], strides = [1, 1, 1]} : vector<9x8x8xf32> to vector<1x8x8xf32>
      %116 = vector.shape_cast %115 : vector<1x8x8xf32> to vector<8x8xf32>
      %cst_93 = arith.constant dense<0.000000e+00> : vector<14x8xf32>
      %117 = tpu.matmul %111, %116, %cst_93 {dimension_numbers = #tpu.dot_dimension_numbers<[1], [0], [0], [1], [0, 0, 1, 1], [], []>} : vector<14x8xf32>, vector<8x8xf32>, vector<14x8xf32> -> vector<14x8xf32>
      %118 = arith.addf %100, %114 : vector<14x8xf32>
      %119 = arith.addf %101, %117 : vector<14x8xf32>
      %c2_i32_94 = arith.constant 2 : i32
      %120 = arith.muli %c2_i32_94, %arg14 : i32
      %c2_i32_95 = arith.constant 2 : i32
      %121 = arith.addi %120, %c2_i32_95 : i32
      %c0_96 = arith.constant 0 : index
      %122 = arith.index_cast %121 : i32 to index
      %c0_97 = arith.constant 0 : index
      %c0_98 = arith.constant 0 : index
      %123 = vector.load %arg1[%c0_96, %122, %c0_97, %c0_98] : memref<1x16x16x4xf32, #tpu.memory_space<vmem>>, vector<1x1x14x4xf32>
      %124 = vector.shape_cast %123 : vector<1x1x14x4xf32> to vector<14x4xf32>
      %c2_i32_99 = arith.constant 2 : i32
      %125 = arith.muli %c2_i32_99, %arg14 : i32
      %c2_i32_100 = arith.constant 2 : i32
      %126 = arith.addi %125, %c2_i32_100 : i32
      %127 = arith.index_cast %126 : i32 to index
      %c0_101 = arith.constant 0 : index
      %c0_102 = arith.constant 0 : index
      %128 = vector.load %arg13[%127, %c0_101, %c0_102] : memref<16x16x8xf32, #tpu.memory_space<vmem>>, vector<1x14x8xf32>
      %129 = vector.shape_cast %128 : vector<1x14x8xf32> to vector<14x8xf32>
      %130 = vector.extract_strided_slice %1 {offsets = [6, 0, 0], sizes = [1, 4, 8], strides = [1, 1, 1]} : vector<9x4x8xf32> to vector<1x4x8xf32>
      %131 = vector.shape_cast %130 : vector<1x4x8xf32> to vector<4x8xf32>
      %cst_103 = arith.constant dense<0.000000e+00> : vector<14x8xf32>
      %132 = tpu.matmul %124, %131, %cst_103 {dimension_numbers = #tpu.dot_dimension_numbers<[1], [0], [0], [1], [0, 0, 1, 1], [], []>} : vector<14x4xf32>, vector<4x8xf32>, vector<14x8xf32> -> vector<14x8xf32>
      %133 = vector.extract_strided_slice %7 {offsets = [6, 0, 0], sizes = [1, 8, 8], strides = [1, 1, 1]} : vector<9x8x8xf32> to vector<1x8x8xf32>
      %134 = vector.shape_cast %133 : vector<1x8x8xf32> to vector<8x8xf32>
      %cst_104 = arith.constant dense<0.000000e+00> : vector<14x8xf32>
      %135 = tpu.matmul %129, %134, %cst_104 {dimension_numbers = #tpu.dot_dimension_numbers<[1], [0], [0], [1], [0, 0, 1, 1], [], []>} : vector<14x8xf32>, vector<8x8xf32>, vector<14x8xf32> -> vector<14x8xf32>
      %136 = arith.addf %118, %132 : vector<14x8xf32>
      %137 = arith.addf %119, %135 : vector<14x8xf32>
      %c2_i32_105 = arith.constant 2 : i32
      %138 = arith.muli %c2_i32_105, %arg14 : i32
      %c2_i32_106 = arith.constant 2 : i32
      %139 = arith.addi %138, %c2_i32_106 : i32
      %c0_107 = arith.constant 0 : index
      %140 = arith.index_cast %139 : i32 to index
      %c1_108 = arith.constant 1 : index
      %c0_109 = arith.constant 0 : index
      %141 = vector.load %arg1[%c0_107, %140, %c1_108, %c0_109] : memref<1x16x16x4xf32, #tpu.memory_space<vmem>>, vector<1x1x14x4xf32>
      %142 = vector.shape_cast %141 : vector<1x1x14x4xf32> to vector<14x4xf32>
      %c2_i32_110 = arith.constant 2 : i32
      %143 = arith.muli %c2_i32_110, %arg14 : i32
      %c2_i32_111 = arith.constant 2 : i32
      %144 = arith.addi %143, %c2_i32_111 : i32
      %145 = arith.index_cast %144 : i32 to index
      %c1_112 = arith.constant 1 : index
      %c0_113 = arith.constant 0 : index
      %146 = vector.load %arg13[%145, %c1_112, %c0_113] : memref<16x16x8xf32, #tpu.memory_space<vmem>>, vector<1x14x8xf32>
      %147 = vector.shape_cast %146 : vector<1x14x8xf32> to vector<14x8xf32>
      %148 = vector.extract_strided_slice %1 {offsets = [7, 0, 0], sizes = [1, 4, 8], strides = [1, 1, 1]} : vector<9x4x8xf32> to vector<1x4x8xf32>
      %149 = vector.shape_cast %148 : vector<1x4x8xf32> to vector<4x8xf32>
      %cst_114 = arith.constant dense<0.000000e+00> : vector<14x8xf32>
      %150 = tpu.matmul %142, %149, %cst_114 {dimension_numbers = #tpu.dot_dimension_numbers<[1], [0], [0], [1], [0, 0, 1, 1], [], []>} : vector<14x4xf32>, vector<4x8xf32>, vector<14x8xf32> -> vector<14x8xf32>
      %151 = vector.extract_strided_slice %7 {offsets = [7, 0, 0], sizes = [1, 8, 8], strides = [1, 1, 1]} : vector<9x8x8xf32> to vector<1x8x8xf32>
      %152 = vector.shape_cast %151 : vector<1x8x8xf32> to vector<8x8xf32>
      %cst_115 = arith.constant dense<0.000000e+00> : vector<14x8xf32>
      %153 = tpu.matmul %147, %152, %cst_115 {dimension_numbers = #tpu.dot_dimension_numbers<[1], [0], [0], [1], [0, 0, 1, 1], [], []>} : vector<14x8xf32>, vector<8x8xf32>, vector<14x8xf32> -> vector<14x8xf32>
      %154 = arith.addf %136, %150 : vector<14x8xf32>
      %155 = arith.addf %137, %153 : vector<14x8xf32>
      %c2_i32_116 = arith.constant 2 : i32
      %156 = arith.muli %c2_i32_116, %arg14 : i32
      %c2_i32_117 = arith.constant 2 : i32
      %157 = arith.addi %156, %c2_i32_117 : i32
      %c0_118 = arith.constant 0 : index
      %158 = arith.index_cast %157 : i32 to index
      %c2_119 = arith.constant 2 : index
      %c0_120 = arith.constant 0 : index
      %159 = vector.load %arg1[%c0_118, %158, %c2_119, %c0_120] : memref<1x16x16x4xf32, #tpu.memory_space<vmem>>, vector<1x1x14x4xf32>
      %160 = vector.shape_cast %159 : vector<1x1x14x4xf32> to vector<14x4xf32>
      %c2_i32_121 = arith.constant 2 : i32
      %161 = arith.muli %c2_i32_121, %arg14 : i32
      %c2_i32_122 = arith.constant 2 : i32
      %162 = arith.addi %161, %c2_i32_122 : i32
      %163 = arith.index_cast %162 : i32 to index
      %c2_123 = arith.constant 2 : index
      %c0_124 = arith.constant 0 : index
      %164 = vector.load %arg13[%163, %c2_123, %c0_124] : memref<16x16x8xf32, #tpu.memory_space<vmem>>, vector<1x14x8xf32>
      %165 = vector.shape_cast %164 : vector<1x14x8xf32> to vector<14x8xf32>
      %166 = vector.extract_strided_slice %1 {offsets = [8, 0, 0], sizes = [1, 4, 8], strides = [1, 1, 1]} : vector<9x4x8xf32> to vector<1x4x8xf32>
      %167 = vector.shape_cast %166 : vector<1x4x8xf32> to vector<4x8xf32>
      %cst_125 = arith.constant dense<0.000000e+00> : vector<14x8xf32>
      %168 = tpu.matmul %160, %167, %cst_125 {dimension_numbers = #tpu.dot_dimension_numbers<[1], [0], [0], [1], [0, 0, 1, 1], [], []>} : vector<14x4xf32>, vector<4x8xf32>, vector<14x8xf32> -> vector<14x8xf32>
      %169 = vector.extract_strided_slice %7 {offsets = [8, 0, 0], sizes = [1, 8, 8], strides = [1, 1, 1]} : vector<9x8x8xf32> to vector<1x8x8xf32>
      %170 = vector.shape_cast %169 : vector<1x8x8xf32> to vector<8x8xf32>
      %cst_126 = arith.constant dense<0.000000e+00> : vector<14x8xf32>
      %171 = tpu.matmul %165, %170, %cst_126 {dimension_numbers = #tpu.dot_dimension_numbers<[1], [0], [0], [1], [0, 0, 1, 1], [], []>} : vector<14x8xf32>, vector<8x8xf32>, vector<14x8xf32> -> vector<14x8xf32>
      %172 = arith.addf %154, %168 : vector<14x8xf32>
      %173 = arith.addf %155, %171 : vector<14x8xf32>
      %cst_127 = arith.constant dense<0.000000e+00> : vector<7x8xf32>
      %174 = tpu.matmul %0, %172, %cst_127 {dimension_numbers = #tpu.dot_dimension_numbers<[1], [0], [0], [1], [0, 0, 1, 1], [], []>} : vector<7x14xf32>, vector<14x8xf32>, vector<7x8xf32> -> vector<7x8xf32>
      %175 = vector.broadcast %2 : vector<1x8xf32> to vector<7x8xf32>
      %176 = arith.addf %174, %175 : vector<7x8xf32>
      %cst_128 = arith.constant 0.000000e+00 : f32
      %177 = vector.broadcast %cst_128 : f32 to vector<7x8xf32>
      %178 = arith.cmpf oge, %176, %177 : vector<7x8xf32>
      %cst_129 = arith.constant 2.000000e-01 : f32
      %179 = vector.broadcast %cst_129 : f32 to vector<7x8xf32>
      %180 = arith.mulf %179, %176 : vector<7x8xf32>
      %181 = arith.select %178, %176, %180 : vector<7x8xi1>, vector<7x8xf32>
      %cst_130 = arith.constant dense<0.000000e+00> : vector<7x8xf32>
      %182 = tpu.matmul %0, %173, %cst_130 {dimension_numbers = #tpu.dot_dimension_numbers<[1], [0], [0], [1], [0, 0, 1, 1], [], []>} : vector<7x14xf32>, vector<14x8xf32>, vector<7x8xf32> -> vector<7x8xf32>
      %183 = vector.broadcast %8 : vector<1x8xf32> to vector<7x8xf32>
      %184 = arith.addf %182, %183 : vector<7x8xf32>
      %cst_131 = arith.constant 0.000000e+00 : f32
      %185 = vector.broadcast %cst_131 : f32 to vector<7x8xf32>
      %186 = arith.cmpf oge, %184, %185 : vector<7x8xf32>
      %cst_132 = arith.constant 2.000000e-01 : f32
      %187 = vector.broadcast %cst_132 : f32 to vector<7x8xf32>
      %188 = arith.mulf %187, %184 : vector<7x8xf32>
      %189 = arith.select %186, %184, %188 : vector<7x8xi1>, vector<7x8xf32>
      %c2_i32_133 = arith.constant 2 : i32
      %190 = arith.muli %c2_i32_133, %arg14 : i32
      %c0_i32_134 = arith.constant 0 : i32
      %191 = arith.addi %190, %c0_i32_134 : i32
      %c0_135 = arith.constant 0 : index
      %192 = arith.index_cast %191 : i32 to index
      %c0_136 = arith.constant 0 : index
      %c0_137 = arith.constant 0 : index
      %193 = vector.load %arg1[%c0_135, %192, %c0_136, %c0_137] : memref<1x16x16x4xf32, #tpu.memory_space<vmem>>, vector<1x1x16x4xf32>
      %194 = vector.shape_cast %193 : vector<1x1x16x4xf32> to vector<16x4xf32>
      %195 = vector.extract_strided_slice %194 {offsets = [0, 0], sizes = [14, 4], strides = [1, 1]} : vector<16x4xf32> to vector<14x4xf32>
      %196 = vector.extract_strided_slice %194 {offsets = [1, 0], sizes = [14, 4], strides = [1, 1]} : vector<16x4xf32> to vector<14x4xf32>
      %197 = arith.maximumf %195, %196 : vector<14x4xf32>
      %198 = vector.extract_strided_slice %194 {offsets = [2, 0], sizes = [14, 4], strides = [1, 1]} : vector<16x4xf32> to vector<14x4xf32>
      %199 = arith.maximumf %197, %198 : vector<14x4xf32>
      %c2_i32_138 = arith.constant 2 : i32
      %200 = arith.muli %c2_i32_138, %arg14 : i32
      %c1_i32_139 = arith.constant 1 : i32
      %201 = arith.addi %200, %c1_i32_139 : i32
      %c0_140 = arith.constant 0 : index
      %202 = arith.index_cast %201 : i32 to index
      %c0_141 = arith.constant 0 : index
      %c0_142 = arith.constant 0 : index
      %203 = vector.load %arg1[%c0_140, %202, %c0_141, %c0_142] : memref<1x16x16x4xf32, #tpu.memory_space<vmem>>, vector<1x1x16x4xf32>
      %204 = vector.shape_cast %203 : vector<1x1x16x4xf32> to vector<16x4xf32>
      %205 = vector.extract_strided_slice %204 {offsets = [0, 0], sizes = [14, 4], strides = [1, 1]} : vector<16x4xf32> to vector<14x4xf32>
      %206 = vector.extract_strided_slice %204 {offsets = [1, 0], sizes = [14, 4], strides = [1, 1]} : vector<16x4xf32> to vector<14x4xf32>
      %207 = arith.maximumf %205, %206 : vector<14x4xf32>
      %208 = vector.extract_strided_slice %204 {offsets = [2, 0], sizes = [14, 4], strides = [1, 1]} : vector<16x4xf32> to vector<14x4xf32>
      %209 = arith.maximumf %207, %208 : vector<14x4xf32>
      %210 = arith.maximumf %199, %209 : vector<14x4xf32>
      %c2_i32_143 = arith.constant 2 : i32
      %211 = arith.muli %c2_i32_143, %arg14 : i32
      %c2_i32_144 = arith.constant 2 : i32
      %212 = arith.addi %211, %c2_i32_144 : i32
      %c0_145 = arith.constant 0 : index
      %213 = arith.index_cast %212 : i32 to index
      %c0_146 = arith.constant 0 : index
      %c0_147 = arith.constant 0 : index
      %214 = vector.load %arg1[%c0_145, %213, %c0_146, %c0_147] : memref<1x16x16x4xf32, #tpu.memory_space<vmem>>, vector<1x1x16x4xf32>
      %215 = vector.shape_cast %214 : vector<1x1x16x4xf32> to vector<16x4xf32>
      %216 = vector.extract_strided_slice %215 {offsets = [0, 0], sizes = [14, 4], strides = [1, 1]} : vector<16x4xf32> to vector<14x4xf32>
      %217 = vector.extract_strided_slice %215 {offsets = [1, 0], sizes = [14, 4], strides = [1, 1]} : vector<16x4xf32> to vector<14x4xf32>
      %218 = arith.maximumf %216, %217 : vector<14x4xf32>
      %219 = vector.extract_strided_slice %215 {offsets = [2, 0], sizes = [14, 4], strides = [1, 1]} : vector<16x4xf32> to vector<14x4xf32>
      %220 = arith.maximumf %218, %219 : vector<14x4xf32>
      %221 = arith.maximumf %210, %220 : vector<14x4xf32>
      %cst_148 = arith.constant dense<0.000000e+00> : vector<7x4xf32>
      %222 = tpu.matmul %0, %221, %cst_148 {dimension_numbers = #tpu.dot_dimension_numbers<[1], [0], [0], [1], [0, 0, 1, 1], [], []>} : vector<7x14xf32>, vector<14x4xf32>, vector<7x4xf32> -> vector<7x4xf32>
      %c0_149 = arith.constant 0 : index
      %223 = arith.index_cast %arg14 : i32 to index
      %c0_150 = arith.constant 0 : index
      %c0_151 = arith.constant 0 : index
      %224 = vector.load %arg11[%c0_149, %223, %c0_150, %c0_151] : memref<1x7x7x20xf32, #tpu.memory_space<vmem>>, vector<1x1x7x8xf32>
      %225 = vector.shape_cast %224 : vector<1x1x7x8xf32> to vector<7x8xf32>
      %226 = vector.shape_cast %181 : vector<7x8xf32> to vector<1x1x7x8xf32>
      tpu.vector_store %arg11[%c0_149, %223, %c0_150, %c0_151], %226 {strides = array<i32>} : memref<1x7x7x20xf32, #tpu.memory_space<vmem>>, vector<1x1x7x8xf32>,
      %c0_152 = arith.constant 0 : index
      %227 = arith.index_cast %arg14 : i32 to index
      %c0_153 = arith.constant 0 : index
      %c8 = arith.constant 8 : index
      %228 = vector.load %arg11[%c0_152, %227, %c0_153, %c8] : memref<1x7x7x20xf32, #tpu.memory_space<vmem>>, vector<1x1x7x8xf32>
      %229 = vector.shape_cast %228 : vector<1x1x7x8xf32> to vector<7x8xf32>
      %230 = vector.shape_cast %189 : vector<7x8xf32> to vector<1x1x7x8xf32>
      tpu.vector_store %arg11[%c0_152, %227, %c0_153, %c8], %230 {strides = array<i32>} : memref<1x7x7x20xf32, #tpu.memory_space<vmem>>, vector<1x1x7x8xf32>,
      %c0_154 = arith.constant 0 : index
      %231 = arith.index_cast %arg14 : i32 to index
      %c0_155 = arith.constant 0 : index
      %c16 = arith.constant 16 : index
      %232 = vector.load %arg11[%c0_154, %231, %c0_155, %c16] : memref<1x7x7x20xf32, #tpu.memory_space<vmem>>, vector<1x1x7x4xf32>
      %233 = vector.shape_cast %232 : vector<1x1x7x4xf32> to vector<7x4xf32>
      %234 = vector.shape_cast %222 : vector<7x4xf32> to vector<1x1x7x4xf32>
      tpu.vector_store %arg11[%c0_154, %231, %c0_155, %c16], %234 {strides = array<i32>} : memref<1x7x7x20xf32, #tpu.memory_space<vmem>>, vector<1x1x7x4xf32>,
    }
    %c7_i32_30 = arith.constant 7 : i32
    return
  }
  func.func @transform_0(%arg0: i32) -> (i32, i32, i32, i32) {
    %c0_i32 = arith.constant 0 : i32
    %c0_i32_0 = arith.constant 0 : i32
    %c0_i32_1 = arith.constant 0 : i32
    %c0_i32_2 = arith.constant 0 : i32
    return %arg0, %c0_i32, %c0_i32_0, %c0_i32_1 : i32, i32, i32, i32
  }
  func.func @transform_1(%arg0: i32) -> (i32, i32) {
    %c0_i32 = arith.constant 0 : i32
    %c0_i32_0 = arith.constant 0 : i32
    %c0_i32_1 = arith.constant 0 : i32
    return %c0_i32, %c0_i32_0 : i32, i32
  }
  func.func @transform_2(%arg0: i32) -> (i32, i32, i32) {
    %c0_i32 = arith.constant 0 : i32
    %c0_i32_0 = arith.constant 0 : i32
    %c0_i32_1 = arith.constant 0 : i32
    %c0_i32_2 = arith.constant 0 : i32
    return %c0_i32, %c0_i32_0, %c0_i32_1 : i32, i32, i32
  }
  func.func @transform_3(%arg0: i32) -> (i32, i32) {
    %c0_i32 = arith.constant 0 : i32
    %c0_i32_0 = arith.constant 0 : i32
    %c0_i32_1 = arith.constant 0 : i32
    return %c0_i32, %c0_i32_0 : i32, i32
  }
  func.func @transform_4(%arg0: i32) -> (i32, i32) {
    %c0_i32 = arith.constant 0 : i32
    %c0_i32_0 = arith.constant 0 : i32
    %c0_i32_1 = arith.constant 0 : i32
    return %c0_i32, %c0_i32_0 : i32, i32
  }
  func.func @transform_5(%arg0: i32) -> (i32, i32) {
    %c0_i32 = arith.constant 0 : i32
    %c0_i32_0 = arith.constant 0 : i32
    %c0_i32_1 = arith.constant 0 : i32
    return %c0_i32, %c0_i32_0 : i32, i32
  }
  func.func @transform_6(%arg0: i32) -> (i32, i32, i32) {
    %c0_i32 = arith.constant 0 : i32
    %c0_i32_0 = arith.constant 0 : i32
    %c0_i32_1 = arith.constant 0 : i32
    %c0_i32_2 = arith.constant 0 : i32
    return %c0_i32, %c0_i32_0, %c0_i32_1 : i32, i32, i32
  }
  func.func @transform_7(%arg0: i32) -> (i32, i32) {
    %c0_i32 = arith.constant 0 : i32
    %c0_i32_0 = arith.constant 0 : i32
    %c0_i32_1 = arith.constant 0 : i32
    return %c0_i32, %c0_i32_0 : i32, i32
  }
  func.func @transform_8(%arg0: i32) -> (i32, i32, i32) {
    %c0_i32 = arith.constant 0 : i32
    %c0_i32_0 = arith.constant 0 : i32
    %c0_i32_1 = arith.constant 0 : i32
    %c0_i32_2 = arith.constant 0 : i32
    return %c0_i32, %c0_i32_0, %c0_i32_1 : i32, i32, i32
  }
  func.func @transform_9(%arg0: i32) -> (i32, i32) {
    %c0_i32 = arith.constant 0 : i32
    %c0_i32_0 = arith.constant 0 : i32
    %c0_i32_1 = arith.constant 0 : i32
    return %c0_i32, %c0_i32_0 : i32, i32
  }
  func.func @transform_10(%arg0: i32) -> (i32, i32, i32, i32) {
    %c0_i32 = arith.constant 0 : i32
    %c0_i32_0 = arith.constant 0 : i32
    %c0_i32_1 = arith.constant 0 : i32
    %c0_i32_2 = arith.constant 0 : i32
    return %arg0, %c0_i32, %c0_i32_0, %c0_i32_1 : i32, i32, i32, i32
  }
}

</mosaic_0001>

<llo_original>
// kernel: reduction_v4a.1
$region0: #{reduction_v4a.1}
  #allocation0 [shape = 'u32[]', space=smem, size = 0x4, offset = 0x4, fixed_abs, tag = 'smem constant byte address 0x4 - core index']
  #allocation1 [shape = 'u32[144,128]{1,0:T(1,128)}', space=vmem, size = 0x12000, scoped, tag = 'internal scratch']
  #allocation2 [shape = 'f32[18,18,4]{2,1,0:T(8,128)}', space=vmem, size = 0x36000, scoped, tag = 'scratch operand']
  #allocation3 [shape = 'f32[16,16,8]{2,1,0:T(8,128)}', space=vmem, size = 0x20000, scoped, tag = 'scratch operand']
  %s0 = inlined_call_operand.vmem [shape: f32[2,16,16,4], index: 0, kind: input, shape index: {}]
  %s1 = inlined_call_operand.vmem [shape: f32[7,14], index: 1, kind: input, shape index: {}]
  %s2 = inlined_call_operand.vmem [shape: f32[9,4,8], index: 2, kind: input, shape index: {}]
  %s3 = inlined_call_operand.vmem [shape: f32[1,8], index: 3, kind: input, shape index: {}]
  %s4 = inlined_call_operand.vmem [shape: f32[4,4], index: 4, kind: input, shape index: {}]
  %s5 = inlined_call_operand.vmem [shape: f32[1,4], index: 5, kind: input, shape index: {}]
  %s6 = inlined_call_operand.vmem [shape: f32[9,4,8], index: 6, kind: input, shape index: {}]
  %s7 = inlined_call_operand.vmem [shape: f32[1,8], index: 7, kind: input, shape index: {}]
  %s8 = inlined_call_operand.vmem [shape: f32[9,8,8], index: 8, kind: input, shape index: {}]
  %s9 = inlined_call_operand.vmem [shape: f32[1,8], index: 9, kind: input, shape index: {}]
  %s10 = inlined_call_operand.vmem [shape: f32[2,7,7,20], index: 10, kind: output, shape index: {}]
  %s11 = sld [smem:[#allocation0]]
  $region94: #{reduction_v4a.1} parent=0
    _
  %s13 = ssub.s32 1, %s11
  %s14 = scalar_select 0, %s13, %s11
  loop: start=0, step=1, limit=4
  $region2: #{reduction_v4a.1} parent=0 // loop_pre_header
    _
  $region3: #{reduction_v4a.1} parent=0 // loop_header
    %s16 = sphi 0, %s20
    %p17 = scmp.ge.s32.totalorder %s16, 4
    %s26 = sphi 0, %s28
    %s29 = sphi 0, %s26
    %s30 = sphi 0, %s29
    %s46 = sphi 0, %s30
    %s50 = sphi 0, %s50
    %s52 = sphi 0, %s50
    %s53 = sphi 0, %s52
    %s67 = sphi 0, %s53
    %s71 = sphi 0, %s71
    %s73 = sphi 0, %s71
    %s74 = sphi 0, %s73
    %s88 = sphi 0, %s74
    %s92 = sphi 0, %s92
    %s94 = sphi 0, %s92
    %s95 = sphi 0, %s94
    %s109 = sphi 0, %s95
    %s113 = sphi 0, %s113
    %s115 = sphi 0, %s113
    %s116 = sphi 0, %s115
    %s130 = sphi 0, %s116
    %s134 = sphi 0, %s134
    %s136 = sphi 0, %s134
    %s137 = sphi 0, %s136
    %s151 = sphi 0, %s137
    %s155 = sphi 0, %s155
    %s157 = sphi 0, %s155
    %s158 = sphi 0, %s157
    %s172 = sphi 0, %s158
    %s176 = sphi 0, %s176
    %s178 = sphi 0, %s176
    %s179 = sphi 0, %s178
    %s193 = sphi 0, %s179
    %s197 = sphi 0, %s197
    %s199 = sphi 0, %s197
    %s200 = sphi 0, %s199
    %s214 = sphi 0, %s200
    %s218 = sphi 0, %s218
    %s220 = sphi 0, %s218
    %s221 = sphi 0, %s220
    %s235 = sphi 0, %s221
    %s241 = sphi 0, %s243
    %s244 = sphi 0, %s241
    %s245 = sphi 0, %s244
    %s261 = sphi 0, %s245
  $region4: #{reduction_v4a.1} parent=0 // loop_header_branch
    %19 = sbr.rel (%p17) target = $region8
  $region5: #{reduction_v4a.1} parent=0 // loop_body
    %s21 = ssub.s32 %s16, 1
    %s22 = ssub.s32 %s16, 2
    %s23 = sadd.s32 %s16, 1
    %s24 = ssub.s32 %s16, %s23
    %p25 = scmp.eq.s32.totalorder %s24, 0
    %s27 = sadd.s32 %s26, 1
    %s28 = scalar_select %p25, %s26, %s27
    %p31 = pneg %p25
    %p32 = scmp.eq.s32.totalorder %s16, 1
    %p33 = por %p31, %p32
    %p34 = scmp.ne.s32.totalorder %s26, %s29
    %p35 = scmp.eq.s32.totalorder %s16, 0
    %p36 = por %p34, %p35
    %p37 = scmp.ne.s32.totalorder %s26, %s29
    %p38 = scmp.eq.s32.totalorder %s21, 1
    %p39 = por %p37, %p38
    %p40 = scmp.ne.s32.totalorder %s29, %s30
    %p41 = scmp.eq.s32.totalorder %s21, 0
    %p42 = por %p40, %p41
    %p43 = scmp.ne.s32.totalorder %s29, %s30
    %p44 = scmp.eq.s32.totalorder %s22, 1
    %p45 = por %p43, %p44
    %p47 = scmp.ne.s32.totalorder %s30, %s46
    %p48 = scmp.eq.s32.totalorder %s22, 0
    %p49 = por %p47, %p48
    %s51 = sadd.s32 %s50, 1
    %p54 = scmp.eq.s32.totalorder %s16, 1
    %p55 = scmp.ne.s32.totalorder %s50, %s52
    %p56 = scmp.eq.s32.totalorder %s16, 0
    %p57 = por %p55, %p56
    %p58 = scmp.ne.s32.totalorder %s50, %s52
    %p59 = scmp.eq.s32.totalorder %s21, 1
    %p60 = por %p58, %p59
    %p61 = scmp.ne.s32.totalorder %s52, %s53
    %p62 = scmp.eq.s32.totalorder %s21, 0
    %p63 = por %p61, %p62
    %p64 = scmp.ne.s32.totalorder %s52, %s53
    %p65 = scmp.eq.s32.totalorder %s22, 1
    %p66 = por %p64, %p65
    %p68 = scmp.ne.s32.totalorder %s53, %s67
    %p69 = scmp.eq.s32.totalorder %s22, 0
    %p70 = por %p68, %p69
    %s72 = sadd.s32 %s71, 1
    %p75 = scmp.eq.s32.totalorder %s16, 1
    %p76 = scmp.ne.s32.totalorder %s71, %s73
    %p77 = scmp.eq.s32.totalorder %s16, 0
    %p78 = por %p76, %p77
    %p79 = scmp.ne.s32.totalorder %s71, %s73
    %p80 = scmp.eq.s32.totalorder %s21, 1
    %p81 = por %p79, %p80
    %p82 = scmp.ne.s32.totalorder %s73, %s74
    %p83 = scmp.eq.s32.totalorder %s21, 0
    %p84 = por %p82, %p83
    %p85 = scmp.ne.s32.totalorder %s73, %s74
    %p86 = scmp.eq.s32.totalorder %s22, 1
    %p87 = por %p85, %p86
    %p89 = scmp.ne.s32.totalorder %s74, %s88
    %p90 = scmp.eq.s32.totalorder %s22, 0
    %p91 = por %p89, %p90
    %s93 = sadd.s32 %s92, 1
    %p96 = scmp.eq.s32.totalorder %s16, 1
    %p97 = scmp.ne.s32.totalorder %s92, %s94
    %p98 = scmp.eq.s32.totalorder %s16, 0
    %p99 = por %p97, %p98
    %p100 = scmp.ne.s32.totalorder %s92, %s94
    %p101 = scmp.eq.s32.totalorder %s21, 1
    %p102 = por %p100, %p101
    %p103 = scmp.ne.s32.totalorder %s94, %s95
    %p104 = scmp.eq.s32.totalorder %s21, 0
    %p105 = por %p103, %p104
    %p106 = scmp.ne.s32.totalorder %s94, %s95
    %p107 = scmp.eq.s32.totalorder %s22, 1
    %p108 = por %p106, %p107
    %p110 = scmp.ne.s32.totalorder %s95, %s109
    %p111 = scmp.eq.s32.totalorder %s22, 0
    %p112 = por %p110, %p111
    %s114 = sadd.s32 %s113, 1
    %p117 = scmp.eq.s32.totalorder %s16, 1
    %p118 = scmp.ne.s32.totalorder %s113, %s115
    %p119 = scmp.eq.s32.totalorder %s16, 0
    %p120 = por %p118, %p119
    %p121 = scmp.ne.s32.totalorder %s113, %s115
    %p122 = scmp.eq.s32.totalorder %s21, 1
    %p123 = por %p121, %p122
    %p124 = scmp.ne.s32.totalorder %s115, %s116
    %p125 = scmp.eq.s32.totalorder %s21, 0
    %p126 = por %p124, %p125
    %p127 = scmp.ne.s32.totalorder %s115, %s116
    %p128 = scmp.eq.s32.totalorder %s22, 1
    %p129 = por %p127, %p128
    %p131 = scmp.ne.s32.totalorder %s116, %s130
    %p132 = scmp.eq.s32.totalorder %s22, 0
    %p133 = por %p131, %p132
    %s135 = sadd.s32 %s134, 1
    %p138 = scmp.eq.s32.totalorder %s16, 1
    %p139 = scmp.ne.s32.totalorder %s134, %s136
    %p140 = scmp.eq.s32.totalorder %s16, 0
    %p141 = por %p139, %p140
    %p142 = scmp.ne.s32.totalorder %s134, %s136
    %p143 = scmp.eq.s32.totalorder %s21, 1
    %p144 = por %p142, %p143
    %p145 = scmp.ne.s32.totalorder %s136, %s137
    %p146 = scmp.eq.s32.totalorder %s21, 0
    %p147 = por %p145, %p146
    %p148 = scmp.ne.s32.totalorder %s136, %s137
    %p149 = scmp.eq.s32.totalorder %s22, 1
    %p150 = por %p148, %p149
    %p152 = scmp.ne.s32.totalorder %s137, %s151
    %p153 = scmp.eq.s32.totalorder %s22, 0
    %p154 = por %p152, %p153
    %s156 = sadd.s32 %s155, 1
    %p159 = scmp.eq.s32.totalorder %s16, 1
    %p160 = scmp.ne.s32.totalorder %s155, %s157
    %p161 = scmp.eq.s32.totalorder %s16, 0
    %p162 = por %p160, %p161
    %p163 = scmp.ne.s32.totalorder %s155, %s157
    %p164 = scmp.eq.s32.totalorder %s21, 1
    %p165 = por %p163, %p164
    %p166 = scmp.ne.s32.totalorder %s157, %s158
    %p167 = scmp.eq.s32.totalorder %s21, 0
    %p168 = por %p166, %p167
    %p169 = scmp.ne.s32.totalorder %s157, %s158
    %p170 = scmp.eq.s32.totalorder %s22, 1
    %p171 = por %p169, %p170
    %p173 = scmp.ne.s32.totalorder %s158, %s172
    %p174 = scmp.eq.s32.totalorder %s22, 0
    %p175 = por %p173, %p174
    %s177 = sadd.s32 %s176, 1
    %p180 = scmp.eq.s32.totalorder %s16, 1
    %p181 = scmp.ne.s32.totalorder %s176, %s178
    %p182 = scmp.eq.s32.totalorder %s16, 0
    %p183 = por %p181, %p182
    %p184 = scmp.ne.s32.totalorder %s176, %s178
    %p185 = scmp.eq.s32.totalorder %s21, 1
    %p186 = por %p184, %p185
    %p187 = scmp.ne.s32.totalorder %s178, %s179
    %p188 = scmp.eq.s32.totalorder %s21, 0
    %p189 = por %p187, %p188
    %p190 = scmp.ne.s32.totalorder %s178, %s179
    %p191 = scmp.eq.s32.totalorder %s22, 1
    %p192 = por %p190, %p191
    %p194 = scmp.ne.s32.totalorder %s179, %s193
    %p195 = scmp.eq.s32.totalorder %s22, 0
    %p196 = por %p194, %p195
    %s198 = sadd.s32 %s197, 1
    %p201 = scmp.eq.s32.totalorder %s16, 1
    %p202 = scmp.ne.s32.totalorder %s197, %s199
    %p203 = scmp.eq.s32.totalorder %s16, 0
    %p204 = por %p202, %p203
    %p205 = scmp.ne.s32.totalorder %s197, %s199
    %p206 = scmp.eq.s32.totalorder %s21, 1
    %p207 = por %p205, %p206
    %p208 = scmp.ne.s32.totalorder %s199, %s200
    %p209 = scmp.eq.s32.totalorder %s21, 0
    %p210 = por %p208, %p209
    %p211 = scmp.ne.s32.totalorder %s199, %s200
    %p212 = scmp.eq.s32.totalorder %s22, 1
    %p213 = por %p211, %p212
    %p215 = scmp.ne.s32.totalorder %s200, %s214
    %p216 = scmp.eq.s32.totalorder %s22, 0
    %p217 = por %p215, %p216
    %s219 = sadd.s32 %s218, 1
    %p222 = scmp.eq.s32.totalorder %s16, 1
    %p223 = scmp.ne.s32.totalorder %s218, %s220
    %p224 = scmp.eq.s32.totalorder %s16, 0
    %p225 = por %p223, %p224
    %p226 = scmp.ne.s32.totalorder %s218, %s220
    %p227 = scmp.eq.s32.totalorder %s21, 1
    %p228 = por %p226, %p227
    %p229 = scmp.ne.s32.totalorder %s220, %s221
    %p230 = scmp.eq.s32.totalorder %s21, 0
    %p231 = por %p229, %p230
    %p232 = scmp.ne.s32.totalorder %s220, %s221
    %p233 = scmp.eq.s32.totalorder %s22, 1
    %p234 = por %p232, %p233
    %p236 = scmp.ne.s32.totalorder %s221, %s235
    %p237 = scmp.eq.s32.totalorder %s22, 0
    %p238 = por %p236, %p237
    %s239 = ssub.s32 %s16, %s23
    %p240 = scmp.eq.s32.totalorder %s239, 0
    %s242 = sadd.s32 %s241, 1
    %s243 = scalar_select %p240, %s241, %s242
    %p246 = pneg %p240
    %p247 = scmp.eq.s32.totalorder %s16, 1
    %p248 = por %p246, %p247
    %p249 = scmp.ne.s32.totalorder %s241, %s244
    %p250 = scmp.eq.s32.totalorder %s16, 0
    %p251 = por %p249, %p250
    %p252 = scmp.ne.s32.totalorder %s241, %s244
    %p253 = scmp.eq.s32.totalorder %s21, 1
    %p254 = por %p252, %p253
    %p255 = scmp.ne.s32.totalorder %s244, %s245
    %p256 = scmp.eq.s32.totalorder %s21, 0
    %p257 = por %p255, %p256
    %p258 = scmp.ne.s32.totalorder %s244, %s245
    %p259 = scmp.eq.s32.totalorder %s22, 1
    %p260 = por %p258, %p259
    %p262 = scmp.ne.s32.totalorder %s245, %s261
    %p263 = scmp.eq.s32.totalorder %s22, 0
    %p264 = por %p262, %p263
    %p265 = scmp.le.s32.totalorder 1, %s16
    %p266 = scmp.lt.s32.totalorder %s16, 3
    %p267 = pnand %p265, %p266
    %p268 = pneg %p267
    // Predicated region
    $region9: #{reduction_v4a.1} parent=5 // pred_check
      _
    $region10: #{reduction_v4a.1} parent=5 // pred_check_branch
      %270 = sbr.rel (%p267) target = $region12
    $region11: #{reduction_v4a.1} parent=5 // pred_region
      %s271 = ssub.s32 %s16, 1
      // Predicated region
      $region13: #{reduction_v4a.1} parent=11 // pred_check
        %p272 = pneg %p63
      $region14: #{reduction_v4a.1} parent=11 // pred_check_branch
        %274 = sbr.rel (%p272) target = $region16
      $region15: #{reduction_v4a.1} parent=11 // pred_region
        _
      $region16: #{reduction_v4a.1} parent=11 // pred_fallthru
        _
      // Predicated region
      $region17: #{reduction_v4a.1} parent=11 // pred_check
        %p275 = pneg %p84
      $region18: #{reduction_v4a.1} parent=11 // pred_check_branch
        %277 = sbr.rel (%p275) target = $region20
      $region19: #{reduction_v4a.1} parent=11 // pred_region
        _
      $region20: #{reduction_v4a.1} parent=11 // pred_fallthru
        _
      // Predicated region
      $region21: #{reduction_v4a.1} parent=11 // pred_check
        %p278 = pneg %p105
      $region22: #{reduction_v4a.1} parent=11 // pred_check_branch
        %280 = sbr.rel (%p278) target = $region24
      $region23: #{reduction_v4a.1} parent=11 // pred_region
        _
      $region24: #{reduction_v4a.1} parent=11 // pred_fallthru
        _
      // Predicated region
      $region25: #{reduction_v4a.1} parent=11 // pred_check
        %p281 = pneg %p126
      $region26: #{reduction_v4a.1} parent=11 // pred_check_branch
        %283 = sbr.rel (%p281) target = $region28
      $region27: #{reduction_v4a.1} parent=11 // pred_region
        _
      $region28: #{reduction_v4a.1} parent=11 // pred_fallthru
        _
      // Predicated region
      $region29: #{reduction_v4a.1} parent=11 // pred_check
        %p284 = pneg %p147
      $region30: #{reduction_v4a.1} parent=11 // pred_check_branch
        %286 = sbr.rel (%p284) target = $region32
      $region31: #{reduction_v4a.1} parent=11 // pred_region
        _
      $region32: #{reduction_v4a.1} parent=11 // pred_fallthru
        _
      // Predicated region
      $region33: #{reduction_v4a.1} parent=11 // pred_check
        %p287 = pneg %p168
      $region34: #{reduction_v4a.1} parent=11 // pred_check_branch
        %289 = sbr.rel (%p287) target = $region36
      $region35: #{reduction_v4a.1} parent=11 // pred_region
        _
      $region36: #{reduction_v4a.1} parent=11 // pred_fallthru
        _
      // Predicated region
      $region37: #{reduction_v4a.1} parent=11 // pred_check
        %p290 = pneg %p189
      $region38: #{reduction_v4a.1} parent=11 // pred_check_branch
        %292 = sbr.rel (%p290) target = $region40
      $region39: #{reduction_v4a.1} parent=11 // pred_region
        _
      $region40: #{reduction_v4a.1} parent=11 // pred_fallthru
        _
      // Predicated region
      $region41: #{reduction_v4a.1} parent=11 // pred_check
        %p293 = pneg %p210
      $region42: #{reduction_v4a.1} parent=11 // pred_check_branch
        %295 = sbr.rel (%p293) target = $region44
      $region43: #{reduction_v4a.1} parent=11 // pred_region
        _
      $region44: #{reduction_v4a.1} parent=11 // pred_fallthru
        _
      // Predicated region
      $region45: #{reduction_v4a.1} parent=11 // pred_check
        %p296 = pneg %p231
      $region46: #{reduction_v4a.1} parent=11 // pred_check_branch
        %298 = sbr.rel (%p296) target = $region48
      $region47: #{reduction_v4a.1} parent=11 // pred_region
        _
      $region48: #{reduction_v4a.1} parent=11 // pred_fallthru
        _
    $region12: #{reduction_v4a.1} parent=5 // pred_fallthru
      _
    %p299 = scmp.lt.s32.totalorder %s16, 2
    // Predicated region
    $region49: #{reduction_v4a.1} parent=5 // pred_check
      %p300 = pneg %p299
    $region50: #{reduction_v4a.1} parent=5 // pred_check_branch
      %302 = sbr.rel (%p300) target = $region52
    $region51: #{reduction_v4a.1} parent=5 // pred_region
      // Predicated region
      $region53: #{reduction_v4a.1} parent=51 // pred_check
        %p303 = pneg %p36
      $region54: #{reduction_v4a.1} parent=51 // pred_check_branch
        %305 = sbr.rel (%p303) target = $region56
      $region55: #{reduction_v4a.1} parent=51 // pred_region
        %p306 = scmp.lt.s32.totalorder %s16, 1
        %s307 = scalar_select %p306, %s16, 1
        %s308 = smul.addr %s307, 32
        %s309 = smul.addr %s308, 8
        %s310 = scalar_lea.vmem %s0, %s309
      $region56: #{reduction_v4a.1} parent=51 // pred_fallthru
        _
    $region52: #{reduction_v4a.1} parent=5 // pred_fallthru
      _
    %p311 = scmp.le.s32.totalorder 1, %s16
    %p312 = scmp.lt.s32.totalorder %s16, 3
    %p313 = pnand %p311, %p312
    %p314 = pneg %p313
    // Predicated region
    $region57: #{reduction_v4a.1} parent=5 // pred_check
      _
    $region58: #{reduction_v4a.1} parent=5 // pred_check_branch
      %316 = sbr.rel (%p313) target = $region60
    $region59: #{reduction_v4a.1} parent=5 // pred_region
      %s317 = ssub.s32 %s16, 1
      %p318 = scmp.lt.s32.totalorder %s21, 1
      %s319 = scalar_select %p318, %s21, 1
      %s320 = smul.addr %s319, 32
      %s321 = smul.addr %s320, 8
      %s322 = scalar_lea.vmem %s0, %s321
      %p323 = pneg %p42
      %p324 = pneg %p39
      %p325 = pneg %p63
      %p326 = pneg %p60
      %p327 = pneg %p84
      %p328 = pneg %p81
      %p329 = pneg %p105
      %p330 = pneg %p102
      %p331 = pneg %p126
      %p332 = pneg %p123
      %p333 = pneg %p147
      %p334 = pneg %p144
      %p335 = pneg %p168
      %p336 = pneg %p165
      %p337 = pneg %p189
      %p338 = pneg %p186
      %p339 = pneg %p210
      %p340 = pneg %p207
      %p341 = pneg %p231
      %p342 = pneg %p228
      %p343 = pneg %p257
      %p344 = pneg %p254
      %p345 = scmp.lt.s32.totalorder %s21, 1
      %s346 = scalar_select %p345, %s21, 1
      %s347 = smul.addr %s346, 7
      %s348 = smul.addr %s347, 8
      %s349 = scalar_lea.vmem %s10, %s348
      %p350 = scmp.lt.s32.totalorder %s21, 1
      %s351 = scalar_select %p350, %s21, 1
      %s352 = smul.addr %s351, 32
      %s353 = smul.addr %s352, 8
      %s354 = scalar_lea.vmem %s0, %s353
      %p355 = scmp.lt.s32.totalorder %s21, 1
      %s356 = scalar_select %p355, %s21, 1
      %s357 = smul.addr %s356, 7
      %s358 = smul.addr %s357, 8
      %s359 = scalar_lea.vmem %s10, %s358
      %v360 = vld [vmem:[%s1] sm:$0x7f]
      %v361 = vld [vmem:[%s2] sm:$0xf]
      %v362 = vld [vmem:[%s2 + $0x4] sm:$0xf]
      %v363 = vld [vmem:[%s2 + $0x8] sm:$0xf]
      %v364 = vld [vmem:[%s2 + $0xc] sm:$0xf]
      %v365 = vld [vmem:[%s2 + $0x10] sm:$0xf]
      %v366 = vld [vmem:[%s2 + $0x14] sm:$0xf]
      %v367 = vld [vmem:[%s2 + $0x18] sm:$0xf]
      %v368 = vld [vmem:[%s2 + $0x1c] sm:$0xf]
      %v369 = vld [vmem:[%s2 + $0x20] sm:$0xf]
      %v370 = vld [vmem:[%s3] sm:$0x1]
      %v371 = vld [vmem:[%s4] sm:$0xf]
      %v372 = vld [vmem:[%s5] sm:$0x1]
      %v373 = vld [vmem:[%s6] sm:$0xf]
      %v374 = vld [vmem:[%s6 + $0x4] sm:$0xf]
      %v375 = vld [vmem:[%s6 + $0x8] sm:$0xf]
      %v376 = vld [vmem:[%s6 + $0xc] sm:$0xf]
      %v377 = vld [vmem:[%s6 + $0x10] sm:$0xf]
      %v378 = vld [vmem:[%s6 + $0x14] sm:$0xf]
      %v379 = vld [vmem:[%s6 + $0x18] sm:$0xf]
      %v380 = vld [vmem:[%s6 + $0x1c] sm:$0xf]
      %v381 = vld [vmem:[%s6 + $0x20] sm:$0xf]
      %v382 = vld [vmem:[%s7] sm:$0x1]
      %v383 = vld [vmem:[%s8] sm:$0xff]
      %v384 = vld [vmem:[%s8 + $0x8] sm:$0xff]
      %v385 = vld [vmem:[%s8 + $0x10] sm:$0xff]
      %v386 = vld [vmem:[%s8 + $0x18] sm:$0xff]
      %v387 = vld [vmem:[%s8 + $0x20] sm:$0xff]
      %v388 = vld [vmem:[%s8 + $0x28] sm:$0xff]
      %v389 = vld [vmem:[%s8 + $0x30] sm:$0xff]
      %v390 = vld [vmem:[%s8 + $0x38] sm:$0xff]
      %v391 = vld [vmem:[%s8 + $0x40] sm:$0xff]
      %v392 = vld [vmem:[%s9] sm:$0x1]
      %vm393 = vcmask 31744
      %394 = vst.msk [vmem:[#allocation2] sm:$0xff] %vm393, 0.0
      %395 = vst.msk [vmem:[#allocation2 + $0x8] sm:$0xff] %vm393, 0.0
      %vm396 = vcmask 25600
      %397 = vst.msk [vmem:[#allocation2 + $0x10] sm:$0x3] %vm396, 0.0
      %398 = vst.msk [vmem:[#allocation2 + $0x18] sm:$0xff] %vm393, 0.0
      %399 = vst.msk [vmem:[#allocation2 + $0x20] sm:$0xff] %vm393, 0.0
      %400 = vst.msk [vmem:[#allocation2 + $0x28] sm:$0x3] %vm396, 0.0
      %401 = vst.msk [vmem:[#allocation2 + $0x30] sm:$0xff] %vm393, 0.0
      %402 = vst.msk [vmem:[#allocation2 + $0x38] sm:$0xff] %vm393, 0.0
      %403 = vst.msk [vmem:[#allocation2 + $0x40] sm:$0x3] %vm396, 0.0
      %404 = vst.msk [vmem:[#allocation2 + $0x48] sm:$0xff] %vm393, 0.0
      %405 = vst.msk [vmem:[#allocation2 + $0x50] sm:$0xff] %vm393, 0.0
      %406 = vst.msk [vmem:[#allocation2 + $0x58] sm:$0x3] %vm396, 0.0
      %407 = vst.msk [vmem:[#allocation2 + $0x60] sm:$0xff] %vm393, 0.0
      %408 = vst.msk [vmem:[#allocation2 + $0x68] sm:$0xff] %vm393, 0.0
      %409 = vst.msk [vmem:[#allocation2 + $0x70] sm:$0x3] %vm396, 0.0
      %410 = vst.msk [vmem:[#allocation2 + $0x78] sm:$0xff] %vm393, 0.0
      %411 = vst.msk [vmem:[#allocation2 + $0x80] sm:$0xff] %vm393, 0.0
      %412 = vst.msk [vmem:[#allocation2 + $0x88] sm:$0x3] %vm396, 0.0
      %413 = vst.msk [vmem:[#allocation2 + $0x90] sm:$0xff] %vm393, 0.0
      %414 = vst.msk [vmem:[#allocation2 + $0x98] sm:$0xff] %vm393, 0.0
      %415 = vst.msk [vmem:[#allocation2 + $0xa0] sm:$0x3] %vm396, 0.0
      %416 = vst.msk [vmem:[#allocation2 + $0xa8] sm:$0xff] %vm393, 0.0
      %417 = vst.msk [vmem:[#allocation2 + $0xb0] sm:$0xff] %vm393, 0.0
      %418 = vst.msk [vmem:[#allocation2 + $0xb8] sm:$0x3] %vm396, 0.0
      %419 = vst.msk [vmem:[#allocation2 + $0xc0] sm:$0xff] %vm393, 0.0
      %420 = vst.msk [vmem:[#allocation2 + $0xc8] sm:$0xff] %vm393, 0.0
      %421 = vst.msk [vmem:[#allocation2 + $0xd0] sm:$0x3] %vm396, 0.0
      %422 = vst.msk [vmem:[#allocation2 + $0xd8] sm:$0xff] %vm393, 0.0
      %423 = vst.msk [vmem:[#allocation2 + $0xe0] sm:$0xff] %vm393, 0.0
      %424 = vst.msk [vmem:[#allocation2 + $0xe8] sm:$0x3] %vm396, 0.0
      %425 = vst.msk [vmem:[#allocation2 + $0xf0] sm:$0xff] %vm393, 0.0
      %426 = vst.msk [vmem:[#allocation2 + $0xf8] sm:$0xff] %vm393, 0.0
      %427 = vst.msk [vmem:[#allocation2 + $0x100] sm:$0x3] %vm396, 0.0
      %428 = vst.msk [vmem:[#allocation2 + $0x108] sm:$0xff] %vm393, 0.0
      %429 = vst.msk [vmem:[#allocation2 + $0x110] sm:$0xff] %vm393, 0.0
      %430 = vst.msk [vmem:[#allocation2 + $0x118] sm:$0x3] %vm396, 0.0
      %431 = vst.msk [vmem:[#allocation2 + $0x120] sm:$0xff] %vm393, 0.0
      %432 = vst.msk [vmem:[#allocation2 + $0x128] sm:$0xff] %vm393, 0.0
      %433 = vst.msk [vmem:[#allocation2 + $0x130] sm:$0x3] %vm396, 0.0
      %434 = vst.msk [vmem:[#allocation2 + $0x138] sm:$0xff] %vm393, 0.0
      %435 = vst.msk [vmem:[#allocation2 + $0x140] sm:$0xff] %vm393, 0.0
      %436 = vst.msk [vmem:[#allocation2 + $0x148] sm:$0x3] %vm396, 0.0
      %437 = vst.msk [vmem:[#allocation2 + $0x150] sm:$0xff] %vm393, 0.0
      %438 = vst.msk [vmem:[#allocation2 + $0x158] sm:$0xff] %vm393, 0.0
      %439 = vst.msk [vmem:[#allocation2 + $0x160] sm:$0x3] %vm396, 0.0
      %440 = vst.msk [vmem:[#allocation2 + $0x168] sm:$0xff] %vm393, 0.0
      %441 = vst.msk [vmem:[#allocation2 + $0x170] sm:$0xff] %vm393, 0.0
      %442 = vst.msk [vmem:[#allocation2 + $0x178] sm:$0x3] %vm396, 0.0
      %443 = vst.msk [vmem:[#allocation2 + $0x180] sm:$0xff] %vm393, 0.0
      %444 = vst.msk [vmem:[#allocation2 + $0x188] sm:$0xff] %vm393, 0.0
      %445 = vst.msk [vmem:[#allocation2 + $0x190] sm:$0x3] %vm396, 0.0
      %446 = vst.msk [vmem:[#allocation2 + $0x198] sm:$0xff] %vm393, 0.0
      %447 = vst.msk [vmem:[#allocation2 + $0x1a0] sm:$0xff] %vm393, 0.0
      %448 = vst.msk [vmem:[#allocation2 + $0x1a8] sm:$0x3] %vm396, 0.0
      loop: start=0, step=1, limit=16
      $region61: #{reduction_v4a.1} parent=59 // loop_pre_header
        _
      $region62: #{reduction_v4a.1} parent=59 // loop_header
        %s450 = sphi 0, %s454
        %p451 = scmp.ge.s32.totalorder %s450, 16
      $region63: #{reduction_v4a.1} parent=59 // loop_header_branch
        %453 = sbr.rel (%p451) target = $region67
      $region64: #{reduction_v4a.1} parent=59 // loop_body
        %s455 = smul.u32 %s450, 16
        %s456 = scalar_lea.vmem %s354, %s455
        %v457 = vld [vmem:[%s456] sm:$0xff]
        %v458 = vld [vmem:[%s456 + $0x8] sm:$0xff]
        %v460 = vlaneseq
        %v461 = vshrl.u32 %v460, 7
        %v462 = vsub.s32 0, %v461
        %v463 = vrot.slane %v372, %v462
        %v466 = vsel %vm393, %v457, 0
        %v469 = vsel %vm393, %v458, 0
        %vm471 = vcmask 1043456
        %v473 = vsel %vm471, %v371, 0
        %475 = vmatprep.subr.mxu0 0.0
        %476 = vmatpush1.msra.mxu0 0.0
        %477 = vmatprep.subr.mxu0 0.0
        %478 = vmatpush1.msra.mxu0 0.0
        %479 = vmatprep.subr.mxu0 0.0
        %480 = vmatpush1.msra.mxu0 0.0
        %481 = vmatprep.subr.mxu0 0.0
        %482 = vmatpush1.msra.mxu0 0.0
        %483 = vmatprep.subr.mxu0 0.0
        %484 = vmatpush1.msra.mxu0 0.0
        %485 = vmatprep.subr.mxu0 0.0
        %486 = vmatpush1.msra.mxu0 0.0
        %487 = vmatprep.subr.mxu0 0.0
        %488 = vmatpush1.msra.mxu0 0.0
        %489 = vmatprep.subr.mxu0 0.0
        %490 = vmatpush1.msra.mxu0 0.0
        %491 = vmatprep.subr.mxu0 0.0
        %492 = vmatpush1.msra.mxu0 0.0
        %493 = vmatprep.subr.mxu0 0.0
        %494 = vmatpush1.msra.mxu0 0.0
        %495 = vmatprep.subr.mxu0 0.0
        %496 = vmatpush1.msra.mxu0 0.0
        %497 = vmatprep.subr.mxu0 0.0
        %498 = vmatpush1.msra.mxu0 0.0
        %499 = vmatprep.subr.mxu0 0.0
        %500 = vmatpush1.msra.mxu0 0.0
        %501 = vmatprep.subr.mxu0 0.0
        %502 = vmatpush1.msra.mxu0 0.0
        %503 = vmatprep.subr.mxu0 0.0
        %504 = vmatpush1.msra.mxu0 0.0
        %505 = vmatprep.subr.mxu0 0.0
        %506 = vmatpush1.msra.mxu0 %v473
        %507 = vmatprep.subr.mxu0 0.0
        %508 = vmatpush2.msra.mxu0 0.0
        %509 = vmatprep.subr.mxu0 0.0
        %510 = vmatpush2.msra.mxu0 0.0
        %511 = vmatprep.subr.mxu0 0.0
        %512 = vmatpush2.msra.mxu0 0.0
        %513 = vmatprep.subr.mxu0 0.0
        %514 = vmatpush2.msra.mxu0 0.0
        %515 = vmatprep.subr.mxu0 0.0
        %516 = vmatpush2.msra.mxu0 0.0
        %517 = vmatprep.subr.mxu0 0.0
        %518 = vmatpush2.msra.mxu0 0.0
        %519 = vmatprep.subr.mxu0 0.0
        %520 = vmatpush2.msra.mxu0 0.0
        %521 = vmatprep.subr.mxu0 0.0
        %522 = vmatpush2.msra.mxu0 0.0
        %523 = vmatprep.subr.mxu0 0.0
        %524 = vmatpush2.msra.mxu0 0.0
        %525 = vmatprep.subr.mxu0 0.0
        %526 = vmatpush2.msra.mxu0 0.0
        %527 = vmatprep.subr.mxu0 0.0
        %528 = vmatpush2.msra.mxu0 0.0
        %529 = vmatprep.subr.mxu0 0.0
        %530 = vmatpush2.msra.mxu0 0.0
        %531 = vmatprep.subr.mxu0 0.0
        %532 = vmatpush2.msra.mxu0 0.0
        %533 = vmatprep.subr.mxu0 0.0
        %534 = vmatpush2.msra.mxu0 0.0
        %535 = vmatprep.subr.mxu0 0.0
        %536 = vmatpush2.msra.mxu0 0.0
        %537 = vmatprep.subr.mxu0 0.0
        %538 = vmatpush2.msra.mxu0 0.0
        %539 = vmatprep.mubr.f32.mxu0 0.0
        %540 = vmatmul.mubr.f32.gmra.mxu0 %v466
        %v541 = vpop.f32.mrf.mxu0
        %v542 = vadd.f32 %v463, %v541
        %v543 = vpop.f32.mrf.mxu0
        %544 = vmatprep.mubr.f32.mxu0 0.0
        %545 = vmatmul.mubr.f32.gmra.mxu0 %v469
        %v546 = vpop.f32.mrf.mxu0
        %v547 = vadd.f32 %v463, %v546
        %v548 = vpop.f32.mrf.mxu0
        %549 = vdwg.mxu0
        %vm550 = vcmp.ge.f32.partialorder %v542, 0.0
        %vm551 = vcmp.ge.f32.partialorder %v547, 0.0
        %v552 = vmul.f32 %v542, 0.2
        %v553 = vmul.f32 %v547, 0.2
        %v554 = vsel %vm550, %v542, %v552
        %v555 = vsel %vm551, %v547, %v553
        %s556 = sadd.s32 %s450, 1
        %s557 = smul.u32 %s556, 24
        %s558 = scalar_lea.vmem [#allocation2], %s557
        %559 = vst.msk [vmem:[%s558 + $0x1] sm:$0xff] %vm393, %v554
        %560 = vst.msk [vmem:[%s558 + $0x9] sm:$0xff] %vm393, %v555
      $region65: #{reduction_v4a.1} parent=59 // loop_footer
        %s454 = sadd.s32 1, %s450
      $region66: #{reduction_v4a.1} parent=59 // loop_footer_branch
        %449 = sbr.rel target = $region62
      $region67: #{reduction_v4a.1} parent=59 // loop_exit
        _
      loop: start=0, step=1, limit=16
      $region68: #{reduction_v4a.1} parent=59 // loop_pre_header
        _
      $region69: #{reduction_v4a.1} parent=59 // loop_header
        %s562 = sphi 0, %s566
        %p563 = scmp.ge.s32.totalorder %s562, 16
      $region70: #{reduction_v4a.1} parent=59 // loop_header_branch
        %565 = sbr.rel (%p563) target = $region74
      $region71: #{reduction_v4a.1} parent=59 // loop_body
        %s567 = smul.u32 %s562, 24
        %s568 = scalar_lea.vmem [#allocation2], %s567
        %v569 = vld [vmem:[%s568] sm:$0xff]
        %v570 = vld [vmem:[%s568 + $0x8] sm:$0xff]
        %v571 = vld [vmem:[%s568 + $0x1] sm:$0xff]
        %v572 = vld [vmem:[%s568 + $0x9] sm:$0xff]
        %v574 = vsel %vm393, %v571, 0
        %v577 = vsel %vm393, %v572, 0
        %vm579 = vcmask 1043456
        %v581 = vsel %vm579, %v374, 0
        %583 = vmatprep.subr.mxu0 0.0
        %584 = vmatpush1.msra.mxu0 0.0
        %585 = vmatprep.subr.mxu0 0.0
        %586 = vmatpush1.msra.mxu0 0.0
        %587 = vmatprep.subr.mxu0 0.0
        %588 = vmatpush1.msra.mxu0 0.0
        %589 = vmatprep.subr.mxu0 0.0
        %590 = vmatpush1.msra.mxu0 0.0
        %591 = vmatprep.subr.mxu0 0.0
        %592 = vmatpush1.msra.mxu0 0.0
        %593 = vmatprep.subr.mxu0 0.0
        %594 = vmatpush1.msra.mxu0 0.0
        %595 = vmatprep.subr.mxu0 0.0
        %596 = vmatpush1.msra.mxu0 0.0
        %597 = vmatprep.subr.mxu0 0.0
        %598 = vmatpush1.msra.mxu0 0.0
        %599 = vmatprep.subr.mxu0 0.0
        %600 = vmatpush1.msra.mxu0 0.0
        %601 = vmatprep.subr.mxu0 0.0
        %602 = vmatpush1.msra.mxu0 0.0
        %603 = vmatprep.subr.mxu0 0.0
        %604 = vmatpush1.msra.mxu0 0.0
        %605 = vmatprep.subr.mxu0 0.0
        %606 = vmatpush1.msra.mxu0 0.0
        %607 = vmatprep.subr.mxu0 0.0
        %608 = vmatpush1.msra.mxu0 0.0
        %609 = vmatprep.subr.mxu0 0.0
        %610 = vmatpush1.msra.mxu0 0.0
        %611 = vmatprep.subr.mxu0 0.0
        %612 = vmatpush1.msra.mxu0 0.0
        %613 = vmatprep.subr.mxu0 0.0
        %614 = vmatpush1.msra.mxu0 %v581
        %615 = vmatprep.subr.mxu0 0.0
        %616 = vmatpush2.msra.mxu0 0.0
        %617 = vmatprep.subr.mxu0 0.0
        %618 = vmatpush2.msra.mxu0 0.0
        %619 = vmatprep.subr.mxu0 0.0
        %620 = vmatpush2.msra.mxu0 0.0
        %621 = vmatprep.subr.mxu0 0.0
        %622 = vmatpush2.msra.mxu0 0.0
        %623 = vmatprep.subr.mxu0 0.0
        %624 = vmatpush2.msra.mxu0 0.0
        %625 = vmatprep.subr.mxu0 0.0
        %626 = vmatpush2.msra.mxu0 0.0
        %627 = vmatprep.subr.mxu0 0.0
        %628 = vmatpush2.msra.mxu0 0.0
        %629 = vmatprep.subr.mxu0 0.0
        %630 = vmatpush2.msra.mxu0 0.0
        %631 = vmatprep.subr.mxu0 0.0
        %632 = vmatpush2.msra.mxu0 0.0
        %633 = vmatprep.subr.mxu0 0.0
        %634 = vmatpush2.msra.mxu0 0.0
        %635 = vmatprep.subr.mxu0 0.0
        %636 = vmatpush2.msra.mxu0 0.0
        %637 = vmatprep.subr.mxu0 0.0
        %638 = vmatpush2.msra.mxu0 0.0
        %639 = vmatprep.subr.mxu0 0.0
        %640 = vmatpush2.msra.mxu0 0.0
        %641 = vmatprep.subr.mxu0 0.0
        %642 = vmatpush2.msra.mxu0 0.0
        %643 = vmatprep.subr.mxu0 0.0
        %644 = vmatpush2.msra.mxu0 0.0
        %645 = vmatprep.subr.mxu0 0.0
        %646 = vmatpush2.msra.mxu0 0.0
        %647 = vmatprep.mubr.f32.mxu0 0.0
        %648 = vmatmul.mubr.f32.gmra.mxu0 %v574
        %v649 = vpop.f32.mrf.mxu0
        %v650 = vadd.f32 0.0, %v649
        %v651 = vpop.f32.mrf.mxu0
        %652 = vmatprep.mubr.f32.mxu0 0.0
        %653 = vmatmul.mubr.f32.gmra.mxu0 %v577
        %v654 = vpop.f32.mrf.mxu0
        %v655 = vadd.f32 0.0, %v654
        %v656 = vpop.f32.mrf.mxu0
        %657 = vdwg.mxu0
        %v659 = vsel %vm393, %v569, 0
        %v662 = vsel %vm393, %v570, 0
        %v665 = vsel %vm579, %v373, 0
        %667 = vmatprep.subr.mxu0 0.0
        %668 = vmatpush1.msra.mxu0 0.0
        %669 = vmatprep.subr.mxu0 0.0
        %670 = vmatpush1.msra.mxu0 0.0
        %671 = vmatprep.subr.mxu0 0.0
        %672 = vmatpush1.msra.mxu0 0.0
        %673 = vmatprep.subr.mxu0 0.0
        %674 = vmatpush1.msra.mxu0 0.0
        %675 = vmatprep.subr.mxu0 0.0
        %676 = vmatpush1.msra.mxu0 0.0
        %677 = vmatprep.subr.mxu0 0.0
        %678 = vmatpush1.msra.mxu0 0.0
        %679 = vmatprep.subr.mxu0 0.0
        %680 = vmatpush1.msra.mxu0 0.0
        %681 = vmatprep.subr.mxu0 0.0
        %682 = vmatpush1.msra.mxu0 0.0
        %683 = vmatprep.subr.mxu0 0.0
        %684 = vmatpush1.msra.mxu0 0.0
        %685 = vmatprep.subr.mxu0 0.0
        %686 = vmatpush1.msra.mxu0 0.0
        %687 = vmatprep.subr.mxu0 0.0
        %688 = vmatpush1.msra.mxu0 0.0
        %689 = vmatprep.subr.mxu0 0.0
        %690 = vmatpush1.msra.mxu0 0.0
        %691 = vmatprep.subr.mxu0 0.0
        %692 = vmatpush1.msra.mxu0 0.0
        %693 = vmatprep.subr.mxu0 0.0
        %694 = vmatpush1.msra.mxu0 0.0
        %695 = vmatprep.subr.mxu0 0.0
        %696 = vmatpush1.msra.mxu0 0.0
        %697 = vmatprep.subr.mxu0 0.0
        %698 = vmatpush1.msra.mxu0 %v665
        %699 = vmatprep.subr.mxu0 0.0
        %700 = vmatpush2.msra.mxu0 0.0
        %701 = vmatprep.subr.mxu0 0.0
        %702 = vmatpush2.msra.mxu0 0.0
        %703 = vmatprep.subr.mxu0 0.0
        %704 = vmatpush2.msra.mxu0 0.0
        %705 = vmatprep.subr.mxu0 0.0
        %706 = vmatpush2.msra.mxu0 0.0
        %707 = vmatprep.subr.mxu0 0.0
        %708 = vmatpush2.msra.mxu0 0.0
        %709 = vmatprep.subr.mxu0 0.0
        %710 = vmatpush2.msra.mxu0 0.0
        %711 = vmatprep.subr.mxu0 0.0
        %712 = vmatpush2.msra.mxu0 0.0
        %713 = vmatprep.subr.mxu0 0.0
        %714 = vmatpush2.msra.mxu0 0.0
        %715 = vmatprep.subr.mxu0 0.0
        %716 = vmatpush2.msra.mxu0 0.0
        %717 = vmatprep.subr.mxu0 0.0
        %718 = vmatpush2.msra.mxu0 0.0
        %719 = vmatprep.subr.mxu0 0.0
        %720 = vmatpush2.msra.mxu0 0.0
        %721 = vmatprep.subr.mxu0 0.0
        %722 = vmatpush2.msra.mxu0 0.0
        %723 = vmatprep.subr.mxu0 0.0
        %724 = vmatpush2.msra.mxu0 0.0
        %725 = vmatprep.subr.mxu0 0.0
        %726 = vmatpush2.msra.mxu0 0.0
        %727 = vmatprep.subr.mxu0 0.0
        %728 = vmatpush2.msra.mxu0 0.0
        %729 = vmatprep.subr.mxu0 0.0
        %730 = vmatpush2.msra.mxu0 0.0
        %731 = vmatprep.mubr.f32.mxu0 0.0
        %732 = vmatmul.mubr.f32.gmra.mxu0 %v659
        %v733 = vpop.f32.mrf.mxu0
        %v734 = vadd.f32 %v650, %v733
        %v735 = vpop.f32.mrf.mxu0
        %736 = vmatprep.mubr.f32.mxu0 0.0
        %737 = vmatmul.mubr.f32.gmra.mxu0 %v662
        %v738 = vpop.f32.mrf.mxu0
        %v739 = vadd.f32 %v655, %v738
        %v740 = vpop.f32.mrf.mxu0
        %741 = vdwg.mxu0
        %v742 = vld [vmem:[%s568 + $0x2] sm:$0xff]
        %v743 = vld [vmem:[%s568 + $0xa] sm:$0xff]
        %v745 = vsel %vm393, %v742, 0
        %v748 = vsel %vm393, %v743, 0
        %v751 = vsel %vm579, %v375, 0
        %753 = vmatprep.subr.mxu0 0.0
        %754 = vmatpush1.msra.mxu0 0.0
        %755 = vmatprep.subr.mxu0 0.0
        %756 = vmatpush1.msra.mxu0 0.0
        %757 = vmatprep.subr.mxu0 0.0
        %758 = vmatpush1.msra.mxu0 0.0
        %759 = vmatprep.subr.mxu0 0.0
        %760 = vmatpush1.msra.mxu0 0.0
        %761 = vmatprep.subr.mxu0 0.0
        %762 = vmatpush1.msra.mxu0 0.0
        %763 = vmatprep.subr.mxu0 0.0
        %764 = vmatpush1.msra.mxu0 0.0
        %765 = vmatprep.subr.mxu0 0.0
        %766 = vmatpush1.msra.mxu0 0.0
        %767 = vmatprep.subr.mxu0 0.0
        %768 = vmatpush1.msra.mxu0 0.0
        %769 = vmatprep.subr.mxu0 0.0
        %770 = vmatpush1.msra.mxu0 0.0
        %771 = vmatprep.subr.mxu0 0.0
        %772 = vmatpush1.msra.mxu0 0.0
        %773 = vmatprep.subr.mxu0 0.0
        %774 = vmatpush1.msra.mxu0 0.0
        %775 = vmatprep.subr.mxu0 0.0
        %776 = vmatpush1.msra.mxu0 0.0
        %777 = vmatprep.subr.mxu0 0.0
        %778 = vmatpush1.msra.mxu0 0.0
        %779 = vmatprep.subr.mxu0 0.0
        %780 = vmatpush1.msra.mxu0 0.0
        %781 = vmatprep.subr.mxu0 0.0
        %782 = vmatpush1.msra.mxu0 0.0
        %783 = vmatprep.subr.mxu0 0.0
        %784 = vmatpush1.msra.mxu0 %v751
        %785 = vmatprep.subr.mxu0 0.0
        %786 = vmatpush2.msra.mxu0 0.0
        %787 = vmatprep.subr.mxu0 0.0
        %788 = vmatpush2.msra.mxu0 0.0
        %789 = vmatprep.subr.mxu0 0.0
        %790 = vmatpush2.msra.mxu0 0.0
        %791 = vmatprep.subr.mxu0 0.0
        %792 = vmatpush2.msra.mxu0 0.0
        %793 = vmatprep.subr.mxu0 0.0
        %794 = vmatpush2.msra.mxu0 0.0
        %795 = vmatprep.subr.mxu0 0.0
        %796 = vmatpush2.msra.mxu0 0.0
        %797 = vmatprep.subr.mxu0 0.0
        %798 = vmatpush2.msra.mxu0 0.0
        %799 = vmatprep.subr.mxu0 0.0
        %800 = vmatpush2.msra.mxu0 0.0
        %801 = vmatprep.subr.mxu0 0.0
        %802 = vmatpush2.msra.mxu0 0.0
        %803 = vmatprep.subr.mxu0 0.0
        %804 = vmatpush2.msra.mxu0 0.0
        %805 = vmatprep.subr.mxu0 0.0
        %806 = vmatpush2.msra.mxu0 0.0
        %807 = vmatprep.subr.mxu0 0.0
        %808 = vmatpush2.msra.mxu0 0.0
        %809 = vmatprep.subr.mxu0 0.0
        %810 = vmatpush2.msra.mxu0 0.0
        %811 = vmatprep.subr.mxu0 0.0
        %812 = vmatpush2.msra.mxu0 0.0
        %813 = vmatprep.subr.mxu0 0.0
        %814 = vmatpush2.msra.mxu0 0.0
        %815 = vmatprep.subr.mxu0 0.0
        %816 = vmatpush2.msra.mxu0 0.0
        %817 = vmatprep.mubr.f32.mxu0 0.0
        %818 = vmatmul.mubr.f32.gmra.mxu0 %v745
        %v819 = vpop.f32.mrf.mxu0
        %v820 = vadd.f32 0.0, %v819
        %v821 = vpop.f32.mrf.mxu0
        %822 = vmatprep.mubr.f32.mxu0 0.0
        %823 = vmatmul.mubr.f32.gmra.mxu0 %v748
        %v824 = vpop.f32.mrf.mxu0
        %v825 = vadd.f32 0.0, %v824
        %v826 = vpop.f32.mrf.mxu0
        %827 = vdwg.mxu0
        %v828 = vadd.f32 %v734, %v820
        %v829 = vadd.f32 %v739, %v825
        %s830 = sadd.s32 %s562, 1
        %s831 = smul.u32 %s830, 24
        %s832 = scalar_lea.vmem [#allocation2], %s831
        %v833 = vld [vmem:[%s832] sm:$0xff]
        %v834 = vld [vmem:[%s832 + $0x8] sm:$0xff]
        %v836 = vsel %vm393, %v833, 0
        %v839 = vsel %vm393, %v834, 0
        %v842 = vsel %vm579, %v376, 0
        %844 = vmatprep.subr.mxu0 0.0
        %845 = vmatpush1.msra.mxu0 0.0
        %846 = vmatprep.subr.mxu0 0.0
        %847 = vmatpush1.msra.mxu0 0.0
        %848 = vmatprep.subr.mxu0 0.0
        %849 = vmatpush1.msra.mxu0 0.0
        %850 = vmatprep.subr.mxu0 0.0
        %851 = vmatpush1.msra.mxu0 0.0
        %852 = vmatprep.subr.mxu0 0.0
        %853 = vmatpush1.msra.mxu0 0.0
        %854 = vmatprep.subr.mxu0 0.0
        %855 = vmatpush1.msra.mxu0 0.0
        %856 = vmatprep.subr.mxu0 0.0
        %857 = vmatpush1.msra.mxu0 0.0
        %858 = vmatprep.subr.mxu0 0.0
        %859 = vmatpush1.msra.mxu0 0.0
        %860 = vmatprep.subr.mxu0 0.0
        %861 = vmatpush1.msra.mxu0 0.0
        %862 = vmatprep.subr.mxu0 0.0
        %863 = vmatpush1.msra.mxu0 0.0
        %864 = vmatprep.subr.mxu0 0.0
        %865 = vmatpush1.msra.mxu0 0.0
        %866 = vmatprep.subr.mxu0 0.0
        %867 = vmatpush1.msra.mxu0 0.0
        %868 = vmatprep.subr.mxu0 0.0
        %869 = vmatpush1.msra.mxu0 0.0
        %870 = vmatprep.subr.mxu0 0.0
        %871 = vmatpush1.msra.mxu0 0.0
        %872 = vmatprep.subr.mxu0 0.0
        %873 = vmatpush1.msra.mxu0 0.0
        %874 = vmatprep.subr.mxu0 0.0
        %875 = vmatpush1.msra.mxu0 %v842
        %876 = vmatprep.subr.mxu0 0.0
        %877 = vmatpush2.msra.mxu0 0.0
        %878 = vmatprep.subr.mxu0 0.0
        %879 = vmatpush2.msra.mxu0 0.0
        %880 = vmatprep.subr.mxu0 0.0
        %881 = vmatpush2.msra.mxu0 0.0
        %882 = vmatprep.subr.mxu0 0.0
        %883 = vmatpush2.msra.mxu0 0.0
        %884 = vmatprep.subr.mxu0 0.0
        %885 = vmatpush2.msra.mxu0 0.0
        %886 = vmatprep.subr.mxu0 0.0
        %887 = vmatpush2.msra.mxu0 0.0
        %888 = vmatprep.subr.mxu0 0.0
        %889 = vmatpush2.msra.mxu0 0.0
        %890 = vmatprep.subr.mxu0 0.0
        %891 = vmatpush2.msra.mxu0 0.0
        %892 = vmatprep.subr.mxu0 0.0
        %893 = vmatpush2.msra.mxu0 0.0
        %894 = vmatprep.subr.mxu0 0.0
        %895 = vmatpush2.msra.mxu0 0.0
        %896 = vmatprep.subr.mxu0 0.0
        %897 = vmatpush2.msra.mxu0 0.0
        %898 = vmatprep.subr.mxu0 0.0
        %899 = vmatpush2.msra.mxu0 0.0
        %900 = vmatprep.subr.mxu0 0.0
        %901 = vmatpush2.msra.mxu0 0.0
        %902 = vmatprep.subr.mxu0 0.0
        %903 = vmatpush2.msra.mxu0 0.0
        %904 = vmatprep.subr.mxu0 0.0
        %905 = vmatpush2.msra.mxu0 0.0
        %906 = vmatprep.subr.mxu0 0.0
        %907 = vmatpush2.msra.mxu0 0.0
        %908 = vmatprep.mubr.f32.mxu0 0.0
        %909 = vmatmul.mubr.f32.gmra.mxu0 %v836
        %v910 = vpop.f32.mrf.mxu0
        %v911 = vadd.f32 0.0, %v910
        %v912 = vpop.f32.mrf.mxu0
        %913 = vmatprep.mubr.f32.mxu0 0.0
        %914 = vmatmul.mubr.f32.gmra.mxu0 %v839
        %v915 = vpop.f32.mrf.mxu0
        %v916 = vadd.f32 0.0, %v915
        %v917 = vpop.f32.mrf.mxu0
        %918 = vdwg.mxu0
        %v919 = vadd.f32 %v828, %v911
        %v920 = vadd.f32 %v829, %v916
        %v921 = vld [vmem:[%s832 + $0x1] sm:$0xff]
        %v922 = vld [vmem:[%s832 + $0x9] sm:$0xff]
        %v924 = vsel %vm393, %v921, 0
        %v927 = vsel %vm393, %v922, 0
        %v930 = vsel %vm579, %v377, 0
        %932 = vmatprep.subr.mxu0 0.0
        %933 = vmatpush1.msra.mxu0 0.0
        %934 = vmatprep.subr.mxu0 0.0
        %935 = vmatpush1.msra.mxu0 0.0
        %936 = vmatprep.subr.mxu0 0.0
        %937 = vmatpush1.msra.mxu0 0.0
        %938 = vmatprep.subr.mxu0 0.0
        %939 = vmatpush1.msra.mxu0 0.0
        %940 = vmatprep.subr.mxu0 0.0
        %941 = vmatpush1.msra.mxu0 0.0
        %942 = vmatprep.subr.mxu0 0.0
        %943 = vmatpush1.msra.mxu0 0.0
        %944 = vmatprep.subr.mxu0 0.0
        %945 = vmatpush1.msra.mxu0 0.0
        %946 = vmatprep.subr.mxu0 0.0
        %947 = vmatpush1.msra.mxu0 0.0
        %948 = vmatprep.subr.mxu0 0.0
        %949 = vmatpush1.msra.mxu0 0.0
        %950 = vmatprep.subr.mxu0 0.0
        %951 = vmatpush1.msra.mxu0 0.0
        %952 = vmatprep.subr.mxu0 0.0
        %953 = vmatpush1.msra.mxu0 0.0
        %954 = vmatprep.subr.mxu0 0.0
        %955 = vmatpush1.msra.mxu0 0.0
        %956 = vmatprep.subr.mxu0 0.0
        %957 = vmatpush1.msra.mxu0 0.0
        %958 = vmatprep.subr.mxu0 0.0
        %959 = vmatpush1.msra.mxu0 0.0
        %960 = vmatprep.subr.mxu0 0.0
        %961 = vmatpush1.msra.mxu0 0.0
        %962 = vmatprep.subr.mxu0 0.0
        %963 = vmatpush1.msra.mxu0 %v930
        %964 = vmatprep.subr.mxu0 0.0
        %965 = vmatpush2.msra.mxu0 0.0
        %966 = vmatprep.subr.mxu0 0.0
        %967 = vmatpush2.msra.mxu0 0.0
        %968 = vmatprep.subr.mxu0 0.0
        %969 = vmatpush2.msra.mxu0 0.0
        %970 = vmatprep.subr.mxu0 0.0
        %971 = vmatpush2.msra.mxu0 0.0
        %972 = vmatprep.subr.mxu0 0.0
        %973 = vmatpush2.msra.mxu0 0.0
        %974 = vmatprep.subr.mxu0 0.0
        %975 = vmatpush2.msra.mxu0 0.0
        %976 = vmatprep.subr.mxu0 0.0
        %977 = vmatpush2.msra.mxu0 0.0
        %978 = vmatprep.subr.mxu0 0.0
        %979 = vmatpush2.msra.mxu0 0.0
        %980 = vmatprep.subr.mxu0 0.0
        %981 = vmatpush2.msra.mxu0 0.0
        %982 = vmatprep.subr.mxu0 0.0
        %983 = vmatpush2.msra.mxu0 0.0
        %984 = vmatprep.subr.mxu0 0.0
        %985 = vmatpush2.msra.mxu0 0.0
        %986 = vmatprep.subr.mxu0 0.0
        %987 = vmatpush2.msra.mxu0 0.0
        %988 = vmatprep.subr.mxu0 0.0
        %989 = vmatpush2.msra.mxu0 0.0
        %990 = vmatprep.subr.mxu0 0.0
        %991 = vmatpush2.msra.mxu0 0.0
        %992 = vmatprep.subr.mxu0 0.0
        %993 = vmatpush2.msra.mxu0 0.0
        %994 = vmatprep.subr.mxu0 0.0
        %995 = vmatpush2.msra.mxu0 0.0
        %996 = vmatprep.mubr.f32.mxu0 0.0
        %997 = vmatmul.mubr.f32.gmra.mxu0 %v924
        %v998 = vpop.f32.mrf.mxu0
        %v999 = vadd.f32 0.0, %v998
        %v1000 = vpop.f32.mrf.mxu0
        %1001 = vmatprep.mubr.f32.mxu0 0.0
        %1002 = vmatmul.mubr.f32.gmra.mxu0 %v927
        %v1003 = vpop.f32.mrf.mxu0
        %v1004 = vadd.f32 0.0, %v1003
        %v1005 = vpop.f32.mrf.mxu0
        %1006 = vdwg.mxu0
        %v1007 = vadd.f32 %v919, %v999
        %v1008 = vadd.f32 %v920, %v1004
        %v1009 = vld [vmem:[%s832 + $0x2] sm:$0xff]
        %v1010 = vld [vmem:[%s832 + $0xa] sm:$0xff]
        %v1012 = vsel %vm393, %v1009, 0
        %v1015 = vsel %vm393, %v1010, 0
        %v1018 = vsel %vm579, %v378, 0
        %1020 = vmatprep.subr.mxu0 0.0
        %1021 = vmatpush1.msra.mxu0 0.0
        %1022 = vmatprep.subr.mxu0 0.0
        %1023 = vmatpush1.msra.mxu0 0.0
        %1024 = vmatprep.subr.mxu0 0.0
        %1025 = vmatpush1.msra.mxu0 0.0
        %1026 = vmatprep.subr.mxu0 0.0
        %1027 = vmatpush1.msra.mxu0 0.0
        %1028 = vmatprep.subr.mxu0 0.0
        %1029 = vmatpush1.msra.mxu0 0.0
        %1030 = vmatprep.subr.mxu0 0.0
        %1031 = vmatpush1.msra.mxu0 0.0
        %1032 = vmatprep.subr.mxu0 0.0
        %1033 = vmatpush1.msra.mxu0 0.0
        %1034 = vmatprep.subr.mxu0 0.0
        %1035 = vmatpush1.msra.mxu0 0.0
        %1036 = vmatprep.subr.mxu0 0.0
        %1037 = vmatpush1.msra.mxu0 0.0
        %1038 = vmatprep.subr.mxu0 0.0
        %1039 = vmatpush1.msra.mxu0 0.0
        %1040 = vmatprep.subr.mxu0 0.0
        %1041 = vmatpush1.msra.mxu0 0.0
        %1042 = vmatprep.subr.mxu0 0.0
        %1043 = vmatpush1.msra.mxu0 0.0
        %1044 = vmatprep.subr.mxu0 0.0
        %1045 = vmatpush1.msra.mxu0 0.0
        %1046 = vmatprep.subr.mxu0 0.0
        %1047 = vmatpush1.msra.mxu0 0.0
        %1048 = vmatprep.subr.mxu0 0.0
        %1049 = vmatpush1.msra.mxu0 0.0
        %1050 = vmatprep.subr.mxu0 0.0
        %1051 = vmatpush1.msra.mxu0 %v1018
        %1052 = vmatprep.subr.mxu0 0.0
        %1053 = vmatpush2.msra.mxu0 0.0
        %1054 = vmatprep.subr.mxu0 0.0
        %1055 = vmatpush2.msra.mxu0 0.0
        %1056 = vmatprep.subr.mxu0 0.0
        %1057 = vmatpush2.msra.mxu0 0.0
        %1058 = vmatprep.subr.mxu0 0.0
        %1059 = vmatpush2.msra.mxu0 0.0
        %1060 = vmatprep.subr.mxu0 0.0
        %1061 = vmatpush2.msra.mxu0 0.0
        %1062 = vmatprep.subr.mxu0 0.0
        %1063 = vmatpush2.msra.mxu0 0.0
        %1064 = vmatprep.subr.mxu0 0.0
        %1065 = vmatpush2.msra.mxu0 0.0
        %1066 = vmatprep.subr.mxu0 0.0
        %1067 = vmatpush2.msra.mxu0 0.0
        %1068 = vmatprep.subr.mxu0 0.0
        %1069 = vmatpush2.msra.mxu0 0.0
        %1070 = vmatprep.subr.mxu0 0.0
        %1071 = vmatpush2.msra.mxu0 0.0
        %1072 = vmatprep.subr.mxu0 0.0
        %1073 = vmatpush2.msra.mxu0 0.0
        %1074 = vmatprep.subr.mxu0 0.0
        %1075 = vmatpush2.msra.mxu0 0.0
        %1076 = vmatprep.subr.mxu0 0.0
        %1077 = vmatpush2.msra.mxu0 0.0
        %1078 = vmatprep.subr.mxu0 0.0
        %1079 = vmatpush2.msra.mxu0 0.0
        %1080 = vmatprep.subr.mxu0 0.0
        %1081 = vmatpush2.msra.mxu0 0.0
        %1082 = vmatprep.subr.mxu0 0.0
        %1083 = vmatpush2.msra.mxu0 0.0
        %1084 = vmatprep.mubr.f32.mxu0 0.0
        %1085 = vmatmul.mubr.f32.gmra.mxu0 %v1012
        %v1086 = vpop.f32.mrf.mxu0
        %v1087 = vadd.f32 0.0, %v1086
        %v1088 = vpop.f32.mrf.mxu0
        %1089 = vmatprep.mubr.f32.mxu0 0.0
        %1090 = vmatmul.mubr.f32.gmra.mxu0 %v1015
        %v1091 = vpop.f32.mrf.mxu0
        %v1092 = vadd.f32 0.0, %v1091
        %v1093 = vpop.f32.mrf.mxu0
        %1094 = vdwg.mxu0
        %v1095 = vadd.f32 %v1007, %v1087
        %v1096 = vadd.f32 %v1008, %v1092
        %s1097 = sadd.s32 %s562, 2
        %s1098 = smul.u32 %s1097, 24
        %s1099 = scalar_lea.vmem [#allocation2], %s1098
        %v1100 = vld [vmem:[%s1099] sm:$0xff]
        %v1101 = vld [vmem:[%s1099 + $0x8] sm:$0xff]
        %v1103 = vsel %vm393, %v1100, 0
        %v1106 = vsel %vm393, %v1101, 0
        %v1109 = vsel %vm579, %v379, 0
        %1111 = vmatprep.subr.mxu0 0.0
        %1112 = vmatpush1.msra.mxu0 0.0
        %1113 = vmatprep.subr.mxu0 0.0
        %1114 = vmatpush1.msra.mxu0 0.0
        %1115 = vmatprep.subr.mxu0 0.0
        %1116 = vmatpush1.msra.mxu0 0.0
        %1117 = vmatprep.subr.mxu0 0.0
        %1118 = vmatpush1.msra.mxu0 0.0
        %1119 = vmatprep.subr.mxu0 0.0
        %1120 = vmatpush1.msra.mxu0 0.0
        %1121 = vmatprep.subr.mxu0 0.0
        %1122 = vmatpush1.msra.mxu0 0.0
        %1123 = vmatprep.subr.mxu0 0.0
        %1124 = vmatpush1.msra.mxu0 0.0
        %1125 = vmatprep.subr.mxu0 0.0
        %1126 = vmatpush1.msra.mxu0 0.0
        %1127 = vmatprep.subr.mxu0 0.0
        %1128 = vmatpush1.msra.mxu0 0.0
        %1129 = vmatprep.subr.mxu0 0.0
        %1130 = vmatpush1.msra.mxu0 0.0
        %1131 = vmatprep.subr.mxu0 0.0
        %1132 = vmatpush1.msra.mxu0 0.0
        %1133 = vmatprep.subr.mxu0 0.0
        %1134 = vmatpush1.msra.mxu0 0.0
        %1135 = vmatprep.subr.mxu0 0.0
        %1136 = vmatpush1.msra.mxu0 0.0
        %1137 = vmatprep.subr.mxu0 0.0
        %1138 = vmatpush1.msra.mxu0 0.0
        %1139 = vmatprep.subr.mxu0 0.0
        %1140 = vmatpush1.msra.mxu0 0.0
        %1141 = vmatprep.subr.mxu0 0.0
        %1142 = vmatpush1.msra.mxu0 %v1109
        %1143 = vmatprep.subr.mxu0 0.0
        %1144 = vmatpush2.msra.mxu0 0.0
        %1145 = vmatprep.subr.mxu0 0.0
        %1146 = vmatpush2.msra.mxu0 0.0
        %1147 = vmatprep.subr.mxu0 0.0
        %1148 = vmatpush2.msra.mxu0 0.0
        %1149 = vmatprep.subr.mxu0 0.0
        %1150 = vmatpush2.msra.mxu0 0.0
        %1151 = vmatprep.subr.mxu0 0.0
        %1152 = vmatpush2.msra.mxu0 0.0
        %1153 = vmatprep.subr.mxu0 0.0
        %1154 = vmatpush2.msra.mxu0 0.0
        %1155 = vmatprep.subr.mxu0 0.0
        %1156 = vmatpush2.msra.mxu0 0.0
        %1157 = vmatprep.subr.mxu0 0.0
        %1158 = vmatpush2.msra.mxu0 0.0
        %1159 = vmatprep.subr.mxu0 0.0
        %1160 = vmatpush2.msra.mxu0 0.0
        %1161 = vmatprep.subr.mxu0 0.0
        %1162 = vmatpush2.msra.mxu0 0.0
        %1163 = vmatprep.subr.mxu0 0.0
        %1164 = vmatpush2.msra.mxu0 0.0
        %1165 = vmatprep.subr.mxu0 0.0
        %1166 = vmatpush2.msra.mxu0 0.0
        %1167 = vmatprep.subr.mxu0 0.0
        %1168 = vmatpush2.msra.mxu0 0.0
        %1169 = vmatprep.subr.mxu0 0.0
        %1170 = vmatpush2.msra.mxu0 0.0
        %1171 = vmatprep.subr.mxu0 0.0
        %1172 = vmatpush2.msra.mxu0 0.0
        %1173 = vmatprep.subr.mxu0 0.0
        %1174 = vmatpush2.msra.mxu0 0.0
        %1175 = vmatprep.mubr.f32.mxu0 0.0
        %1176 = vmatmul.mubr.f32.gmra.mxu0 %v1103
        %v1177 = vpop.f32.mrf.mxu0
        %v1178 = vadd.f32 0.0, %v1177
        %v1179 = vpop.f32.mrf.mxu0
        %1180 = vmatprep.mubr.f32.mxu0 0.0
        %1181 = vmatmul.mubr.f32.gmra.mxu0 %v1106
        %v1182 = vpop.f32.mrf.mxu0
        %v1183 = vadd.f32 0.0, %v1182
        %v1184 = vpop.f32.mrf.mxu0
        %1185 = vdwg.mxu0
        %v1186 = vadd.f32 %v1095, %v1178
        %v1187 = vadd.f32 %v1096, %v1183
        %v1188 = vld [vmem:[%s1099 + $0x1] sm:$0xff]
        %v1189 = vld [vmem:[%s1099 + $0x9] sm:$0xff]
        %v1191 = vsel %vm393, %v1188, 0
        %v1194 = vsel %vm393, %v1189, 0
        %v1197 = vsel %vm579, %v380, 0
        %1199 = vmatprep.subr.mxu0 0.0
        %1200 = vmatpush1.msra.mxu0 0.0
        %1201 = vmatprep.subr.mxu0 0.0
        %1202 = vmatpush1.msra.mxu0 0.0
        %1203 = vmatprep.subr.mxu0 0.0
        %1204 = vmatpush1.msra.mxu0 0.0
        %1205 = vmatprep.subr.mxu0 0.0
        %1206 = vmatpush1.msra.mxu0 0.0
        %1207 = vmatprep.subr.mxu0 0.0
        %1208 = vmatpush1.msra.mxu0 0.0
        %1209 = vmatprep.subr.mxu0 0.0
        %1210 = vmatpush1.msra.mxu0 0.0
        %1211 = vmatprep.subr.mxu0 0.0
        %1212 = vmatpush1.msra.mxu0 0.0
        %1213 = vmatprep.subr.mxu0 0.0
        %1214 = vmatpush1.msra.mxu0 0.0
        %1215 = vmatprep.subr.mxu0 0.0
        %1216 = vmatpush1.msra.mxu0 0.0
        %1217 = vmatprep.subr.mxu0 0.0
        %1218 = vmatpush1.msra.mxu0 0.0
        %1219 = vmatprep.subr.mxu0 0.0
        %1220 = vmatpush1.msra.mxu0 0.0
        %1221 = vmatprep.subr.mxu0 0.0
        %1222 = vmatpush1.msra.mxu0 0.0
        %1223 = vmatprep.subr.mxu0 0.0
        %1224 = vmatpush1.msra.mxu0 0.0
        %1225 = vmatprep.subr.mxu0 0.0
        %1226 = vmatpush1.msra.mxu0 0.0
        %1227 = vmatprep.subr.mxu0 0.0
        %1228 = vmatpush1.msra.mxu0 0.0
        %1229 = vmatprep.subr.mxu0 0.0
        %1230 = vmatpush1.msra.mxu0 %v1197
        %1231 = vmatprep.subr.mxu0 0.0
        %1232 = vmatpush2.msra.mxu0 0.0
        %1233 = vmatprep.subr.mxu0 0.0
        %1234 = vmatpush2.msra.mxu0 0.0
        %1235 = vmatprep.subr.mxu0 0.0
        %1236 = vmatpush2.msra.mxu0 0.0
        %1237 = vmatprep.subr.mxu0 0.0
        %1238 = vmatpush2.msra.mxu0 0.0
        %1239 = vmatprep.subr.mxu0 0.0
        %1240 = vmatpush2.msra.mxu0 0.0
        %1241 = vmatprep.subr.mxu0 0.0
        %1242 = vmatpush2.msra.mxu0 0.0
        %1243 = vmatprep.subr.mxu0 0.0
        %1244 = vmatpush2.msra.mxu0 0.0
        %1245 = vmatprep.subr.mxu0 0.0
        %1246 = vmatpush2.msra.mxu0 0.0
        %1247 = vmatprep.subr.mxu0 0.0
        %1248 = vmatpush2.msra.mxu0 0.0
        %1249 = vmatprep.subr.mxu0 0.0
        %1250 = vmatpush2.msra.mxu0 0.0
        %1251 = vmatprep.subr.mxu0 0.0
        %1252 = vmatpush2.msra.mxu0 0.0
        %1253 = vmatprep.subr.mxu0 0.0
        %1254 = vmatpush2.msra.mxu0 0.0
        %1255 = vmatprep.subr.mxu0 0.0
        %1256 = vmatpush2.msra.mxu0 0.0
        %1257 = vmatprep.subr.mxu0 0.0
        %1258 = vmatpush2.msra.mxu0 0.0
        %1259 = vmatprep.subr.mxu0 0.0
        %1260 = vmatpush2.msra.mxu0 0.0
        %1261 = vmatprep.subr.mxu0 0.0
        %1262 = vmatpush2.msra.mxu0 0.0
        %1263 = vmatprep.mubr.f32.mxu0 0.0
        %1264 = vmatmul.mubr.f32.gmra.mxu0 %v1191
        %v1265 = vpop.f32.mrf.mxu0
        %v1266 = vadd.f32 0.0, %v1265
        %v1267 = vpop.f32.mrf.mxu0
        %1268 = vmatprep.mubr.f32.mxu0 0.0
        %1269 = vmatmul.mubr.f32.gmra.mxu0 %v1194
        %v1270 = vpop.f32.mrf.mxu0
        %v1271 = vadd.f32 0.0, %v1270
        %v1272 = vpop.f32.mrf.mxu0
        %1273 = vdwg.mxu0
        %v1274 = vadd.f32 %v1186, %v1266
        %v1275 = vadd.f32 %v1187, %v1271
        %v1276 = vld [vmem:[%s1099 + $0x2] sm:$0xff]
        %v1277 = vld [vmem:[%s1099 + $0xa] sm:$0xff]
        %v1279 = vsel %vm393, %v1276, 0
        %v1282 = vsel %vm393, %v1277, 0
        %v1285 = vsel %vm579, %v381, 0
        %1287 = vmatprep.subr.mxu0 0.0
        %1288 = vmatpush1.msra.mxu0 0.0
        %1289 = vmatprep.subr.mxu0 0.0
        %1290 = vmatpush1.msra.mxu0 0.0
        %1291 = vmatprep.subr.mxu0 0.0
        %1292 = vmatpush1.msra.mxu0 0.0
        %1293 = vmatprep.subr.mxu0 0.0
        %1294 = vmatpush1.msra.mxu0 0.0
        %1295 = vmatprep.subr.mxu0 0.0
        %1296 = vmatpush1.msra.mxu0 0.0
        %1297 = vmatprep.subr.mxu0 0.0
        %1298 = vmatpush1.msra.mxu0 0.0
        %1299 = vmatprep.subr.mxu0 0.0
        %1300 = vmatpush1.msra.mxu0 0.0
        %1301 = vmatprep.subr.mxu0 0.0
        %1302 = vmatpush1.msra.mxu0 0.0
        %1303 = vmatprep.subr.mxu0 0.0
        %1304 = vmatpush1.msra.mxu0 0.0
        %1305 = vmatprep.subr.mxu0 0.0
        %1306 = vmatpush1.msra.mxu0 0.0
        %1307 = vmatprep.subr.mxu0 0.0
        %1308 = vmatpush1.msra.mxu0 0.0
        %1309 = vmatprep.subr.mxu0 0.0
        %1310 = vmatpush1.msra.mxu0 0.0
        %1311 = vmatprep.subr.mxu0 0.0
        %1312 = vmatpush1.msra.mxu0 0.0
        %1313 = vmatprep.subr.mxu0 0.0
        %1314 = vmatpush1.msra.mxu0 0.0
        %1315 = vmatprep.subr.mxu0 0.0
        %1316 = vmatpush1.msra.mxu0 0.0
        %1317 = vmatprep.subr.mxu0 0.0
        %1318 = vmatpush1.msra.mxu0 %v1285
        %1319 = vmatprep.subr.mxu0 0.0
        %1320 = vmatpush2.msra.mxu0 0.0
        %1321 = vmatprep.subr.mxu0 0.0
        %1322 = vmatpush2.msra.mxu0 0.0
        %1323 = vmatprep.subr.mxu0 0.0
        %1324 = vmatpush2.msra.mxu0 0.0
        %1325 = vmatprep.subr.mxu0 0.0
        %1326 = vmatpush2.msra.mxu0 0.0
        %1327 = vmatprep.subr.mxu0 0.0
        %1328 = vmatpush2.msra.mxu0 0.0
        %1329 = vmatprep.subr.mxu0 0.0
        %1330 = vmatpush2.msra.mxu0 0.0
        %1331 = vmatprep.subr.mxu0 0.0
        %1332 = vmatpush2.msra.mxu0 0.0
        %1333 = vmatprep.subr.mxu0 0.0
        %1334 = vmatpush2.msra.mxu0 0.0
        %1335 = vmatprep.subr.mxu0 0.0
        %1336 = vmatpush2.msra.mxu0 0.0
        %1337 = vmatprep.subr.mxu0 0.0
        %1338 = vmatpush2.msra.mxu0 0.0
        %1339 = vmatprep.subr.mxu0 0.0
        %1340 = vmatpush2.msra.mxu0 0.0
        %1341 = vmatprep.subr.mxu0 0.0
        %1342 = vmatpush2.msra.mxu0 0.0
        %1343 = vmatprep.subr.mxu0 0.0
        %1344 = vmatpush2.msra.mxu0 0.0
        %1345 = vmatprep.subr.mxu0 0.0
        %1346 = vmatpush2.msra.mxu0 0.0
        %1347 = vmatprep.subr.mxu0 0.0
        %1348 = vmatpush2.msra.mxu0 0.0
        %1349 = vmatprep.subr.mxu0 0.0
        %1350 = vmatpush2.msra.mxu0 0.0
        %1351 = vmatprep.mubr.f32.mxu0 0.0
        %1352 = vmatmul.mubr.f32.gmra.mxu0 %v1279
        %v1353 = vpop.f32.mrf.mxu0
        %v1354 = vadd.f32 0.0, %v1353
        %v1355 = vpop.f32.mrf.mxu0
        %1356 = vmatprep.mubr.f32.mxu0 0.0
        %1357 = vmatmul.mubr.f32.gmra.mxu0 %v1282
        %v1358 = vpop.f32.mrf.mxu0
        %v1359 = vadd.f32 0.0, %v1358
        %v1360 = vpop.f32.mrf.mxu0
        %1361 = vdwg.mxu0
        %v1362 = vadd.f32 %v1274, %v1354
        %v1363 = vadd.f32 %v1275, %v1359
        %v1365 = vlaneseq
        %v1366 = vshrl.u32 %v1365, 7
        %v1367 = vsub.s32 0, %v1366
        %v1368 = vrot.slane %v382, %v1367
        %v1370 = vadd.f32 %v1362, %v1368
        %v1371 = vadd.f32 %v1363, %v1368
        %vm1372 = vcmp.ge.f32.partialorder %v1370, 0.0
        %vm1373 = vcmp.ge.f32.partialorder %v1371, 0.0
        %v1374 = vmul.f32 %v1370, 0.2
        %v1375 = vmul.f32 %v1371, 0.2
        %v1376 = vsel %vm1372, %v1370, %v1374
        %v1377 = vsel %vm1373, %v1371, %v1375
        %s1378 = smul.u32 %s562, 16
        %s1379 = scalar_lea.vmem [#allocation3], %s1378
        %vm1380 = vcmask 64512
        %1381 = vst.msk [vmem:[%s1379] sm:$0xff] %vm1380, %v1376
        %1382 = vst.msk [vmem:[%s1379 + $0x8] sm:$0xff] %vm1380, %v1377
      $region72: #{reduction_v4a.1} parent=59 // loop_footer
        %s566 = sadd.s32 1, %s562
      $region73: #{reduction_v4a.1} parent=59 // loop_footer_branch
        %561 = sbr.rel target = $region69
      $region74: #{reduction_v4a.1} parent=59 // loop_exit
        _
      loop: start=0, step=1, limit=7
      $region75: #{reduction_v4a.1} parent=59 // loop_pre_header
        _
      $region76: #{reduction_v4a.1} parent=59 // loop_header
        %s1384 = sphi 0, %s1388
        %p1385 = scmp.ge.s32.totalorder %s1384, 7
      $region77: #{reduction_v4a.1} parent=59 // loop_header_branch
        %1387 = sbr.rel (%p1385) target = $region81
      $region78: #{reduction_v4a.1} parent=59 // loop_body
        %s1389 = smul.u32 %s1384, 2
        %s1390 = smul.u32 %s1389, 16
        %s1391 = scalar_lea.vmem %s354, %s1390
        %v1392 = vld [vmem:[%s1391] sm:$0xff]
        %v1393 = vld [vmem:[%s1391 + $0x8] sm:$0x3f]
        %s1394 = scalar_lea.vmem [#allocation3], %s1390
        %v1395 = vld [vmem:[%s1394] sm:$0xff]
        %v1396 = vld [vmem:[%s1394 + $0x8] sm:$0x3f]
        %v1397 = vld [vmem:[%s1391 + $0x1] sm:$0xff]
        %v1398 = vld [vmem:[%s1391 + $0x9] sm:$0x3f]
        %v1399 = vld [vmem:[%s1394 + $0x1] sm:$0xff]
        %v1400 = vld [vmem:[%s1394 + $0x9] sm:$0x3f]
        %v1402 = vsel %vm393, %v1397, 0
        %v1405 = vsel %vm393, %v1398, 0
        %vm1407 = vcmask 1043456
        %v1409 = vsel %vm1407, %v362, 0
        %1411 = vmatprep.subr.mxu0 0.0
        %1412 = vmatpush1.msra.mxu0 0.0
        %1413 = vmatprep.subr.mxu0 0.0
        %1414 = vmatpush1.msra.mxu0 0.0
        %1415 = vmatprep.subr.mxu0 0.0
        %1416 = vmatpush1.msra.mxu0 0.0
        %1417 = vmatprep.subr.mxu0 0.0
        %1418 = vmatpush1.msra.mxu0 0.0
        %1419 = vmatprep.subr.mxu0 0.0
        %1420 = vmatpush1.msra.mxu0 0.0
        %1421 = vmatprep.subr.mxu0 0.0
        %1422 = vmatpush1.msra.mxu0 0.0
        %1423 = vmatprep.subr.mxu0 0.0
        %1424 = vmatpush1.msra.mxu0 0.0
        %1425 = vmatprep.subr.mxu0 0.0
        %1426 = vmatpush1.msra.mxu0 0.0
        %1427 = vmatprep.subr.mxu0 0.0
        %1428 = vmatpush1.msra.mxu0 0.0
        %1429 = vmatprep.subr.mxu0 0.0
        %1430 = vmatpush1.msra.mxu0 0.0
        %1431 = vmatprep.subr.mxu0 0.0
        %1432 = vmatpush1.msra.mxu0 0.0
        %1433 = vmatprep.subr.mxu0 0.0
        %1434 = vmatpush1.msra.mxu0 0.0
        %1435 = vmatprep.subr.mxu0 0.0
        %1436 = vmatpush1.msra.mxu0 0.0
        %1437 = vmatprep.subr.mxu0 0.0
        %1438 = vmatpush1.msra.mxu0 0.0
        %1439 = vmatprep.subr.mxu0 0.0
        %1440 = vmatpush1.msra.mxu0 0.0
        %1441 = vmatprep.subr.mxu0 0.0
        %1442 = vmatpush1.msra.mxu0 %v1409
        %1443 = vmatprep.subr.mxu0 0.0
        %1444 = vmatpush2.msra.mxu0 0.0
        %1445 = vmatprep.subr.mxu0 0.0
        %1446 = vmatpush2.msra.mxu0 0.0
        %1447 = vmatprep.subr.mxu0 0.0
        %1448 = vmatpush2.msra.mxu0 0.0
        %1449 = vmatprep.subr.mxu0 0.0
        %1450 = vmatpush2.msra.mxu0 0.0
        %1451 = vmatprep.subr.mxu0 0.0
        %1452 = vmatpush2.msra.mxu0 0.0
        %1453 = vmatprep.subr.mxu0 0.0
        %1454 = vmatpush2.msra.mxu0 0.0
        %1455 = vmatprep.subr.mxu0 0.0
        %1456 = vmatpush2.msra.mxu0 0.0
        %1457 = vmatprep.subr.mxu0 0.0
        %1458 = vmatpush2.msra.mxu0 0.0
        %1459 = vmatprep.subr.mxu0 0.0
        %1460 = vmatpush2.msra.mxu0 0.0
        %1461 = vmatprep.subr.mxu0 0.0
        %1462 = vmatpush2.msra.mxu0 0.0
        %1463 = vmatprep.subr.mxu0 0.0
        %1464 = vmatpush2.msra.mxu0 0.0
        %1465 = vmatprep.subr.mxu0 0.0
        %1466 = vmatpush2.msra.mxu0 0.0
        %1467 = vmatprep.subr.mxu0 0.0
        %1468 = vmatpush2.msra.mxu0 0.0
        %1469 = vmatprep.subr.mxu0 0.0
        %1470 = vmatpush2.msra.mxu0 0.0
        %1471 = vmatprep.subr.mxu0 0.0
        %1472 = vmatpush2.msra.mxu0 0.0
        %1473 = vmatprep.subr.mxu0 0.0
        %1474 = vmatpush2.msra.mxu0 0.0
        %1475 = vmatprep.mubr.f32.mxu0 0.0
        %1476 = vmatmul.mubr.f32.gmra.mxu0 %v1402
        %v1477 = vpop.f32.mrf.mxu0
        %v1478 = vadd.f32 0.0, %v1477
        %v1479 = vpop.f32.mrf.mxu0
        %1480 = vmatprep.mubr.f32.mxu0 0.0
        %1481 = vmatmul.mubr.f32.gmra.mxu0 %v1405
        %v1482 = vpop.f32.mrf.mxu0
        %v1483 = vadd.f32 0.0, %v1482
        %v1484 = vpop.f32.mrf.mxu0
        %1485 = vdwg.mxu0
        %vm1486 = vcmask 64512
        %v1488 = vsel %vm1486, %v1399, 0
        %v1491 = vsel %vm1486, %v1400, 0
        %1493 = vmatprep.subr.mxu0 0.0
        %1494 = vmatpush1.msra.mxu0 0.0
        %1495 = vmatprep.subr.mxu0 0.0
        %1496 = vmatpush1.msra.mxu0 0.0
        %1497 = vmatprep.subr.mxu0 0.0
        %1498 = vmatpush1.msra.mxu0 0.0
        %1499 = vmatprep.subr.mxu0 0.0
        %1500 = vmatpush1.msra.mxu0 0.0
        %1501 = vmatprep.subr.mxu0 0.0
        %1502 = vmatpush1.msra.mxu0 0.0
        %1503 = vmatprep.subr.mxu0 0.0
        %1504 = vmatpush1.msra.mxu0 0.0
        %1505 = vmatprep.subr.mxu0 0.0
        %1506 = vmatpush1.msra.mxu0 0.0
        %1507 = vmatprep.subr.mxu0 0.0
        %1508 = vmatpush1.msra.mxu0 0.0
        %1509 = vmatprep.subr.mxu0 0.0
        %1510 = vmatpush1.msra.mxu0 0.0
        %1511 = vmatprep.subr.mxu0 0.0
        %1512 = vmatpush1.msra.mxu0 0.0
        %1513 = vmatprep.subr.mxu0 0.0
        %1514 = vmatpush1.msra.mxu0 0.0
        %1515 = vmatprep.subr.mxu0 0.0
        %1516 = vmatpush1.msra.mxu0 0.0
        %1517 = vmatprep.subr.mxu0 0.0
        %1518 = vmatpush1.msra.mxu0 0.0
        %1519 = vmatprep.subr.mxu0 0.0
        %1520 = vmatpush1.msra.mxu0 0.0
        %1521 = vmatprep.subr.mxu0 0.0
        %1522 = vmatpush1.msra.mxu0 0.0
        %1523 = vmatprep.subr.mxu0 0.0
        %1524 = vmatpush1.msra.mxu0 %v384
        %1525 = vmatprep.subr.mxu0 0.0
        %1526 = vmatpush2.msra.mxu0 0.0
        %1527 = vmatprep.subr.mxu0 0.0
        %1528 = vmatpush2.msra.mxu0 0.0
        %1529 = vmatprep.subr.mxu0 0.0
        %1530 = vmatpush2.msra.mxu0 0.0
        %1531 = vmatprep.subr.mxu0 0.0
        %1532 = vmatpush2.msra.mxu0 0.0
        %1533 = vmatprep.subr.mxu0 0.0
        %1534 = vmatpush2.msra.mxu0 0.0
        %1535 = vmatprep.subr.mxu0 0.0
        %1536 = vmatpush2.msra.mxu0 0.0
        %1537 = vmatprep.subr.mxu0 0.0
        %1538 = vmatpush2.msra.mxu0 0.0
        %1539 = vmatprep.subr.mxu0 0.0
        %1540 = vmatpush2.msra.mxu0 0.0
        %1541 = vmatprep.subr.mxu0 0.0
        %1542 = vmatpush2.msra.mxu0 0.0
        %1543 = vmatprep.subr.mxu0 0.0
        %1544 = vmatpush2.msra.mxu0 0.0
        %1545 = vmatprep.subr.mxu0 0.0
        %1546 = vmatpush2.msra.mxu0 0.0
        %1547 = vmatprep.subr.mxu0 0.0
        %1548 = vmatpush2.msra.mxu0 0.0
        %1549 = vmatprep.subr.mxu0 0.0
        %1550 = vmatpush2.msra.mxu0 0.0
        %1551 = vmatprep.subr.mxu0 0.0
        %1552 = vmatpush2.msra.mxu0 0.0
        %1553 = vmatprep.subr.mxu0 0.0
        %1554 = vmatpush2.msra.mxu0 0.0
        %1555 = vmatprep.subr.mxu0 0.0
        %1556 = vmatpush2.msra.mxu0 0.0
        %1557 = vmatprep.mubr.f32.mxu0 0.0
        %1558 = vmatmul.mubr.f32.gmra.mxu0 %v1488
        %v1559 = vpop.f32.mrf.mxu0
        %v1560 = vadd.f32 0.0, %v1559
        %v1561 = vpop.f32.mrf.mxu0
        %1562 = vmatprep.mubr.f32.mxu0 0.0
        %1563 = vmatmul.mubr.f32.gmra.mxu0 %v1491
        %v1564 = vpop.f32.mrf.mxu0
        %v1565 = vadd.f32 0.0, %v1564
        %v1566 = vpop.f32.mrf.mxu0
        %1567 = vdwg.mxu0
        %v1569 = vsel %vm393, %v1392, 0
        %v1572 = vsel %vm393, %v1393, 0
        %v1575 = vsel %vm1407, %v361, 0
        %1577 = vmatprep.subr.mxu0 0.0
        %1578 = vmatpush1.msra.mxu0 0.0
        %1579 = vmatprep.subr.mxu0 0.0
        %1580 = vmatpush1.msra.mxu0 0.0
        %1581 = vmatprep.subr.mxu0 0.0
        %1582 = vmatpush1.msra.mxu0 0.0
        %1583 = vmatprep.subr.mxu0 0.0
        %1584 = vmatpush1.msra.mxu0 0.0
        %1585 = vmatprep.subr.mxu0 0.0
        %1586 = vmatpush1.msra.mxu0 0.0
        %1587 = vmatprep.subr.mxu0 0.0
        %1588 = vmatpush1.msra.mxu0 0.0
        %1589 = vmatprep.subr.mxu0 0.0
        %1590 = vmatpush1.msra.mxu0 0.0
        %1591 = vmatprep.subr.mxu0 0.0
        %1592 = vmatpush1.msra.mxu0 0.0
        %1593 = vmatprep.subr.mxu0 0.0
        %1594 = vmatpush1.msra.mxu0 0.0
        %1595 = vmatprep.subr.mxu0 0.0
        %1596 = vmatpush1.msra.mxu0 0.0
        %1597 = vmatprep.subr.mxu0 0.0
        %1598 = vmatpush1.msra.mxu0 0.0
        %1599 = vmatprep.subr.mxu0 0.0
        %1600 = vmatpush1.msra.mxu0 0.0
        %1601 = vmatprep.subr.mxu0 0.0
        %1602 = vmatpush1.msra.mxu0 0.0
        %1603 = vmatprep.subr.mxu0 0.0
        %1604 = vmatpush1.msra.mxu0 0.0
        %1605 = vmatprep.subr.mxu0 0.0
        %1606 = vmatpush1.msra.mxu0 0.0
        %1607 = vmatprep.subr.mxu0 0.0
        %1608 = vmatpush1.msra.mxu0 %v1575
        %1609 = vmatprep.subr.mxu0 0.0
        %1610 = vmatpush2.msra.mxu0 0.0
        %1611 = vmatprep.subr.mxu0 0.0
        %1612 = vmatpush2.msra.mxu0 0.0
        %1613 = vmatprep.subr.mxu0 0.0
        %1614 = vmatpush2.msra.mxu0 0.0
        %1615 = vmatprep.subr.mxu0 0.0
        %1616 = vmatpush2.msra.mxu0 0.0
        %1617 = vmatprep.subr.mxu0 0.0
        %1618 = vmatpush2.msra.mxu0 0.0
        %1619 = vmatprep.subr.mxu0 0.0
        %1620 = vmatpush2.msra.mxu0 0.0
        %1621 = vmatprep.subr.mxu0 0.0
        %1622 = vmatpush2.msra.mxu0 0.0
        %1623 = vmatprep.subr.mxu0 0.0
        %1624 = vmatpush2.msra.mxu0 0.0
        %1625 = vmatprep.subr.mxu0 0.0
        %1626 = vmatpush2.msra.mxu0 0.0
        %1627 = vmatprep.subr.mxu0 0.0
        %1628 = vmatpush2.msra.mxu0 0.0
        %1629 = vmatprep.subr.mxu0 0.0
        %1630 = vmatpush2.msra.mxu0 0.0
        %1631 = vmatprep.subr.mxu0 0.0
        %1632 = vmatpush2.msra.mxu0 0.0
        %1633 = vmatprep.subr.mxu0 0.0
        %1634 = vmatpush2.msra.mxu0 0.0
        %1635 = vmatprep.subr.mxu0 0.0
        %1636 = vmatpush2.msra.mxu0 0.0
        %1637 = vmatprep.subr.mxu0 0.0
        %1638 = vmatpush2.msra.mxu0 0.0
        %1639 = vmatprep.subr.mxu0 0.0
        %1640 = vmatpush2.msra.mxu0 0.0
        %1641 = vmatprep.mubr.f32.mxu0 0.0
        %1642 = vmatmul.mubr.f32.gmra.mxu0 %v1569
        %v1643 = vpop.f32.mrf.mxu0
        %v1644 = vadd.f32 %v1478, %v1643
        %v1645 = vpop.f32.mrf.mxu0
        %1646 = vmatprep.mubr.f32.mxu0 0.0
        %1647 = vmatmul.mubr.f32.gmra.mxu0 %v1572
        %v1648 = vpop.f32.mrf.mxu0
        %v1649 = vadd.f32 %v1483, %v1648
        %v1650 = vpop.f32.mrf.mxu0
        %1651 = vdwg.mxu0
        %v1653 = vsel %vm1486, %v1395, 0
        %v1656 = vsel %vm1486, %v1396, 0
        %1658 = vmatprep.subr.mxu0 0.0
        %1659 = vmatpush1.msra.mxu0 0.0
        %1660 = vmatprep.subr.mxu0 0.0
        %1661 = vmatpush1.msra.mxu0 0.0
        %1662 = vmatprep.subr.mxu0 0.0
        %1663 = vmatpush1.msra.mxu0 0.0
        %1664 = vmatprep.subr.mxu0 0.0
        %1665 = vmatpush1.msra.mxu0 0.0
        %1666 = vmatprep.subr.mxu0 0.0
        %1667 = vmatpush1.msra.mxu0 0.0
        %1668 = vmatprep.subr.mxu0 0.0
        %1669 = vmatpush1.msra.mxu0 0.0
        %1670 = vmatprep.subr.mxu0 0.0
        %1671 = vmatpush1.msra.mxu0 0.0
        %1672 = vmatprep.subr.mxu0 0.0
        %1673 = vmatpush1.msra.mxu0 0.0
        %1674 = vmatprep.subr.mxu0 0.0
        %1675 = vmatpush1.msra.mxu0 0.0
        %1676 = vmatprep.subr.mxu0 0.0
        %1677 = vmatpush1.msra.mxu0 0.0
        %1678 = vmatprep.subr.mxu0 0.0
        %1679 = vmatpush1.msra.mxu0 0.0
        %1680 = vmatprep.subr.mxu0 0.0
        %1681 = vmatpush1.msra.mxu0 0.0
        %1682 = vmatprep.subr.mxu0 0.0
        %1683 = vmatpush1.msra.mxu0 0.0
        %1684 = vmatprep.subr.mxu0 0.0
        %1685 = vmatpush1.msra.mxu0 0.0
        %1686 = vmatprep.subr.mxu0 0.0
        %1687 = vmatpush1.msra.mxu0 0.0
        %1688 = vmatprep.subr.mxu0 0.0
        %1689 = vmatpush1.msra.mxu0 %v383
        %1690 = vmatprep.subr.mxu0 0.0
        %1691 = vmatpush2.msra.mxu0 0.0
        %1692 = vmatprep.subr.mxu0 0.0
        %1693 = vmatpush2.msra.mxu0 0.0
        %1694 = vmatprep.subr.mxu0 0.0
        %1695 = vmatpush2.msra.mxu0 0.0
        %1696 = vmatprep.subr.mxu0 0.0
        %1697 = vmatpush2.msra.mxu0 0.0
        %1698 = vmatprep.subr.mxu0 0.0
        %1699 = vmatpush2.msra.mxu0 0.0
        %1700 = vmatprep.subr.mxu0 0.0
        %1701 = vmatpush2.msra.mxu0 0.0
        %1702 = vmatprep.subr.mxu0 0.0
        %1703 = vmatpush2.msra.mxu0 0.0
        %1704 = vmatprep.subr.mxu0 0.0
        %1705 = vmatpush2.msra.mxu0 0.0
        %1706 = vmatprep.subr.mxu0 0.0
        %1707 = vmatpush2.msra.mxu0 0.0
        %1708 = vmatprep.subr.mxu0 0.0
        %1709 = vmatpush2.msra.mxu0 0.0
        %1710 = vmatprep.subr.mxu0 0.0
        %1711 = vmatpush2.msra.mxu0 0.0
        %1712 = vmatprep.subr.mxu0 0.0
        %1713 = vmatpush2.msra.mxu0 0.0
        %1714 = vmatprep.subr.mxu0 0.0
        %1715 = vmatpush2.msra.mxu0 0.0
        %1716 = vmatprep.subr.mxu0 0.0
        %1717 = vmatpush2.msra.mxu0 0.0
        %1718 = vmatprep.subr.mxu0 0.0
        %1719 = vmatpush2.msra.mxu0 0.0
        %1720 = vmatprep.subr.mxu0 0.0
        %1721 = vmatpush2.msra.mxu0 0.0
        %1722 = vmatprep.mubr.f32.mxu0 0.0
        %1723 = vmatmul.mubr.f32.gmra.mxu0 %v1653
        %v1724 = vpop.f32.mrf.mxu0
        %v1725 = vadd.f32 %v1560, %v1724
        %v1726 = vpop.f32.mrf.mxu0
        %1727 = vmatprep.mubr.f32.mxu0 0.0
        %1728 = vmatmul.mubr.f32.gmra.mxu0 %v1656
        %v1729 = vpop.f32.mrf.mxu0
        %v1730 = vadd.f32 %v1565, %v1729
        %v1731 = vpop.f32.mrf.mxu0
        %1732 = vdwg.mxu0
        %v1733 = vld [vmem:[%s1391 + $0x2] sm:$0xff]
        %v1734 = vld [vmem:[%s1391 + $0xa] sm:$0x3f]
        %v1735 = vld [vmem:[%s1394 + $0x2] sm:$0xff]
        %v1736 = vld [vmem:[%s1394 + $0xa] sm:$0x3f]
        %v1738 = vsel %vm393, %v1733, 0
        %v1741 = vsel %vm393, %v1734, 0
        %v1744 = vsel %vm1407, %v363, 0
        %1746 = vmatprep.subr.mxu0 0.0
        %1747 = vmatpush1.msra.mxu0 0.0
        %1748 = vmatprep.subr.mxu0 0.0
        %1749 = vmatpush1.msra.mxu0 0.0
        %1750 = vmatprep.subr.mxu0 0.0
        %1751 = vmatpush1.msra.mxu0 0.0
        %1752 = vmatprep.subr.mxu0 0.0
        %1753 = vmatpush1.msra.mxu0 0.0
        %1754 = vmatprep.subr.mxu0 0.0
        %1755 = vmatpush1.msra.mxu0 0.0
        %1756 = vmatprep.subr.mxu0 0.0
        %1757 = vmatpush1.msra.mxu0 0.0
        %1758 = vmatprep.subr.mxu0 0.0
        %1759 = vmatpush1.msra.mxu0 0.0
        %1760 = vmatprep.subr.mxu0 0.0
        %1761 = vmatpush1.msra.mxu0 0.0
        %1762 = vmatprep.subr.mxu0 0.0
        %1763 = vmatpush1.msra.mxu0 0.0
        %1764 = vmatprep.subr.mxu0 0.0
        %1765 = vmatpush1.msra.mxu0 0.0
        %1766 = vmatprep.subr.mxu0 0.0
        %1767 = vmatpush1.msra.mxu0 0.0
        %1768 = vmatprep.subr.mxu0 0.0
        %1769 = vmatpush1.msra.mxu0 0.0
        %1770 = vmatprep.subr.mxu0 0.0
        %1771 = vmatpush1.msra.mxu0 0.0
        %1772 = vmatprep.subr.mxu0 0.0
        %1773 = vmatpush1.msra.mxu0 0.0
        %1774 = vmatprep.subr.mxu0 0.0
        %1775 = vmatpush1.msra.mxu0 0.0
        %1776 = vmatprep.subr.mxu0 0.0
        %1777 = vmatpush1.msra.mxu0 %v1744
        %1778 = vmatprep.subr.mxu0 0.0
        %1779 = vmatpush2.msra.mxu0 0.0
        %1780 = vmatprep.subr.mxu0 0.0
        %1781 = vmatpush2.msra.mxu0 0.0
        %1782 = vmatprep.subr.mxu0 0.0
        %1783 = vmatpush2.msra.mxu0 0.0
        %1784 = vmatprep.subr.mxu0 0.0
        %1785 = vmatpush2.msra.mxu0 0.0
        %1786 = vmatprep.subr.mxu0 0.0
        %1787 = vmatpush2.msra.mxu0 0.0
        %1788 = vmatprep.subr.mxu0 0.0
        %1789 = vmatpush2.msra.mxu0 0.0
        %1790 = vmatprep.subr.mxu0 0.0
        %1791 = vmatpush2.msra.mxu0 0.0
        %1792 = vmatprep.subr.mxu0 0.0
        %1793 = vmatpush2.msra.mxu0 0.0
        %1794 = vmatprep.subr.mxu0 0.0
        %1795 = vmatpush2.msra.mxu0 0.0
        %1796 = vmatprep.subr.mxu0 0.0
        %1797 = vmatpush2.msra.mxu0 0.0
        %1798 = vmatprep.subr.mxu0 0.0
        %1799 = vmatpush2.msra.mxu0 0.0
        %1800 = vmatprep.subr.mxu0 0.0
        %1801 = vmatpush2.msra.mxu0 0.0
        %1802 = vmatprep.subr.mxu0 0.0
        %1803 = vmatpush2.msra.mxu0 0.0
        %1804 = vmatprep.subr.mxu0 0.0
        %1805 = vmatpush2.msra.mxu0 0.0
        %1806 = vmatprep.subr.mxu0 0.0
        %1807 = vmatpush2.msra.mxu0 0.0
        %1808 = vmatprep.subr.mxu0 0.0
        %1809 = vmatpush2.msra.mxu0 0.0
        %1810 = vmatprep.mubr.f32.mxu0 0.0
        %1811 = vmatmul.mubr.f32.gmra.mxu0 %v1738
        %v1812 = vpop.f32.mrf.mxu0
        %v1813 = vadd.f32 0.0, %v1812
        %v1814 = vpop.f32.mrf.mxu0
        %1815 = vmatprep.mubr.f32.mxu0 0.0
        %1816 = vmatmul.mubr.f32.gmra.mxu0 %v1741
        %v1817 = vpop.f32.mrf.mxu0
        %v1818 = vadd.f32 0.0, %v1817
        %v1819 = vpop.f32.mrf.mxu0
        %1820 = vdwg.mxu0
        %v1822 = vsel %vm1486, %v1735, 0
        %v1825 = vsel %vm1486, %v1736, 0
        %1827 = vmatprep.subr.mxu0 0.0
        %1828 = vmatpush1.msra.mxu0 0.0
        %1829 = vmatprep.subr.mxu0 0.0
        %1830 = vmatpush1.msra.mxu0 0.0
        %1831 = vmatprep.subr.mxu0 0.0
        %1832 = vmatpush1.msra.mxu0 0.0
        %1833 = vmatprep.subr.mxu0 0.0
        %1834 = vmatpush1.msra.mxu0 0.0
        %1835 = vmatprep.subr.mxu0 0.0
        %1836 = vmatpush1.msra.mxu0 0.0
        %1837 = vmatprep.subr.mxu0 0.0
        %1838 = vmatpush1.msra.mxu0 0.0
        %1839 = vmatprep.subr.mxu0 0.0
        %1840 = vmatpush1.msra.mxu0 0.0
        %1841 = vmatprep.subr.mxu0 0.0
        %1842 = vmatpush1.msra.mxu0 0.0
        %1843 = vmatprep.subr.mxu0 0.0
        %1844 = vmatpush1.msra.mxu0 0.0
        %1845 = vmatprep.subr.mxu0 0.0
        %1846 = vmatpush1.msra.mxu0 0.0
        %1847 = vmatprep.subr.mxu0 0.0
        %1848 = vmatpush1.msra.mxu0 0.0
        %1849 = vmatprep.subr.mxu0 0.0
        %1850 = vmatpush1.msra.mxu0 0.0
        %1851 = vmatprep.subr.mxu0 0.0
        %1852 = vmatpush1.msra.mxu0 0.0
        %1853 = vmatprep.subr.mxu0 0.0
        %1854 = vmatpush1.msra.mxu0 0.0
        %1855 = vmatprep.subr.mxu0 0.0
        %1856 = vmatpush1.msra.mxu0 0.0
        %1857 = vmatprep.subr.mxu0 0.0
        %1858 = vmatpush1.msra.mxu0 %v385
        %1859 = vmatprep.subr.mxu0 0.0
        %1860 = vmatpush2.msra.mxu0 0.0
        %1861 = vmatprep.subr.mxu0 0.0
        %1862 = vmatpush2.msra.mxu0 0.0
        %1863 = vmatprep.subr.mxu0 0.0
        %1864 = vmatpush2.msra.mxu0 0.0
        %1865 = vmatprep.subr.mxu0 0.0
        %1866 = vmatpush2.msra.mxu0 0.0
        %1867 = vmatprep.subr.mxu0 0.0
        %1868 = vmatpush2.msra.mxu0 0.0
        %1869 = vmatprep.subr.mxu0 0.0
        %1870 = vmatpush2.msra.mxu0 0.0
        %1871 = vmatprep.subr.mxu0 0.0
        %1872 = vmatpush2.msra.mxu0 0.0
        %1873 = vmatprep.subr.mxu0 0.0
        %1874 = vmatpush2.msra.mxu0 0.0
        %1875 = vmatprep.subr.mxu0 0.0
        %1876 = vmatpush2.msra.mxu0 0.0
        %1877 = vmatprep.subr.mxu0 0.0
        %1878 = vmatpush2.msra.mxu0 0.0
        %1879 = vmatprep.subr.mxu0 0.0
        %1880 = vmatpush2.msra.mxu0 0.0
        %1881 = vmatprep.subr.mxu0 0.0
        %1882 = vmatpush2.msra.mxu0 0.0
        %1883 = vmatprep.subr.mxu0 0.0
        %1884 = vmatpush2.msra.mxu0 0.0
        %1885 = vmatprep.subr.mxu0 0.0
        %1886 = vmatpush2.msra.mxu0 0.0
        %1887 = vmatprep.subr.mxu0 0.0
        %1888 = vmatpush2.msra.mxu0 0.0
        %1889 = vmatprep.subr.mxu0 0.0
        %1890 = vmatpush2.msra.mxu0 0.0
        %1891 = vmatprep.mubr.f32.mxu0 0.0
        %1892 = vmatmul.mubr.f32.gmra.mxu0 %v1822
        %v1893 = vpop.f32.mrf.mxu0
        %v1894 = vadd.f32 0.0, %v1893
        %v1895 = vpop.f32.mrf.mxu0
        %1896 = vmatprep.mubr.f32.mxu0 0.0
        %1897 = vmatmul.mubr.f32.gmra.mxu0 %v1825
        %v1898 = vpop.f32.mrf.mxu0
        %v1899 = vadd.f32 0.0, %v1898
        %v1900 = vpop.f32.mrf.mxu0
        %1901 = vdwg.mxu0
        %v1902 = vadd.f32 %v1644, %v1813
        %v1903 = vadd.f32 %v1649, %v1818
        %v1904 = vadd.f32 %v1725, %v1894
        %v1905 = vadd.f32 %v1730, %v1899
        %s1906 = sadd.s32 %s1389, 1
        %s1907 = smul.u32 %s1906, 16
        %s1908 = scalar_lea.vmem %s354, %s1907
        %v1909 = vld [vmem:[%s1908] sm:$0xff]
        %v1910 = vld [vmem:[%s1908 + $0x8] sm:$0x3f]
        %s1911 = scalar_lea.vmem [#allocation3], %s1907
        %v1912 = vld [vmem:[%s1911] sm:$0xff]
        %v1913 = vld [vmem:[%s1911 + $0x8] sm:$0x3f]
        %v1915 = vsel %vm393, %v1909, 0
        %v1918 = vsel %vm393, %v1910, 0
        %v1921 = vsel %vm1407, %v364, 0
        %1923 = vmatprep.subr.mxu0 0.0
        %1924 = vmatpush1.msra.mxu0 0.0
        %1925 = vmatprep.subr.mxu0 0.0
        %1926 = vmatpush1.msra.mxu0 0.0
        %1927 = vmatprep.subr.mxu0 0.0
        %1928 = vmatpush1.msra.mxu0 0.0
        %1929 = vmatprep.subr.mxu0 0.0
        %1930 = vmatpush1.msra.mxu0 0.0
        %1931 = vmatprep.subr.mxu0 0.0
        %1932 = vmatpush1.msra.mxu0 0.0
        %1933 = vmatprep.subr.mxu0 0.0
        %1934 = vmatpush1.msra.mxu0 0.0
        %1935 = vmatprep.subr.mxu0 0.0
        %1936 = vmatpush1.msra.mxu0 0.0
        %1937 = vmatprep.subr.mxu0 0.0
        %1938 = vmatpush1.msra.mxu0 0.0
        %1939 = vmatprep.subr.mxu0 0.0
        %1940 = vmatpush1.msra.mxu0 0.0
        %1941 = vmatprep.subr.mxu0 0.0
        %1942 = vmatpush1.msra.mxu0 0.0
        %1943 = vmatprep.subr.mxu0 0.0
        %1944 = vmatpush1.msra.mxu0 0.0
        %1945 = vmatprep.subr.mxu0 0.0
        %1946 = vmatpush1.msra.mxu0 0.0
        %1947 = vmatprep.subr.mxu0 0.0
        %1948 = vmatpush1.msra.mxu0 0.0
        %1949 = vmatprep.subr.mxu0 0.0
        %1950 = vmatpush1.msra.mxu0 0.0
        %1951 = vmatprep.subr.mxu0 0.0
        %1952 = vmatpush1.msra.mxu0 0.0
        %1953 = vmatprep.subr.mxu0 0.0
        %1954 = vmatpush1.msra.mxu0 %v1921
        %1955 = vmatprep.subr.mxu0 0.0
        %1956 = vmatpush2.msra.mxu0 0.0
        %1957 = vmatprep.subr.mxu0 0.0
        %1958 = vmatpush2.msra.mxu0 0.0
        %1959 = vmatprep.subr.mxu0 0.0
        %1960 = vmatpush2.msra.mxu0 0.0
        %1961 = vmatprep.subr.mxu0 0.0
        %1962 = vmatpush2.msra.mxu0 0.0
        %1963 = vmatprep.subr.mxu0 0.0
        %1964 = vmatpush2.msra.mxu0 0.0
        %1965 = vmatprep.subr.mxu0 0.0
        %1966 = vmatpush2.msra.mxu0 0.0
        %1967 = vmatprep.subr.mxu0 0.0
        %1968 = vmatpush2.msra.mxu0 0.0
        %1969 = vmatprep.subr.mxu0 0.0
        %1970 = vmatpush2.msra.mxu0 0.0
        %1971 = vmatprep.subr.mxu0 0.0
        %1972 = vmatpush2.msra.mxu0 0.0
        %1973 = vmatprep.subr.mxu0 0.0
        %1974 = vmatpush2.msra.mxu0 0.0
        %1975 = vmatprep.subr.mxu0 0.0
        %1976 = vmatpush2.msra.mxu0 0.0
        %1977 = vmatprep.subr.mxu0 0.0
        %1978 = vmatpush2.msra.mxu0 0.0
        %1979 = vmatprep.subr.mxu0 0.0
        %1980 = vmatpush2.msra.mxu0 0.0
        %1981 = vmatprep.subr.mxu0 0.0
        %1982 = vmatpush2.msra.mxu0 0.0
        %1983 = vmatprep.subr.mxu0 0.0
        %1984 = vmatpush2.msra.mxu0 0.0
        %1985 = vmatprep.subr.mxu0 0.0
        %1986 = vmatpush2.msra.mxu0 0.0
        %1987 = vmatprep.mubr.f32.mxu0 0.0
        %1988 = vmatmul.mubr.f32.gmra.mxu0 %v1915
        %v1989 = vpop.f32.mrf.mxu0
        %v1990 = vadd.f32 0.0, %v1989
        %v1991 = vpop.f32.mrf.mxu0
        %1992 = vmatprep.mubr.f32.mxu0 0.0
        %1993 = vmatmul.mubr.f32.gmra.mxu0 %v1918
        %v1994 = vpop.f32.mrf.mxu0
        %v1995 = vadd.f32 0.0, %v1994
        %v1996 = vpop.f32.mrf.mxu0
        %1997 = vdwg.mxu0
        %v1999 = vsel %vm1486, %v1912, 0
        %v2002 = vsel %vm1486, %v1913, 0
        %2004 = vmatprep.subr.mxu0 0.0
        %2005 = vmatpush1.msra.mxu0 0.0
        %2006 = vmatprep.subr.mxu0 0.0
        %2007 = vmatpush1.msra.mxu0 0.0
        %2008 = vmatprep.subr.mxu0 0.0
        %2009 = vmatpush1.msra.mxu0 0.0
        %2010 = vmatprep.subr.mxu0 0.0
        %2011 = vmatpush1.msra.mxu0 0.0
        %2012 = vmatprep.subr.mxu0 0.0
        %2013 = vmatpush1.msra.mxu0 0.0
        %2014 = vmatprep.subr.mxu0 0.0
        %2015 = vmatpush1.msra.mxu0 0.0
        %2016 = vmatprep.subr.mxu0 0.0
        %2017 = vmatpush1.msra.mxu0 0.0
        %2018 = vmatprep.subr.mxu0 0.0
        %2019 = vmatpush1.msra.mxu0 0.0
        %2020 = vmatprep.subr.mxu0 0.0
        %2021 = vmatpush1.msra.mxu0 0.0
        %2022 = vmatprep.subr.mxu0 0.0
        %2023 = vmatpush1.msra.mxu0 0.0
        %2024 = vmatprep.subr.mxu0 0.0
        %2025 = vmatpush1.msra.mxu0 0.0
        %2026 = vmatprep.subr.mxu0 0.0
        %2027 = vmatpush1.msra.mxu0 0.0
        %2028 = vmatprep.subr.mxu0 0.0
        %2029 = vmatpush1.msra.mxu0 0.0
        %2030 = vmatprep.subr.mxu0 0.0
        %2031 = vmatpush1.msra.mxu0 0.0
        %2032 = vmatprep.subr.mxu0 0.0
        %2033 = vmatpush1.msra.mxu0 0.0
        %2034 = vmatprep.subr.mxu0 0.0
        %2035 = vmatpush1.msra.mxu0 %v386
        %2036 = vmatprep.subr.mxu0 0.0
        %2037 = vmatpush2.msra.mxu0 0.0
        %2038 = vmatprep.subr.mxu0 0.0
        %2039 = vmatpush2.msra.mxu0 0.0
        %2040 = vmatprep.subr.mxu0 0.0
        %2041 = vmatpush2.msra.mxu0 0.0
        %2042 = vmatprep.subr.mxu0 0.0
        %2043 = vmatpush2.msra.mxu0 0.0
        %2044 = vmatprep.subr.mxu0 0.0
        %2045 = vmatpush2.msra.mxu0 0.0
        %2046 = vmatprep.subr.mxu0 0.0
        %2047 = vmatpush2.msra.mxu0 0.0
        %2048 = vmatprep.subr.mxu0 0.0
        %2049 = vmatpush2.msra.mxu0 0.0
        %2050 = vmatprep.subr.mxu0 0.0
        %2051 = vmatpush2.msra.mxu0 0.0
        %2052 = vmatprep.subr.mxu0 0.0
        %2053 = vmatpush2.msra.mxu0 0.0
        %2054 = vmatprep.subr.mxu0 0.0
        %2055 = vmatpush2.msra.mxu0 0.0
        %2056 = vmatprep.subr.mxu0 0.0
        %2057 = vmatpush2.msra.mxu0 0.0
        %2058 = vmatprep.subr.mxu0 0.0
        %2059 = vmatpush2.msra.mxu0 0.0
        %2060 = vmatprep.subr.mxu0 0.0
        %2061 = vmatpush2.msra.mxu0 0.0
        %2062 = vmatprep.subr.mxu0 0.0
        %2063 = vmatpush2.msra.mxu0 0.0
        %2064 = vmatprep.subr.mxu0 0.0
        %2065 = vmatpush2.msra.mxu0 0.0
        %2066 = vmatprep.subr.mxu0 0.0
        %2067 = vmatpush2.msra.mxu0 0.0
        %2068 = vmatprep.mubr.f32.mxu0 0.0
        %2069 = vmatmul.mubr.f32.gmra.mxu0 %v1999
        %v2070 = vpop.f32.mrf.mxu0
        %v2071 = vadd.f32 0.0, %v2070
        %v2072 = vpop.f32.mrf.mxu0
        %2073 = vmatprep.mubr.f32.mxu0 0.0
        %2074 = vmatmul.mubr.f32.gmra.mxu0 %v2002
        %v2075 = vpop.f32.mrf.mxu0
        %v2076 = vadd.f32 0.0, %v2075
        %v2077 = vpop.f32.mrf.mxu0
        %2078 = vdwg.mxu0
        %v2079 = vadd.f32 %v1902, %v1990
        %v2080 = vadd.f32 %v1903, %v1995
        %v2081 = vadd.f32 %v1904, %v2071
        %v2082 = vadd.f32 %v1905, %v2076
        %v2083 = vld [vmem:[%s1908 + $0x1] sm:$0xff]
        %v2084 = vld [vmem:[%s1908 + $0x9] sm:$0x3f]
        %v2085 = vld [vmem:[%s1911 + $0x1] sm:$0xff]
        %v2086 = vld [vmem:[%s1911 + $0x9] sm:$0x3f]
        %v2088 = vsel %vm393, %v2083, 0
        %v2091 = vsel %vm393, %v2084, 0
        %v2094 = vsel %vm1407, %v365, 0
        %2096 = vmatprep.subr.mxu0 0.0
        %2097 = vmatpush1.msra.mxu0 0.0
        %2098 = vmatprep.subr.mxu0 0.0
        %2099 = vmatpush1.msra.mxu0 0.0
        %2100 = vmatprep.subr.mxu0 0.0
        %2101 = vmatpush1.msra.mxu0 0.0
        %2102 = vmatprep.subr.mxu0 0.0
        %2103 = vmatpush1.msra.mxu0 0.0
        %2104 = vmatprep.subr.mxu0 0.0
        %2105 = vmatpush1.msra.mxu0 0.0
        %2106 = vmatprep.subr.mxu0 0.0
        %2107 = vmatpush1.msra.mxu0 0.0
        %2108 = vmatprep.subr.mxu0 0.0
        %2109 = vmatpush1.msra.mxu0 0.0
        %2110 = vmatprep.subr.mxu0 0.0
        %2111 = vmatpush1.msra.mxu0 0.0
        %2112 = vmatprep.subr.mxu0 0.0
        %2113 = vmatpush1.msra.mxu0 0.0
        %2114 = vmatprep.subr.mxu0 0.0
        %2115 = vmatpush1.msra.mxu0 0.0
        %2116 = vmatprep.subr.mxu0 0.0
        %2117 = vmatpush1.msra.mxu0 0.0
        %2118 = vmatprep.subr.mxu0 0.0
        %2119 = vmatpush1.msra.mxu0 0.0
        %2120 = vmatprep.subr.mxu0 0.0
        %2121 = vmatpush1.msra.mxu0 0.0
        %2122 = vmatprep.subr.mxu0 0.0
        %2123 = vmatpush1.msra.mxu0 0.0
        %2124 = vmatprep.subr.mxu0 0.0
        %2125 = vmatpush1.msra.mxu0 0.0
        %2126 = vmatprep.subr.mxu0 0.0
        %2127 = vmatpush1.msra.mxu0 %v2094
        %2128 = vmatprep.subr.mxu0 0.0
        %2129 = vmatpush2.msra.mxu0 0.0
        %2130 = vmatprep.subr.mxu0 0.0
        %2131 = vmatpush2.msra.mxu0 0.0
        %2132 = vmatprep.subr.mxu0 0.0
        %2133 = vmatpush2.msra.mxu0 0.0
        %2134 = vmatprep.subr.mxu0 0.0
        %2135 = vmatpush2.msra.mxu0 0.0
        %2136 = vmatprep.subr.mxu0 0.0
        %2137 = vmatpush2.msra.mxu0 0.0
        %2138 = vmatprep.subr.mxu0 0.0
        %2139 = vmatpush2.msra.mxu0 0.0
        %2140 = vmatprep.subr.mxu0 0.0
        %2141 = vmatpush2.msra.mxu0 0.0
        %2142 = vmatprep.subr.mxu0 0.0
        %2143 = vmatpush2.msra.mxu0 0.0
        %2144 = vmatprep.subr.mxu0 0.0
        %2145 = vmatpush2.msra.mxu0 0.0
        %2146 = vmatprep.subr.mxu0 0.0
        %2147 = vmatpush2.msra.mxu0 0.0
        %2148 = vmatprep.subr.mxu0 0.0
        %2149 = vmatpush2.msra.mxu0 0.0
        %2150 = vmatprep.subr.mxu0 0.0
        %2151 = vmatpush2.msra.mxu0 0.0
        %2152 = vmatprep.subr.mxu0 0.0
        %2153 = vmatpush2.msra.mxu0 0.0
        %2154 = vmatprep.subr.mxu0 0.0
        %2155 = vmatpush2.msra.mxu0 0.0
        %2156 = vmatprep.subr.mxu0 0.0
        %2157 = vmatpush2.msra.mxu0 0.0
        %2158 = vmatprep.subr.mxu0 0.0
        %2159 = vmatpush2.msra.mxu0 0.0
        %2160 = vmatprep.mubr.f32.mxu0 0.0
        %2161 = vmatmul.mubr.f32.gmra.mxu0 %v2088
        %v2162 = vpop.f32.mrf.mxu0
        %v2163 = vadd.f32 0.0, %v2162
        %v2164 = vpop.f32.mrf.mxu0
        %2165 = vmatprep.mubr.f32.mxu0 0.0
        %2166 = vmatmul.mubr.f32.gmra.mxu0 %v2091
        %v2167 = vpop.f32.mrf.mxu0
        %v2168 = vadd.f32 0.0, %v2167
        %v2169 = vpop.f32.mrf.mxu0
        %2170 = vdwg.mxu0
        %v2172 = vsel %vm1486, %v2085, 0
        %v2175 = vsel %vm1486, %v2086, 0
        %2177 = vmatprep.subr.mxu0 0.0
        %2178 = vmatpush1.msra.mxu0 0.0
        %2179 = vmatprep.subr.mxu0 0.0
        %2180 = vmatpush1.msra.mxu0 0.0
        %2181 = vmatprep.subr.mxu0 0.0
        %2182 = vmatpush1.msra.mxu0 0.0
        %2183 = vmatprep.subr.mxu0 0.0
        %2184 = vmatpush1.msra.mxu0 0.0
        %2185 = vmatprep.subr.mxu0 0.0
        %2186 = vmatpush1.msra.mxu0 0.0
        %2187 = vmatprep.subr.mxu0 0.0
        %2188 = vmatpush1.msra.mxu0 0.0
        %2189 = vmatprep.subr.mxu0 0.0
        %2190 = vmatpush1.msra.mxu0 0.0
        %2191 = vmatprep.subr.mxu0 0.0
        %2192 = vmatpush1.msra.mxu0 0.0
        %2193 = vmatprep.subr.mxu0 0.0
        %2194 = vmatpush1.msra.mxu0 0.0
        %2195 = vmatprep.subr.mxu0 0.0
        %2196 = vmatpush1.msra.mxu0 0.0
        %2197 = vmatprep.subr.mxu0 0.0
        %2198 = vmatpush1.msra.mxu0 0.0
        %2199 = vmatprep.subr.mxu0 0.0
        %2200 = vmatpush1.msra.mxu0 0.0
        %2201 = vmatprep.subr.mxu0 0.0
        %2202 = vmatpush1.msra.mxu0 0.0
        %2203 = vmatprep.subr.mxu0 0.0
        %2204 = vmatpush1.msra.mxu0 0.0
        %2205 = vmatprep.subr.mxu0 0.0
        %2206 = vmatpush1.msra.mxu0 0.0
        %2207 = vmatprep.subr.mxu0 0.0
        %2208 = vmatpush1.msra.mxu0 %v387
        %2209 = vmatprep.subr.mxu0 0.0
        %2210 = vmatpush2.msra.mxu0 0.0
        %2211 = vmatprep.subr.mxu0 0.0
        %2212 = vmatpush2.msra.mxu0 0.0
        %2213 = vmatprep.subr.mxu0 0.0
        %2214 = vmatpush2.msra.mxu0 0.0
        %2215 = vmatprep.subr.mxu0 0.0
        %2216 = vmatpush2.msra.mxu0 0.0
        %2217 = vmatprep.subr.mxu0 0.0
        %2218 = vmatpush2.msra.mxu0 0.0
        %2219 = vmatprep.subr.mxu0 0.0
        %2220 = vmatpush2.msra.mxu0 0.0
        %2221 = vmatprep.subr.mxu0 0.0
        %2222 = vmatpush2.msra.mxu0 0.0
        %2223 = vmatprep.subr.mxu0 0.0
        %2224 = vmatpush2.msra.mxu0 0.0
        %2225 = vmatprep.subr.mxu0 0.0
        %2226 = vmatpush2.msra.mxu0 0.0
        %2227 = vmatprep.subr.mxu0 0.0
        %2228 = vmatpush2.msra.mxu0 0.0
        %2229 = vmatprep.subr.mxu0 0.0
        %2230 = vmatpush2.msra.mxu0 0.0
        %2231 = vmatprep.subr.mxu0 0.0
        %2232 = vmatpush2.msra.mxu0 0.0
        %2233 = vmatprep.subr.mxu0 0.0
        %2234 = vmatpush2.msra.mxu0 0.0
        %2235 = vmatprep.subr.mxu0 0.0
        %2236 = vmatpush2.msra.mxu0 0.0
        %2237 = vmatprep.subr.mxu0 0.0
        %2238 = vmatpush2.msra.mxu0 0.0
        %2239 = vmatprep.subr.mxu0 0.0
        %2240 = vmatpush2.msra.mxu0 0.0
        %2241 = vmatprep.mubr.f32.mxu0 0.0
        %2242 = vmatmul.mubr.f32.gmra.mxu0 %v2172
        %v2243 = vpop.f32.mrf.mxu0
        %v2244 = vadd.f32 0.0, %v2243
        %v2245 = vpop.f32.mrf.mxu0
        %2246 = vmatprep.mubr.f32.mxu0 0.0
        %2247 = vmatmul.mubr.f32.gmra.mxu0 %v2175
        %v2248 = vpop.f32.mrf.mxu0
        %v2249 = vadd.f32 0.0, %v2248
        %v2250 = vpop.f32.mrf.mxu0
        %2251 = vdwg.mxu0
        %v2252 = vadd.f32 %v2079, %v2163
        %v2253 = vadd.f32 %v2080, %v2168
        %v2254 = vadd.f32 %v2081, %v2244
        %v2255 = vadd.f32 %v2082, %v2249
        %v2256 = vld [vmem:[%s1908 + $0x2] sm:$0xff]
        %v2257 = vld [vmem:[%s1908 + $0xa] sm:$0x3f]
        %v2258 = vld [vmem:[%s1911 + $0x2] sm:$0xff]
        %v2259 = vld [vmem:[%s1911 + $0xa] sm:$0x3f]
        %v2261 = vsel %vm393, %v2256, 0
        %v2264 = vsel %vm393, %v2257, 0
        %v2267 = vsel %vm1407, %v366, 0
        %2269 = vmatprep.subr.mxu0 0.0
        %2270 = vmatpush1.msra.mxu0 0.0
        %2271 = vmatprep.subr.mxu0 0.0
        %2272 = vmatpush1.msra.mxu0 0.0
        %2273 = vmatprep.subr.mxu0 0.0
        %2274 = vmatpush1.msra.mxu0 0.0
        %2275 = vmatprep.subr.mxu0 0.0
        %2276 = vmatpush1.msra.mxu0 0.0
        %2277 = vmatprep.subr.mxu0 0.0
        %2278 = vmatpush1.msra.mxu0 0.0
        %2279 = vmatprep.subr.mxu0 0.0
        %2280 = vmatpush1.msra.mxu0 0.0
        %2281 = vmatprep.subr.mxu0 0.0
        %2282 = vmatpush1.msra.mxu0 0.0
        %2283 = vmatprep.subr.mxu0 0.0
        %2284 = vmatpush1.msra.mxu0 0.0
        %2285 = vmatprep.subr.mxu0 0.0
        %2286 = vmatpush1.msra.mxu0 0.0
        %2287 = vmatprep.subr.mxu0 0.0
        %2288 = vmatpush1.msra.mxu0 0.0
        %2289 = vmatprep.subr.mxu0 0.0
        %2290 = vmatpush1.msra.mxu0 0.0
        %2291 = vmatprep.subr.mxu0 0.0
        %2292 = vmatpush1.msra.mxu0 0.0
        %2293 = vmatprep.subr.mxu0 0.0
        %2294 = vmatpush1.msra.mxu0 0.0
        %2295 = vmatprep.subr.mxu0 0.0
        %2296 = vmatpush1.msra.mxu0 0.0
        %2297 = vmatprep.subr.mxu0 0.0
        %2298 = vmatpush1.msra.mxu0 0.0
        %2299 = vmatprep.subr.mxu0 0.0
        %2300 = vmatpush1.msra.mxu0 %v2267
        %2301 = vmatprep.subr.mxu0 0.0
        %2302 = vmatpush2.msra.mxu0 0.0
        %2303 = vmatprep.subr.mxu0 0.0
        %2304 = vmatpush2.msra.mxu0 0.0
        %2305 = vmatprep.subr.mxu0 0.0
        %2306 = vmatpush2.msra.mxu0 0.0
        %2307 = vmatprep.subr.mxu0 0.0
        %2308 = vmatpush2.msra.mxu0 0.0
        %2309 = vmatprep.subr.mxu0 0.0
        %2310 = vmatpush2.msra.mxu0 0.0
        %2311 = vmatprep.subr.mxu0 0.0
        %2312 = vmatpush2.msra.mxu0 0.0
        %2313 = vmatprep.subr.mxu0 0.0
        %2314 = vmatpush2.msra.mxu0 0.0
        %2315 = vmatprep.subr.mxu0 0.0
        %2316 = vmatpush2.msra.mxu0 0.0
        %2317 = vmatprep.subr.mxu0 0.0
        %2318 = vmatpush2.msra.mxu0 0.0
        %2319 = vmatprep.subr.mxu0 0.0
        %2320 = vmatpush2.msra.mxu0 0.0
        %2321 = vmatprep.subr.mxu0 0.0
        %2322 = vmatpush2.msra.mxu0 0.0
        %2323 = vmatprep.subr.mxu0 0.0
        %2324 = vmatpush2.msra.mxu0 0.0
        %2325 = vmatprep.subr.mxu0 0.0
        %2326 = vmatpush2.msra.mxu0 0.0
        %2327 = vmatprep.subr.mxu0 0.0
        %2328 = vmatpush2.msra.mxu0 0.0
        %2329 = vmatprep.subr.mxu0 0.0
        %2330 = vmatpush2.msra.mxu0 0.0
        %2331 = vmatprep.subr.mxu0 0.0
        %2332 = vmatpush2.msra.mxu0 0.0
        %2333 = vmatprep.mubr.f32.mxu0 0.0
        %2334 = vmatmul.mubr.f32.gmra.mxu0 %v2261
        %v2335 = vpop.f32.mrf.mxu0
        %v2336 = vadd.f32 0.0, %v2335
        %v2337 = vpop.f32.mrf.mxu0
        %2338 = vmatprep.mubr.f32.mxu0 0.0
        %2339 = vmatmul.mubr.f32.gmra.mxu0 %v2264
        %v2340 = vpop.f32.mrf.mxu0
        %v2341 = vadd.f32 0.0, %v2340
        %v2342 = vpop.f32.mrf.mxu0
        %2343 = vdwg.mxu0
        %v2345 = vsel %vm1486, %v2258, 0
        %v2348 = vsel %vm1486, %v2259, 0
        %2350 = vmatprep.subr.mxu0 0.0
        %2351 = vmatpush1.msra.mxu0 0.0
        %2352 = vmatprep.subr.mxu0 0.0
        %2353 = vmatpush1.msra.mxu0 0.0
        %2354 = vmatprep.subr.mxu0 0.0
        %2355 = vmatpush1.msra.mxu0 0.0
        %2356 = vmatprep.subr.mxu0 0.0
        %2357 = vmatpush1.msra.mxu0 0.0
        %2358 = vmatprep.subr.mxu0 0.0
        %2359 = vmatpush1.msra.mxu0 0.0
        %2360 = vmatprep.subr.mxu0 0.0
        %2361 = vmatpush1.msra.mxu0 0.0
        %2362 = vmatprep.subr.mxu0 0.0
        %2363 = vmatpush1.msra.mxu0 0.0
        %2364 = vmatprep.subr.mxu0 0.0
        %2365 = vmatpush1.msra.mxu0 0.0
        %2366 = vmatprep.subr.mxu0 0.0
        %2367 = vmatpush1.msra.mxu0 0.0
        %2368 = vmatprep.subr.mxu0 0.0
        %2369 = vmatpush1.msra.mxu0 0.0
        %2370 = vmatprep.subr.mxu0 0.0
        %2371 = vmatpush1.msra.mxu0 0.0
        %2372 = vmatprep.subr.mxu0 0.0
        %2373 = vmatpush1.msra.mxu0 0.0
        %2374 = vmatprep.subr.mxu0 0.0
        %2375 = vmatpush1.msra.mxu0 0.0
        %2376 = vmatprep.subr.mxu0 0.0
        %2377 = vmatpush1.msra.mxu0 0.0
        %2378 = vmatprep.subr.mxu0 0.0
        %2379 = vmatpush1.msra.mxu0 0.0
        %2380 = vmatprep.subr.mxu0 0.0
        %2381 = vmatpush1.msra.mxu0 %v388
        %2382 = vmatprep.subr.mxu0 0.0
        %2383 = vmatpush2.msra.mxu0 0.0
        %2384 = vmatprep.subr.mxu0 0.0
        %2385 = vmatpush2.msra.mxu0 0.0
        %2386 = vmatprep.subr.mxu0 0.0
        %2387 = vmatpush2.msra.mxu0 0.0
        %2388 = vmatprep.subr.mxu0 0.0
        %2389 = vmatpush2.msra.mxu0 0.0
        %2390 = vmatprep.subr.mxu0 0.0
        %2391 = vmatpush2.msra.mxu0 0.0
        %2392 = vmatprep.subr.mxu0 0.0
        %2393 = vmatpush2.msra.mxu0 0.0
        %2394 = vmatprep.subr.mxu0 0.0
        %2395 = vmatpush2.msra.mxu0 0.0
        %2396 = vmatprep.subr.mxu0 0.0
        %2397 = vmatpush2.msra.mxu0 0.0
        %2398 = vmatprep.subr.mxu0 0.0
        %2399 = vmatpush2.msra.mxu0 0.0
        %2400 = vmatprep.subr.mxu0 0.0
        %2401 = vmatpush2.msra.mxu0 0.0
        %2402 = vmatprep.subr.mxu0 0.0
        %2403 = vmatpush2.msra.mxu0 0.0
        %2404 = vmatprep.subr.mxu0 0.0
        %2405 = vmatpush2.msra.mxu0 0.0
        %2406 = vmatprep.subr.mxu0 0.0
        %2407 = vmatpush2.msra.mxu0 0.0
        %2408 = vmatprep.subr.mxu0 0.0
        %2409 = vmatpush2.msra.mxu0 0.0
        %2410 = vmatprep.subr.mxu0 0.0
        %2411 = vmatpush2.msra.mxu0 0.0
        %2412 = vmatprep.subr.mxu0 0.0
        %2413 = vmatpush2.msra.mxu0 0.0
        %2414 = vmatprep.mubr.f32.mxu0 0.0
        %2415 = vmatmul.mubr.f32.gmra.mxu0 %v2345
        %v2416 = vpop.f32.mrf.mxu0
        %v2417 = vadd.f32 0.0, %v2416
        %v2418 = vpop.f32.mrf.mxu0
        %2419 = vmatprep.mubr.f32.mxu0 0.0
        %2420 = vmatmul.mubr.f32.gmra.mxu0 %v2348
        %v2421 = vpop.f32.mrf.mxu0
        %v2422 = vadd.f32 0.0, %v2421
        %v2423 = vpop.f32.mrf.mxu0
        %2424 = vdwg.mxu0
        %v2425 = vadd.f32 %v2252, %v2336
        %v2426 = vadd.f32 %v2253, %v2341
        %v2427 = vadd.f32 %v2254, %v2417
        %v2428 = vadd.f32 %v2255, %v2422
        %s2429 = sadd.s32 %s1389, 2
        %s2430 = smul.u32 %s2429, 16
        %s2431 = scalar_lea.vmem %s354, %s2430
        %v2432 = vld [vmem:[%s2431] sm:$0xff]
        %v2433 = vld [vmem:[%s2431 + $0x8] sm:$0x3f]
        %s2434 = scalar_lea.vmem [#allocation3], %s2430
        %v2435 = vld [vmem:[%s2434] sm:$0xff]
        %v2436 = vld [vmem:[%s2434 + $0x8] sm:$0x3f]
        %v2438 = vsel %vm393, %v2432, 0
        %v2441 = vsel %vm393, %v2433, 0
        %v2444 = vsel %vm1407, %v367, 0
        %2446 = vmatprep.subr.mxu0 0.0
        %2447 = vmatpush1.msra.mxu0 0.0
        %2448 = vmatprep.subr.mxu0 0.0
        %2449 = vmatpush1.msra.mxu0 0.0
        %2450 = vmatprep.subr.mxu0 0.0
        %2451 = vmatpush1.msra.mxu0 0.0
        %2452 = vmatprep.subr.mxu0 0.0
        %2453 = vmatpush1.msra.mxu0 0.0
        %2454 = vmatprep.subr.mxu0 0.0
        %2455 = vmatpush1.msra.mxu0 0.0
        %2456 = vmatprep.subr.mxu0 0.0
        %2457 = vmatpush1.msra.mxu0 0.0
        %2458 = vmatprep.subr.mxu0 0.0
        %2459 = vmatpush1.msra.mxu0 0.0
        %2460 = vmatprep.subr.mxu0 0.0
        %2461 = vmatpush1.msra.mxu0 0.0
        %2462 = vmatprep.subr.mxu0 0.0
        %2463 = vmatpush1.msra.mxu0 0.0
        %2464 = vmatprep.subr.mxu0 0.0
        %2465 = vmatpush1.msra.mxu0 0.0
        %2466 = vmatprep.subr.mxu0 0.0
        %2467 = vmatpush1.msra.mxu0 0.0
        %2468 = vmatprep.subr.mxu0 0.0
        %2469 = vmatpush1.msra.mxu0 0.0
        %2470 = vmatprep.subr.mxu0 0.0
        %2471 = vmatpush1.msra.mxu0 0.0
        %2472 = vmatprep.subr.mxu0 0.0
        %2473 = vmatpush1.msra.mxu0 0.0
        %2474 = vmatprep.subr.mxu0 0.0
        %2475 = vmatpush1.msra.mxu0 0.0
        %2476 = vmatprep.subr.mxu0 0.0
        %2477 = vmatpush1.msra.mxu0 %v2444
        %2478 = vmatprep.subr.mxu0 0.0
        %2479 = vmatpush2.msra.mxu0 0.0
        %2480 = vmatprep.subr.mxu0 0.0
        %2481 = vmatpush2.msra.mxu0 0.0
        %2482 = vmatprep.subr.mxu0 0.0
        %2483 = vmatpush2.msra.mxu0 0.0
        %2484 = vmatprep.subr.mxu0 0.0
        %2485 = vmatpush2.msra.mxu0 0.0
        %2486 = vmatprep.subr.mxu0 0.0
        %2487 = vmatpush2.msra.mxu0 0.0
        %2488 = vmatprep.subr.mxu0 0.0
        %2489 = vmatpush2.msra.mxu0 0.0
        %2490 = vmatprep.subr.mxu0 0.0
        %2491 = vmatpush2.msra.mxu0 0.0
        %2492 = vmatprep.subr.mxu0 0.0
        %2493 = vmatpush2.msra.mxu0 0.0
        %2494 = vmatprep.subr.mxu0 0.0
        %2495 = vmatpush2.msra.mxu0 0.0
        %2496 = vmatprep.subr.mxu0 0.0
        %2497 = vmatpush2.msra.mxu0 0.0
        %2498 = vmatprep.subr.mxu0 0.0
        %2499 = vmatpush2.msra.mxu0 0.0
        %2500 = vmatprep.subr.mxu0 0.0
        %2501 = vmatpush2.msra.mxu0 0.0
        %2502 = vmatprep.subr.mxu0 0.0
        %2503 = vmatpush2.msra.mxu0 0.0
        %2504 = vmatprep.subr.mxu0 0.0
        %2505 = vmatpush2.msra.mxu0 0.0
        %2506 = vmatprep.subr.mxu0 0.0
        %2507 = vmatpush2.msra.mxu0 0.0
        %2508 = vmatprep.subr.mxu0 0.0
        %2509 = vmatpush2.msra.mxu0 0.0
        %2510 = vmatprep.mubr.f32.mxu0 0.0
        %2511 = vmatmul.mubr.f32.gmra.mxu0 %v2438
        %v2512 = vpop.f32.mrf.mxu0
        %v2513 = vadd.f32 0.0, %v2512
        %v2514 = vpop.f32.mrf.mxu0
        %2515 = vmatprep.mubr.f32.mxu0 0.0
        %2516 = vmatmul.mubr.f32.gmra.mxu0 %v2441
        %v2517 = vpop.f32.mrf.mxu0
        %v2518 = vadd.f32 0.0, %v2517
        %v2519 = vpop.f32.mrf.mxu0
        %2520 = vdwg.mxu0
        %v2522 = vsel %vm1486, %v2435, 0
        %v2525 = vsel %vm1486, %v2436, 0
        %2527 = vmatprep.subr.mxu0 0.0
        %2528 = vmatpush1.msra.mxu0 0.0
        %2529 = vmatprep.subr.mxu0 0.0
        %2530 = vmatpush1.msra.mxu0 0.0
        %2531 = vmatprep.subr.mxu0 0.0
        %2532 = vmatpush1.msra.mxu0 0.0
        %2533 = vmatprep.subr.mxu0 0.0
        %2534 = vmatpush1.msra.mxu0 0.0
        %2535 = vmatprep.subr.mxu0 0.0
        %2536 = vmatpush1.msra.mxu0 0.0
        %2537 = vmatprep.subr.mxu0 0.0
        %2538 = vmatpush1.msra.mxu0 0.0
        %2539 = vmatprep.subr.mxu0 0.0
        %2540 = vmatpush1.msra.mxu0 0.0
        %2541 = vmatprep.subr.mxu0 0.0
        %2542 = vmatpush1.msra.mxu0 0.0
        %2543 = vmatprep.subr.mxu0 0.0
        %2544 = vmatpush1.msra.mxu0 0.0
        %2545 = vmatprep.subr.mxu0 0.0
        %2546 = vmatpush1.msra.mxu0 0.0
        %2547 = vmatprep.subr.mxu0 0.0
        %2548 = vmatpush1.msra.mxu0 0.0
        %2549 = vmatprep.subr.mxu0 0.0
        %2550 = vmatpush1.msra.mxu0 0.0
        %2551 = vmatprep.subr.mxu0 0.0
        %2552 = vmatpush1.msra.mxu0 0.0
        %2553 = vmatprep.subr.mxu0 0.0
        %2554 = vmatpush1.msra.mxu0 0.0
        %2555 = vmatprep.subr.mxu0 0.0
        %2556 = vmatpush1.msra.mxu0 0.0
        %2557 = vmatprep.subr.mxu0 0.0
        %2558 = vmatpush1.msra.mxu0 %v389
        %2559 = vmatprep.subr.mxu0 0.0
        %2560 = vmatpush2.msra.mxu0 0.0
        %2561 = vmatprep.subr.mxu0 0.0
        %2562 = vmatpush2.msra.mxu0 0.0
        %2563 = vmatprep.subr.mxu0 0.0
        %2564 = vmatpush2.msra.mxu0 0.0
        %2565 = vmatprep.subr.mxu0 0.0
        %2566 = vmatpush2.msra.mxu0 0.0
        %2567 = vmatprep.subr.mxu0 0.0
        %2568 = vmatpush2.msra.mxu0 0.0
        %2569 = vmatprep.subr.mxu0 0.0
        %2570 = vmatpush2.msra.mxu0 0.0
        %2571 = vmatprep.subr.mxu0 0.0
        %2572 = vmatpush2.msra.mxu0 0.0
        %2573 = vmatprep.subr.mxu0 0.0
        %2574 = vmatpush2.msra.mxu0 0.0
        %2575 = vmatprep.subr.mxu0 0.0
        %2576 = vmatpush2.msra.mxu0 0.0
        %2577 = vmatprep.subr.mxu0 0.0
        %2578 = vmatpush2.msra.mxu0 0.0
        %2579 = vmatprep.subr.mxu0 0.0
        %2580 = vmatpush2.msra.mxu0 0.0
        %2581 = vmatprep.subr.mxu0 0.0
        %2582 = vmatpush2.msra.mxu0 0.0
        %2583 = vmatprep.subr.mxu0 0.0
        %2584 = vmatpush2.msra.mxu0 0.0
        %2585 = vmatprep.subr.mxu0 0.0
        %2586 = vmatpush2.msra.mxu0 0.0
        %2587 = vmatprep.subr.mxu0 0.0
        %2588 = vmatpush2.msra.mxu0 0.0
        %2589 = vmatprep.subr.mxu0 0.0
        %2590 = vmatpush2.msra.mxu0 0.0
        %2591 = vmatprep.mubr.f32.mxu0 0.0
        %2592 = vmatmul.mubr.f32.gmra.mxu0 %v2522
        %v2593 = vpop.f32.mrf.mxu0
        %v2594 = vadd.f32 0.0, %v2593
        %v2595 = vpop.f32.mrf.mxu0
        %2596 = vmatprep.mubr.f32.mxu0 0.0
        %2597 = vmatmul.mubr.f32.gmra.mxu0 %v2525
        %v2598 = vpop.f32.mrf.mxu0
        %v2599 = vadd.f32 0.0, %v2598
        %v2600 = vpop.f32.mrf.mxu0
        %2601 = vdwg.mxu0
        %v2602 = vadd.f32 %v2425, %v2513
        %v2603 = vadd.f32 %v2426, %v2518
        %v2604 = vadd.f32 %v2427, %v2594
        %v2605 = vadd.f32 %v2428, %v2599
        %v2606 = vld [vmem:[%s2431 + $0x1] sm:$0xff]
        %v2607 = vld [vmem:[%s2431 + $0x9] sm:$0x3f]
        %v2608 = vld [vmem:[%s2434 + $0x1] sm:$0xff]
        %v2609 = vld [vmem:[%s2434 + $0x9] sm:$0x3f]
        %v2611 = vsel %vm393, %v2606, 0
        %v2614 = vsel %vm393, %v2607, 0
        %v2617 = vsel %vm1407, %v368, 0
        %2619 = vmatprep.subr.mxu0 0.0
        %2620 = vmatpush1.msra.mxu0 0.0
        %2621 = vmatprep.subr.mxu0 0.0
        %2622 = vmatpush1.msra.mxu0 0.0
        %2623 = vmatprep.subr.mxu0 0.0
        %2624 = vmatpush1.msra.mxu0 0.0
        %2625 = vmatprep.subr.mxu0 0.0
        %2626 = vmatpush1.msra.mxu0 0.0
        %2627 = vmatprep.subr.mxu0 0.0
        %2628 = vmatpush1.msra.mxu0 0.0
        %2629 = vmatprep.subr.mxu0 0.0
        %2630 = vmatpush1.msra.mxu0 0.0
        %2631 = vmatprep.subr.mxu0 0.0
        %2632 = vmatpush1.msra.mxu0 0.0
        %2633 = vmatprep.subr.mxu0 0.0
        %2634 = vmatpush1.msra.mxu0 0.0
        %2635 = vmatprep.subr.mxu0 0.0
        %2636 = vmatpush1.msra.mxu0 0.0
        %2637 = vmatprep.subr.mxu0 0.0
        %2638 = vmatpush1.msra.mxu0 0.0
        %2639 = vmatprep.subr.mxu0 0.0
        %2640 = vmatpush1.msra.mxu0 0.0
        %2641 = vmatprep.subr.mxu0 0.0
        %2642 = vmatpush1.msra.mxu0 0.0
        %2643 = vmatprep.subr.mxu0 0.0
        %2644 = vmatpush1.msra.mxu0 0.0
        %2645 = vmatprep.subr.mxu0 0.0
        %2646 = vmatpush1.msra.mxu0 0.0
        %2647 = vmatprep.subr.mxu0 0.0
        %2648 = vmatpush1.msra.mxu0 0.0
        %2649 = vmatprep.subr.mxu0 0.0
        %2650 = vmatpush1.msra.mxu0 %v2617
        %2651 = vmatprep.subr.mxu0 0.0
        %2652 = vmatpush2.msra.mxu0 0.0
        %2653 = vmatprep.subr.mxu0 0.0
        %2654 = vmatpush2.msra.mxu0 0.0
        %2655 = vmatprep.subr.mxu0 0.0
        %2656 = vmatpush2.msra.mxu0 0.0
        %2657 = vmatprep.subr.mxu0 0.0
        %2658 = vmatpush2.msra.mxu0 0.0
        %2659 = vmatprep.subr.mxu0 0.0
        %2660 = vmatpush2.msra.mxu0 0.0
        %2661 = vmatprep.subr.mxu0 0.0
        %2662 = vmatpush2.msra.mxu0 0.0
        %2663 = vmatprep.subr.mxu0 0.0
        %2664 = vmatpush2.msra.mxu0 0.0
        %2665 = vmatprep.subr.mxu0 0.0
        %2666 = vmatpush2.msra.mxu0 0.0
        %2667 = vmatprep.subr.mxu0 0.0
        %2668 = vmatpush2.msra.mxu0 0.0
        %2669 = vmatprep.subr.mxu0 0.0
        %2670 = vmatpush2.msra.mxu0 0.0
        %2671 = vmatprep.subr.mxu0 0.0
        %2672 = vmatpush2.msra.mxu0 0.0
        %2673 = vmatprep.subr.mxu0 0.0
        %2674 = vmatpush2.msra.mxu0 0.0
        %2675 = vmatprep.subr.mxu0 0.0
        %2676 = vmatpush2.msra.mxu0 0.0
        %2677 = vmatprep.subr.mxu0 0.0
        %2678 = vmatpush2.msra.mxu0 0.0
        %2679 = vmatprep.subr.mxu0 0.0
        %2680 = vmatpush2.msra.mxu0 0.0
        %2681 = vmatprep.subr.mxu0 0.0
        %2682 = vmatpush2.msra.mxu0 0.0
        %2683 = vmatprep.mubr.f32.mxu0 0.0
        %2684 = vmatmul.mubr.f32.gmra.mxu0 %v2611
        %v2685 = vpop.f32.mrf.mxu0
        %v2686 = vadd.f32 0.0, %v2685
        %v2687 = vpop.f32.mrf.mxu0
        %2688 = vmatprep.mubr.f32.mxu0 0.0
        %2689 = vmatmul.mubr.f32.gmra.mxu0 %v2614
        %v2690 = vpop.f32.mrf.mxu0
        %v2691 = vadd.f32 0.0, %v2690
        %v2692 = vpop.f32.mrf.mxu0
        %2693 = vdwg.mxu0
        %v2695 = vsel %vm1486, %v2608, 0
        %v2698 = vsel %vm1486, %v2609, 0
        %2700 = vmatprep.subr.mxu0 0.0
        %2701 = vmatpush1.msra.mxu0 0.0
        %2702 = vmatprep.subr.mxu0 0.0
        %2703 = vmatpush1.msra.mxu0 0.0
        %2704 = vmatprep.subr.mxu0 0.0
        %2705 = vmatpush1.msra.mxu0 0.0
        %2706 = vmatprep.subr.mxu0 0.0
        %2707 = vmatpush1.msra.mxu0 0.0
        %2708 = vmatprep.subr.mxu0 0.0
        %2709 = vmatpush1.msra.mxu0 0.0
        %2710 = vmatprep.subr.mxu0 0.0
        %2711 = vmatpush1.msra.mxu0 0.0
        %2712 = vmatprep.subr.mxu0 0.0
        %2713 = vmatpush1.msra.mxu0 0.0
        %2714 = vmatprep.subr.mxu0 0.0
        %2715 = vmatpush1.msra.mxu0 0.0
        %2716 = vmatprep.subr.mxu0 0.0
        %2717 = vmatpush1.msra.mxu0 0.0
        %2718 = vmatprep.subr.mxu0 0.0
        %2719 = vmatpush1.msra.mxu0 0.0
        %2720 = vmatprep.subr.mxu0 0.0
        %2721 = vmatpush1.msra.mxu0 0.0
        %2722 = vmatprep.subr.mxu0 0.0
        %2723 = vmatpush1.msra.mxu0 0.0
        %2724 = vmatprep.subr.mxu0 0.0
        %2725 = vmatpush1.msra.mxu0 0.0
        %2726 = vmatprep.subr.mxu0 0.0
        %2727 = vmatpush1.msra.mxu0 0.0
        %2728 = vmatprep.subr.mxu0 0.0
        %2729 = vmatpush1.msra.mxu0 0.0
        %2730 = vmatprep.subr.mxu0 0.0
        %2731 = vmatpush1.msra.mxu0 %v390
        %2732 = vmatprep.subr.mxu0 0.0
        %2733 = vmatpush2.msra.mxu0 0.0
        %2734 = vmatprep.subr.mxu0 0.0
        %2735 = vmatpush2.msra.mxu0 0.0
        %2736 = vmatprep.subr.mxu0 0.0
        %2737 = vmatpush2.msra.mxu0 0.0
        %2738 = vmatprep.subr.mxu0 0.0
        %2739 = vmatpush2.msra.mxu0 0.0
        %2740 = vmatprep.subr.mxu0 0.0
        %2741 = vmatpush2.msra.mxu0 0.0
        %2742 = vmatprep.subr.mxu0 0.0
        %2743 = vmatpush2.msra.mxu0 0.0
        %2744 = vmatprep.subr.mxu0 0.0
        %2745 = vmatpush2.msra.mxu0 0.0
        %2746 = vmatprep.subr.mxu0 0.0
        %2747 = vmatpush2.msra.mxu0 0.0
        %2748 = vmatprep.subr.mxu0 0.0
        %2749 = vmatpush2.msra.mxu0 0.0
        %2750 = vmatprep.subr.mxu0 0.0
        %2751 = vmatpush2.msra.mxu0 0.0
        %2752 = vmatprep.subr.mxu0 0.0
        %2753 = vmatpush2.msra.mxu0 0.0
        %2754 = vmatprep.subr.mxu0 0.0
        %2755 = vmatpush2.msra.mxu0 0.0
        %2756 = vmatprep.subr.mxu0 0.0
        %2757 = vmatpush2.msra.mxu0 0.0
        %2758 = vmatprep.subr.mxu0 0.0
        %2759 = vmatpush2.msra.mxu0 0.0
        %2760 = vmatprep.subr.mxu0 0.0
        %2761 = vmatpush2.msra.mxu0 0.0
        %2762 = vmatprep.subr.mxu0 0.0
        %2763 = vmatpush2.msra.mxu0 0.0
        %2764 = vmatprep.mubr.f32.mxu0 0.0
        %2765 = vmatmul.mubr.f32.gmra.mxu0 %v2695
        %v2766 = vpop.f32.mrf.mxu0
        %v2767 = vadd.f32 0.0, %v2766
        %v2768 = vpop.f32.mrf.mxu0
        %2769 = vmatprep.mubr.f32.mxu0 0.0
        %2770 = vmatmul.mubr.f32.gmra.mxu0 %v2698
        %v2771 = vpop.f32.mrf.mxu0
        %v2772 = vadd.f32 0.0, %v2771
        %v2773 = vpop.f32.mrf.mxu0
        %2774 = vdwg.mxu0
        %v2775 = vadd.f32 %v2602, %v2686
        %v2776 = vadd.f32 %v2603, %v2691
        %v2777 = vadd.f32 %v2604, %v2767
        %v2778 = vadd.f32 %v2605, %v2772
        %v2779 = vld [vmem:[%s2431 + $0x2] sm:$0xff]
        %v2780 = vld [vmem:[%s2431 + $0xa] sm:$0x3f]
        %v2781 = vld [vmem:[%s2434 + $0x2] sm:$0xff]
        %v2782 = vld [vmem:[%s2434 + $0xa] sm:$0x3f]
        %v2784 = vsel %vm393, %v2779, 0
        %v2787 = vsel %vm393, %v2780, 0
        %v2790 = vsel %vm1407, %v369, 0
        %2792 = vmatprep.subr.mxu0 0.0
        %2793 = vmatpush1.msra.mxu0 0.0
        %2794 = vmatprep.subr.mxu0 0.0
        %2795 = vmatpush1.msra.mxu0 0.0
        %2796 = vmatprep.subr.mxu0 0.0
        %2797 = vmatpush1.msra.mxu0 0.0
        %2798 = vmatprep.subr.mxu0 0.0
        %2799 = vmatpush1.msra.mxu0 0.0
        %2800 = vmatprep.subr.mxu0 0.0
        %2801 = vmatpush1.msra.mxu0 0.0
        %2802 = vmatprep.subr.mxu0 0.0
        %2803 = vmatpush1.msra.mxu0 0.0
        %2804 = vmatprep.subr.mxu0 0.0
        %2805 = vmatpush1.msra.mxu0 0.0
        %2806 = vmatprep.subr.mxu0 0.0
        %2807 = vmatpush1.msra.mxu0 0.0
        %2808 = vmatprep.subr.mxu0 0.0
        %2809 = vmatpush1.msra.mxu0 0.0
        %2810 = vmatprep.subr.mxu0 0.0
        %2811 = vmatpush1.msra.mxu0 0.0
        %2812 = vmatprep.subr.mxu0 0.0
        %2813 = vmatpush1.msra.mxu0 0.0
        %2814 = vmatprep.subr.mxu0 0.0
        %2815 = vmatpush1.msra.mxu0 0.0
        %2816 = vmatprep.subr.mxu0 0.0
        %2817 = vmatpush1.msra.mxu0 0.0
        %2818 = vmatprep.subr.mxu0 0.0
        %2819 = vmatpush1.msra.mxu0 0.0
        %2820 = vmatprep.subr.mxu0 0.0
        %2821 = vmatpush1.msra.mxu0 0.0
        %2822 = vmatprep.subr.mxu0 0.0
        %2823 = vmatpush1.msra.mxu0 %v2790
        %2824 = vmatprep.subr.mxu0 0.0
        %2825 = vmatpush2.msra.mxu0 0.0
        %2826 = vmatprep.subr.mxu0 0.0
        %2827 = vmatpush2.msra.mxu0 0.0
        %2828 = vmatprep.subr.mxu0 0.0
        %2829 = vmatpush2.msra.mxu0 0.0
        %2830 = vmatprep.subr.mxu0 0.0
        %2831 = vmatpush2.msra.mxu0 0.0
        %2832 = vmatprep.subr.mxu0 0.0
        %2833 = vmatpush2.msra.mxu0 0.0
        %2834 = vmatprep.subr.mxu0 0.0
        %2835 = vmatpush2.msra.mxu0 0.0
        %2836 = vmatprep.subr.mxu0 0.0
        %2837 = vmatpush2.msra.mxu0 0.0
        %2838 = vmatprep.subr.mxu0 0.0
        %2839 = vmatpush2.msra.mxu0 0.0
        %2840 = vmatprep.subr.mxu0 0.0
        %2841 = vmatpush2.msra.mxu0 0.0
        %2842 = vmatprep.subr.mxu0 0.0
        %2843 = vmatpush2.msra.mxu0 0.0
        %2844 = vmatprep.subr.mxu0 0.0
        %2845 = vmatpush2.msra.mxu0 0.0
        %2846 = vmatprep.subr.mxu0 0.0
        %2847 = vmatpush2.msra.mxu0 0.0
        %2848 = vmatprep.subr.mxu0 0.0
        %2849 = vmatpush2.msra.mxu0 0.0
        %2850 = vmatprep.subr.mxu0 0.0
        %2851 = vmatpush2.msra.mxu0 0.0
        %2852 = vmatprep.subr.mxu0 0.0
        %2853 = vmatpush2.msra.mxu0 0.0
        %2854 = vmatprep.subr.mxu0 0.0
        %2855 = vmatpush2.msra.mxu0 0.0
        %2856 = vmatprep.mubr.f32.mxu0 0.0
        %2857 = vmatmul.mubr.f32.gmra.mxu0 %v2784
        %v2858 = vpop.f32.mrf.mxu0
        %v2859 = vadd.f32 0.0, %v2858
        %v2860 = vpop.f32.mrf.mxu0
        %2861 = vmatprep.mubr.f32.mxu0 0.0
        %2862 = vmatmul.mubr.f32.gmra.mxu0 %v2787
        %v2863 = vpop.f32.mrf.mxu0
        %v2864 = vadd.f32 0.0, %v2863
        %v2865 = vpop.f32.mrf.mxu0
        %2866 = vdwg.mxu0
        %v2868 = vsel %vm1486, %v2781, 0
        %v2871 = vsel %vm1486, %v2782, 0
        %2873 = vmatprep.subr.mxu0 0.0
        %2874 = vmatpush1.msra.mxu0 0.0
        %2875 = vmatprep.subr.mxu0 0.0
        %2876 = vmatpush1.msra.mxu0 0.0
        %2877 = vmatprep.subr.mxu0 0.0
        %2878 = vmatpush1.msra.mxu0 0.0
        %2879 = vmatprep.subr.mxu0 0.0
        %2880 = vmatpush1.msra.mxu0 0.0
        %2881 = vmatprep.subr.mxu0 0.0
        %2882 = vmatpush1.msra.mxu0 0.0
        %2883 = vmatprep.subr.mxu0 0.0
        %2884 = vmatpush1.msra.mxu0 0.0
        %2885 = vmatprep.subr.mxu0 0.0
        %2886 = vmatpush1.msra.mxu0 0.0
        %2887 = vmatprep.subr.mxu0 0.0
        %2888 = vmatpush1.msra.mxu0 0.0
        %2889 = vmatprep.subr.mxu0 0.0
        %2890 = vmatpush1.msra.mxu0 0.0
        %2891 = vmatprep.subr.mxu0 0.0
        %2892 = vmatpush1.msra.mxu0 0.0
        %2893 = vmatprep.subr.mxu0 0.0
        %2894 = vmatpush1.msra.mxu0 0.0
        %2895 = vmatprep.subr.mxu0 0.0
        %2896 = vmatpush1.msra.mxu0 0.0
        %2897 = vmatprep.subr.mxu0 0.0
        %2898 = vmatpush1.msra.mxu0 0.0
        %2899 = vmatprep.subr.mxu0 0.0
        %2900 = vmatpush1.msra.mxu0 0.0
        %2901 = vmatprep.subr.mxu0 0.0
        %2902 = vmatpush1.msra.mxu0 0.0
        %2903 = vmatprep.subr.mxu0 0.0
        %2904 = vmatpush1.msra.mxu0 %v391
        %2905 = vmatprep.subr.mxu0 0.0
        %2906 = vmatpush2.msra.mxu0 0.0
        %2907 = vmatprep.subr.mxu0 0.0
        %2908 = vmatpush2.msra.mxu0 0.0
        %2909 = vmatprep.subr.mxu0 0.0
        %2910 = vmatpush2.msra.mxu0 0.0
        %2911 = vmatprep.subr.mxu0 0.0
        %2912 = vmatpush2.msra.mxu0 0.0
        %2913 = vmatprep.subr.mxu0 0.0
        %2914 = vmatpush2.msra.mxu0 0.0
        %2915 = vmatprep.subr.mxu0 0.0
        %2916 = vmatpush2.msra.mxu0 0.0
        %2917 = vmatprep.subr.mxu0 0.0
        %2918 = vmatpush2.msra.mxu0 0.0
        %2919 = vmatprep.subr.mxu0 0.0
        %2920 = vmatpush2.msra.mxu0 0.0
        %2921 = vmatprep.subr.mxu0 0.0
        %2922 = vmatpush2.msra.mxu0 0.0
        %2923 = vmatprep.subr.mxu0 0.0
        %2924 = vmatpush2.msra.mxu0 0.0
        %2925 = vmatprep.subr.mxu0 0.0
        %2926 = vmatpush2.msra.mxu0 0.0
        %2927 = vmatprep.subr.mxu0 0.0
        %2928 = vmatpush2.msra.mxu0 0.0
        %2929 = vmatprep.subr.mxu0 0.0
        %2930 = vmatpush2.msra.mxu0 0.0
        %2931 = vmatprep.subr.mxu0 0.0
        %2932 = vmatpush2.msra.mxu0 0.0
        %2933 = vmatprep.subr.mxu0 0.0
        %2934 = vmatpush2.msra.mxu0 0.0
        %2935 = vmatprep.subr.mxu0 0.0
        %2936 = vmatpush2.msra.mxu0 0.0
        %2937 = vmatprep.mubr.f32.mxu0 0.0
        %2938 = vmatmul.mubr.f32.gmra.mxu0 %v2868
        %v2939 = vpop.f32.mrf.mxu0
        %v2940 = vadd.f32 0.0, %v2939
        %v2941 = vpop.f32.mrf.mxu0
        %2942 = vmatprep.mubr.f32.mxu0 0.0
        %2943 = vmatmul.mubr.f32.gmra.mxu0 %v2871
        %v2944 = vpop.f32.mrf.mxu0
        %v2945 = vadd.f32 0.0, %v2944
        %v2946 = vpop.f32.mrf.mxu0
        %2947 = vdwg.mxu0
        %v2948 = vadd.f32 %v2775, %v2859
        %v2949 = vadd.f32 %v2776, %v2864
        %v2950 = vadd.f32 %v2777, %v2940
        %v2951 = vadd.f32 %v2778, %v2945
        %v2953 = vlaneseq
        %v2954 = vshrl.u32 %v2953, 7
        %v2955 = vsub.s32 0, %v2954
        %v2956 = vrot.slane %v370, %v2955
        %vm2958 = vcmask 113664
        %v2960 = vsel %vm2958, %v360, 0
        %vm2962 = vcmask 1045504
        %v2964 = vsel %vm2962, %v2949, 0
        %2966 = vmatprep.subr.mxu0 0.0
        %2967 = vmatpush1.msra.mxu0 0.0
        %2968 = vmatprep.subr.mxu0 0.0
        %2969 = vmatpush1.msra.mxu0 0.0
        %2970 = vmatprep.subr.mxu0 0.0
        %2971 = vmatpush1.msra.mxu0 0.0
        %2972 = vmatprep.subr.mxu0 0.0
        %2973 = vmatpush1.msra.mxu0 0.0
        %2974 = vmatprep.subr.mxu0 0.0
        %2975 = vmatpush1.msra.mxu0 0.0
        %2976 = vmatprep.subr.mxu0 0.0
        %2977 = vmatpush1.msra.mxu0 0.0
        %2978 = vmatprep.subr.mxu0 0.0
        %2979 = vmatpush1.msra.mxu0 0.0
        %2980 = vmatprep.subr.mxu0 0.0
        %2981 = vmatpush1.msra.mxu0 0.0
        %2982 = vmatprep.subr.mxu0 0.0
        %2983 = vmatpush1.msra.mxu0 0.0
        %2984 = vmatprep.subr.mxu0 0.0
        %2985 = vmatpush1.msra.mxu0 0.0
        %2986 = vmatprep.subr.mxu0 0.0
        %2987 = vmatpush1.msra.mxu0 0.0
        %2988 = vmatprep.subr.mxu0 0.0
        %2989 = vmatpush1.msra.mxu0 0.0
        %2990 = vmatprep.subr.mxu0 0.0
        %2991 = vmatpush1.msra.mxu0 0.0
        %2992 = vmatprep.subr.mxu0 0.0
        %2993 = vmatpush1.msra.mxu0 0.0
        %2994 = vmatprep.subr.mxu0 0.0
        %2995 = vmatpush1.msra.mxu0 %v2964
        %2996 = vmatprep.subr.mxu0 0.0
        %2997 = vmatpush1.msra.mxu0 %v2948
        %2998 = vmatprep.subr.mxu0 0.0
        %2999 = vmatpush2.msra.mxu0 0.0
        %3000 = vmatprep.subr.mxu0 0.0
        %3001 = vmatpush2.msra.mxu0 0.0
        %3002 = vmatprep.subr.mxu0 0.0
        %3003 = vmatpush2.msra.mxu0 0.0
        %3004 = vmatprep.subr.mxu0 0.0
        %3005 = vmatpush2.msra.mxu0 0.0
        %3006 = vmatprep.subr.mxu0 0.0
        %3007 = vmatpush2.msra.mxu0 0.0
        %3008 = vmatprep.subr.mxu0 0.0
        %3009 = vmatpush2.msra.mxu0 0.0
        %3010 = vmatprep.subr.mxu0 0.0
        %3011 = vmatpush2.msra.mxu0 0.0
        %3012 = vmatprep.subr.mxu0 0.0
        %3013 = vmatpush2.msra.mxu0 0.0
        %3014 = vmatprep.subr.mxu0 0.0
        %3015 = vmatpush2.msra.mxu0 0.0
        %3016 = vmatprep.subr.mxu0 0.0
        %3017 = vmatpush2.msra.mxu0 0.0
        %3018 = vmatprep.subr.mxu0 0.0
        %3019 = vmatpush2.msra.mxu0 0.0
        %3020 = vmatprep.subr.mxu0 0.0
        %3021 = vmatpush2.msra.mxu0 0.0
        %3022 = vmatprep.subr.mxu0 0.0
        %3023 = vmatpush2.msra.mxu0 0.0
        %3024 = vmatprep.subr.mxu0 0.0
        %3025 = vmatpush2.msra.mxu0 0.0
        %3026 = vmatprep.subr.mxu0 0.0
        %3027 = vmatpush2.msra.mxu0 0.0
        %3028 = vmatprep.subr.mxu0 0.0
        %3029 = vmatpush2.msra.mxu0 0.0
        %3030 = vmatprep.mubr.f32.mxu0 0.0
        %3031 = vmatmul.mubr.f32.gmra.mxu0 %v2960
        %v3032 = vpop.f32.mrf.mxu0
        %v3033 = vadd.f32 %v2956, %v3032
        %v3034 = vpop.f32.mrf.mxu0
        %3035 = vdwg.mxu0
        %vm3036 = vcmp.ge.f32.partialorder %v3033, 0.0
        %v3037 = vmul.f32 %v3033, 0.2
        %v3038 = vsel %vm3036, %v3033, %v3037
        %v3040 = vlaneseq
        %v3041 = vshrl.u32 %v3040, 7
        %v3042 = vsub.s32 0, %v3041
        %v3043 = vrot.slane %v392, %v3042
        %v3046 = vsel %vm2962, %v2951, 0
        %3048 = vmatprep.subr.mxu0 0.0
        %3049 = vmatpush1.msra.mxu0 0.0
        %3050 = vmatprep.subr.mxu0 0.0
        %3051 = vmatpush1.msra.mxu0 0.0
        %3052 = vmatprep.subr.mxu0 0.0
        %3053 = vmatpush1.msra.mxu0 0.0
        %3054 = vmatprep.subr.mxu0 0.0
        %3055 = vmatpush1.msra.mxu0 0.0
        %3056 = vmatprep.subr.mxu0 0.0
        %3057 = vmatpush1.msra.mxu0 0.0
        %3058 = vmatprep.subr.mxu0 0.0
        %3059 = vmatpush1.msra.mxu0 0.0
        %3060 = vmatprep.subr.mxu0 0.0
        %3061 = vmatpush1.msra.mxu0 0.0
        %3062 = vmatprep.subr.mxu0 0.0
        %3063 = vmatpush1.msra.mxu0 0.0
        %3064 = vmatprep.subr.mxu0 0.0
        %3065 = vmatpush1.msra.mxu0 0.0
        %3066 = vmatprep.subr.mxu0 0.0
        %3067 = vmatpush1.msra.mxu0 0.0
        %3068 = vmatprep.subr.mxu0 0.0
        %3069 = vmatpush1.msra.mxu0 0.0
        %3070 = vmatprep.subr.mxu0 0.0
        %3071 = vmatpush1.msra.mxu0 0.0
        %3072 = vmatprep.subr.mxu0 0.0
        %3073 = vmatpush1.msra.mxu0 0.0
        %3074 = vmatprep.subr.mxu0 0.0
        %3075 = vmatpush1.msra.mxu0 0.0
        %3076 = vmatprep.subr.mxu0 0.0
        %3077 = vmatpush1.msra.mxu0 %v3046
        %3078 = vmatprep.subr.mxu0 0.0
        %3079 = vmatpush1.msra.mxu0 %v2950
        %3080 = vmatprep.subr.mxu0 0.0
        %3081 = vmatpush2.msra.mxu0 0.0
        %3082 = vmatprep.subr.mxu0 0.0
        %3083 = vmatpush2.msra.mxu0 0.0
        %3084 = vmatprep.subr.mxu0 0.0
        %3085 = vmatpush2.msra.mxu0 0.0
        %3086 = vmatprep.subr.mxu0 0.0
        %3087 = vmatpush2.msra.mxu0 0.0
        %3088 = vmatprep.subr.mxu0 0.0
        %3089 = vmatpush2.msra.mxu0 0.0
        %3090 = vmatprep.subr.mxu0 0.0
        %3091 = vmatpush2.msra.mxu0 0.0
        %3092 = vmatprep.subr.mxu0 0.0
        %3093 = vmatpush2.msra.mxu0 0.0
        %3094 = vmatprep.subr.mxu0 0.0
        %3095 = vmatpush2.msra.mxu0 0.0
        %3096 = vmatprep.subr.mxu0 0.0
        %3097 = vmatpush2.msra.mxu0 0.0
        %3098 = vmatprep.subr.mxu0 0.0
        %3099 = vmatpush2.msra.mxu0 0.0
        %3100 = vmatprep.subr.mxu0 0.0
        %3101 = vmatpush2.msra.mxu0 0.0
        %3102 = vmatprep.subr.mxu0 0.0
        %3103 = vmatpush2.msra.mxu0 0.0
        %3104 = vmatprep.subr.mxu0 0.0
        %3105 = vmatpush2.msra.mxu0 0.0
        %3106 = vmatprep.subr.mxu0 0.0
        %3107 = vmatpush2.msra.mxu0 0.0
        %3108 = vmatprep.subr.mxu0 0.0
        %3109 = vmatpush2.msra.mxu0 0.0
        %3110 = vmatprep.subr.mxu0 0.0
        %3111 = vmatpush2.msra.mxu0 0.0
        %3112 = vmatprep.mubr.f32.mxu0 0.0
        %3113 = vmatmul.mubr.f32.gmra.mxu0 %v2960
        %v3114 = vpop.f32.mrf.mxu0
        %v3115 = vadd.f32 %v3043, %v3114
        %v3116 = vpop.f32.mrf.mxu0
        %3117 = vdwg.mxu0
        %vm3118 = vcmp.ge.f32.partialorder %v3115, 0.0
        %v3119 = vmul.f32 %v3115, 0.2
        %v3120 = vsel %vm3118, %v3115, %v3119
        %v3121 = vld [vmem:[%s1391] sm:$0xff]
        %v3122 = vld [vmem:[%s1391 + $0x8] sm:$0xff]
        %vm3125 = vcmask 1046528
        %v3126 = vrot.slane %v3121, 1
        %v3127 = vrot.slane %v3122, 1
        %v3128 = vsel %vm3125, %v3126, %v3127
        %v3131 = vmax.f32 %v3121, %v3128
        %v3132 = vmax.f32 %v3122, %v3127
        %v3133 = vrot.slane %v3121, 2
        %v3134 = vrot.slane %v3122, 2
        %v3135 = vsel %vm2962, %v3133, %v3134
        %v3138 = vmax.f32 %v3131, %v3135
        %v3139 = vmax.f32 %v3132, %v3134
        %v3140 = vld [vmem:[%s1908] sm:$0xff]
        %v3141 = vld [vmem:[%s1908 + $0x8] sm:$0xff]
        %v3144 = vrot.slane %v3140, 1
        %v3145 = vrot.slane %v3141, 1
        %v3146 = vsel %vm3125, %v3144, %v3145
        %v3149 = vmax.f32 %v3140, %v3146
        %v3150 = vmax.f32 %v3141, %v3145
        %v3151 = vrot.slane %v3140, 2
        %v3152 = vrot.slane %v3141, 2
        %v3153 = vsel %vm2962, %v3151, %v3152
        %v3156 = vmax.f32 %v3149, %v3153
        %v3157 = vmax.f32 %v3150, %v3152
        %v3158 = vmax.f32 %v3138, %v3156
        %v3159 = vmax.f32 %v3139, %v3157
        %v3160 = vld [vmem:[%s2431] sm:$0xff]
        %v3161 = vld [vmem:[%s2431 + $0x8] sm:$0xff]
        %v3164 = vrot.slane %v3160, 1
        %v3165 = vrot.slane %v3161, 1
        %v3166 = vsel %vm3125, %v3164, %v3165
        %v3169 = vmax.f32 %v3160, %v3166
        %v3170 = vmax.f32 %v3161, %v3165
        %v3171 = vrot.slane %v3160, 2
        %v3172 = vrot.slane %v3161, 2
        %v3173 = vsel %vm2962, %v3171, %v3172
        %v3176 = vmax.f32 %v3169, %v3173
        %v3177 = vmax.f32 %v3170, %v3172
        %v3178 = vmax.f32 %v3158, %v3176
        %v3179 = vmax.f32 %v3159, %v3177
        %v3181 = vsel %vm2962, %v3179, 0
        %3183 = vmatprep.subr.mxu0 0.0
        %3184 = vmatpush1.msra.mxu0 0.0
        %3185 = vmatprep.subr.mxu0 0.0
        %3186 = vmatpush1.msra.mxu0 0.0
        %3187 = vmatprep.subr.mxu0 0.0
        %3188 = vmatpush1.msra.mxu0 0.0
        %3189 = vmatprep.subr.mxu0 0.0
        %3190 = vmatpush1.msra.mxu0 0.0
        %3191 = vmatprep.subr.mxu0 0.0
        %3192 = vmatpush1.msra.mxu0 0.0
        %3193 = vmatprep.subr.mxu0 0.0
        %3194 = vmatpush1.msra.mxu0 0.0
        %3195 = vmatprep.subr.mxu0 0.0
        %3196 = vmatpush1.msra.mxu0 0.0
        %3197 = vmatprep.subr.mxu0 0.0
        %3198 = vmatpush1.msra.mxu0 0.0
        %3199 = vmatprep.subr.mxu0 0.0
        %3200 = vmatpush1.msra.mxu0 0.0
        %3201 = vmatprep.subr.mxu0 0.0
        %3202 = vmatpush1.msra.mxu0 0.0
        %3203 = vmatprep.subr.mxu0 0.0
        %3204 = vmatpush1.msra.mxu0 0.0
        %3205 = vmatprep.subr.mxu0 0.0
        %3206 = vmatpush1.msra.mxu0 0.0
        %3207 = vmatprep.subr.mxu0 0.0
        %3208 = vmatpush1.msra.mxu0 0.0
        %3209 = vmatprep.subr.mxu0 0.0
        %3210 = vmatpush1.msra.mxu0 0.0
        %3211 = vmatprep.subr.mxu0 0.0
        %3212 = vmatpush1.msra.mxu0 %v3181
        %3213 = vmatprep.subr.mxu0 0.0
        %3214 = vmatpush1.msra.mxu0 %v3178
        %3215 = vmatprep.subr.mxu0 0.0
        %3216 = vmatpush2.msra.mxu0 0.0
        %3217 = vmatprep.subr.mxu0 0.0
        %3218 = vmatpush2.msra.mxu0 0.0
        %3219 = vmatprep.subr.mxu0 0.0
        %3220 = vmatpush2.msra.mxu0 0.0
        %3221 = vmatprep.subr.mxu0 0.0
        %3222 = vmatpush2.msra.mxu0 0.0
        %3223 = vmatprep.subr.mxu0 0.0
        %3224 = vmatpush2.msra.mxu0 0.0
        %3225 = vmatprep.subr.mxu0 0.0
        %3226 = vmatpush2.msra.mxu0 0.0
        %3227 = vmatprep.subr.mxu0 0.0
        %3228 = vmatpush2.msra.mxu0 0.0
        %3229 = vmatprep.subr.mxu0 0.0
        %3230 = vmatpush2.msra.mxu0 0.0
        %3231 = vmatprep.subr.mxu0 0.0
        %3232 = vmatpush2.msra.mxu0 0.0
        %3233 = vmatprep.subr.mxu0 0.0
        %3234 = vmatpush2.msra.mxu0 0.0
        %3235 = vmatprep.subr.mxu0 0.0
        %3236 = vmatpush2.msra.mxu0 0.0
        %3237 = vmatprep.subr.mxu0 0.0
        %3238 = vmatpush2.msra.mxu0 0.0
        %3239 = vmatprep.subr.mxu0 0.0
        %3240 = vmatpush2.msra.mxu0 0.0
        %3241 = vmatprep.subr.mxu0 0.0
        %3242 = vmatpush2.msra.mxu0 0.0
        %3243 = vmatprep.subr.mxu0 0.0
        %3244 = vmatpush2.msra.mxu0 0.0
        %3245 = vmatprep.subr.mxu0 0.0
        %3246 = vmatpush2.msra.mxu0 0.0
        %3247 = vmatprep.mubr.f32.mxu0 0.0
        %3248 = vmatmul.mubr.f32.gmra.mxu0 %v2960
        %v3249 = vpop.f32.mrf.mxu0
        %v3250 = vadd.f32 0.0, %v3249
        %v3251 = vpop.f32.mrf.mxu0
        %3252 = vdwg.mxu0
        %s3253 = smul.u32 %s1384, 8
        %s3254 = scalar_lea.vmem %s359, %s3253
        %vm3255 = vcmask 63488
        %3256 = vst.msk [vmem:[%s3254] sm:$0x7f] %vm3255, %v3038
        %3258 = vrot.lane.b32.xlu0 %v3120, 8
        %v3259 = vpop.permute.xlu0 %3258
        %vm3261 = vcmask 129088
        %3262 = vst.msk [vmem:[%s3254] sm:$0x7f] %vm3261, %v3259
        %3264 = vrot.lane.b32.xlu0 %v3250, 16
        %v3265 = vpop.permute.xlu0 %3264
        %vm3267 = vcmask 161920
        %3268 = vst.msk [vmem:[%s3254] sm:$0x7f] %vm3267, %v3265
      $region79: #{reduction_v4a.1} parent=59 // loop_footer
        %s1388 = sadd.s32 1, %s1384
      $region80: #{reduction_v4a.1} parent=59 // loop_footer_branch
        %1383 = sbr.rel target = $region76
      $region81: #{reduction_v4a.1} parent=59 // loop_exit
        _
      %p3269 = scmp.lt.s32.totalorder %s21, 1
      %s3270 = scalar_select %p3269, %s21, 1
      %s3271 = smul.addr %s3270, 7
      %s3272 = smul.addr %s3271, 8
      %s3273 = scalar_lea.vmem %s10, %s3272
      // Predicated region
      $region82: #{reduction_v4a.1} parent=59 // pred_check
        %p3274 = pneg %p254
      $region83: #{reduction_v4a.1} parent=59 // pred_check_branch
        %3276 = sbr.rel (%p3274) target = $region85
      $region84: #{reduction_v4a.1} parent=59 // pred_region
        _
      $region85: #{reduction_v4a.1} parent=59 // pred_fallthru
        _
    $region60: #{reduction_v4a.1} parent=5 // pred_fallthru
      _
    %p3277 = scmp.le.s32.totalorder 2, %s16
    // Predicated region
    $region86: #{reduction_v4a.1} parent=5 // pred_check
      %p3278 = pneg %p3277
    $region87: #{reduction_v4a.1} parent=5 // pred_check_branch
      %3280 = sbr.rel (%p3278) target = $region89
    $region88: #{reduction_v4a.1} parent=5 // pred_region
      %s3281 = ssub.s32 %s16, 2
      // Predicated region
      $region90: #{reduction_v4a.1} parent=88 // pred_check
        %p3282 = pneg %p260
      $region91: #{reduction_v4a.1} parent=88 // pred_check_branch
        %3284 = sbr.rel (%p3282) target = $region93
      $region92: #{reduction_v4a.1} parent=88 // pred_region
        %p3285 = scmp.lt.s32.totalorder %s22, 1
        %s3286 = scalar_select %p3285, %s22, 1
        %s3287 = smul.addr %s3286, 7
        %s3288 = smul.addr %s3287, 8
        %s3289 = scalar_lea.vmem %s10, %s3288
      $region93: #{reduction_v4a.1} parent=88 // pred_fallthru
        _
    $region89: #{reduction_v4a.1} parent=5 // pred_fallthru
      _
  $region6: #{reduction_v4a.1} parent=0 // loop_footer
    %s20 = sadd.s32 1, %s16
  $region7: #{reduction_v4a.1} parent=0 // loop_footer_branch
    %15 = sbr.rel target = $region3
  $region8: #{reduction_v4a.1} parent=0 // loop_exit
    _

</llo_original>
